<compile_context>
chip_gen: v7x
topology: tpu7x:2x2x1
jax: 0.10.0
libtpu: 0.0.40
codegen_flags: <defaults>
</compile_context>

<pallas_src>
import functools

import jax
import jax.numpy as jnp
import numpy as np
from jax.experimental import pallas as pl
from jax.experimental.pallas import tpu as pltpu

LANE = 128      # TPU lane width  (last dim)
SUBLANE = 8     # TPU sublane width (second-to-last dim)


def _rup(v, m):
    return ((v + m - 1) // m) * m


def _pad2(a, rows, cols):
    return jnp.pad(a, ((0, rows - a.shape[0]), (0, cols - a.shape[1])))


# ---------------------------------------------------------------------------
# Fused EConv forward kernel
#   grid axis 0 = edge-row tiles; node messages built once on step 0 and kept
#   resident in VMEM scratch for every later tile.
# ---------------------------------------------------------------------------
def _econv_kernel(eii_ref, eij_ref,                       # scalar-prefetch (SMEM)
                  eps_ref, x_ref, ncsel_ref, attr_ref, e_ref,
                  wmadj_ref, bmadj_ref, wmup_ref, bmup_ref,
                  wua_ref, bua_ref, wuu_ref, buu_ref,
                  wct_ref, wcb_ref, bc_ref,
                  out_ref,
                  msg_adj_scr, msg_up_scr, agg_adj_scr, agg_up_scr,
                  *, te):
    f32 = jnp.float32
    hi = jax.lax.Precision.HIGHEST

    # ---- node-level messages: built once (first grid step), then VMEM-resident
    @pl.when(pl.program_id(0) == 0)
    def _():
        # msg_adj = msg_adj_nn(x)
        msg_adj_scr[...] = (
            jnp.dot(x_ref[...], wmadj_ref[...],
                    preferred_element_type=f32, precision=hi)
            + bmadj_ref[...])
        # msg_up = (nc_list[1] @ msg_up_nn(attr_list[1]))[x_idx]
        #   (the per-node (graph, position) select is folded into ncsel)
        m_flat = (jnp.dot(attr_ref[...], wmup_ref[...],
                          preferred_element_type=f32, precision=hi)
                  + bmup_ref[...])
        msg_up_scr[...] = jnp.dot(ncsel_ref[...], m_flat,
                                  preferred_element_type=f32, precision=hi)

    # ---- per-edge TRUE gather: agg_* = msg_*[ei_i] + msg_*[ei_j]
    # Row-by-row dynamic sublane loads from the resident message tables; exact
    # and O(E*H), no [E,N] one-hot matmul.
    # TODO(synk): at realistic E switch to a vectorized (jnp.take) or DMA gather.
    base = pl.program_id(0) * te

    def _gather_row(r, carry):
        i0 = eii_ref[base + r]
        i1 = eij_ref[base + r]
        agg_adj_scr[pl.ds(r, 1), :] = (msg_adj_scr[pl.ds(i0, 1), :]
                                       + msg_adj_scr[pl.ds(i1, 1), :])
        agg_up_scr[pl.ds(r, 1), :] = (msg_up_scr[pl.ds(i0, 1), :]
                                      + msg_up_scr[pl.ds(i1, 1), :])
        return carry

    jax.lax.fori_loop(0, te, _gather_row, 0)

    # ---- per-stream update nets + combine; the torch concat is folded into the
    #      split combine weight (out = h_adj @ w_c_top + h_up @ w_c_bot + b_c).
    ev = e_ref[...]
    c1e = eps_ref[0:1, :] * ev        # (1 + eps1) * e   (sublane broadcast)
    c2e = eps_ref[1:2, :] * ev        # (1 + eps2) * e
    h_adj = jnp.maximum(
        jnp.dot(agg_adj_scr[...] + c1e, wua_ref[...],
                preferred_element_type=f32, precision=hi) + bua_ref[...],
        0.0)
    h_up = jnp.maximum(
        jnp.dot(agg_up_scr[...] + c2e, wuu_ref[...],
                preferred_element_type=f32, precision=hi) + buu_ref[...],
        0.0)
    out_ref[...] = (
        jnp.dot(h_adj, wct_ref[...], preferred_element_type=f32, precision=hi)
        + jnp.dot(h_up, wcb_ref[...], preferred_element_type=f32, precision=hi)
        + bc_ref[...])


# ---------------------------------------------------------------------------
# Wrapper: one-time layout plumbing (zero padding + folded selection matrix),
# then a single edge-tiled pallas_call.
# ---------------------------------------------------------------------------
@jax.jit
def econv_forward(params, x, e, edge_index, attr1, nc1, node_batch, node_pos):
    (w_madj, b_madj, w_mup, b_mup, w_ua, b_ua,
     w_uu, b_uu, w_c, b_c, eps1, eps2) = params

    f32 = jnp.float32
    N, H = x.shape
    E = e.shape[0]
    B, C, _ = attr1.shape
    O = w_c.shape[1]

    HP = _rup(H, LANE)          # lane-dense hidden dim
    OP = _rup(O, LANE)          # lane-dense output dim
    NP_ = _rup(N, SUBLANE)
    BC = B * C
    BCP = _rup(BC, SUBLANE)

    # Edge tile: largest tile keeps the pipeline efficient; at toy sizes a
    # single tile covers all edges.  EP padded so the grid divides exactly.
    TE = 256
    if E <= TE:
        TE = _rup(E, SUBLANE)
    EP = _rup(E, TE)
    n_tiles = EP // TE

    ei_j, ei_i = edge_index[0], edge_index[1]    # (i, j) = (1, 0) in torch code

    # node/edge features, zero padded to aligned, lane-dense tiles
    x_p = _pad2(x.astype(f32), NP_, HP)
    e_p = _pad2(e.astype(f32), EP, HP)
    # padded edge rows point at node 0; their outputs are sliced off below
    eii = jnp.pad(ei_i.astype(jnp.int32), (0, EP - E))
    eij = jnp.pad(ei_j.astype(jnp.int32), (0, EP - E))

    # ncsel[n, b*C + c] = (b == node_batch[n]) * nc1[node_batch[n], node_pos[n], c]
    # so  ncsel @ (attr1.reshape(B*C,H) @ w_mup + b_mup) == dense_up[x_idx]
    nc_rows = nc1[node_batch, node_pos].astype(f32)                       # [N, C]
    gsel = (node_batch[:, None] == jnp.arange(B)[None, :]).astype(f32)    # [N, B]
    ncsel = _pad2((gsel[:, :, None] * nc_rows[:, None, :]).reshape(N, BC),
                  NP_, BCP)
    attr_flat = _pad2(attr1.reshape(BC, H).astype(f32), BCP, HP)

    # weights, zero padded to lane-dense shapes; combine weight split per
    # stream (top half multiplies h_adj, bottom half h_up).
    wmadj_p = _pad2(w_madj.astype(f32), HP, HP)
    bmadj_p = _pad2(b_madj.astype(f32), 1, HP)
    wmup_p = _pad2(w_mup.astype(f32), HP, HP)
    bmup_p = _pad2(b_mup.astype(f32), 1, HP)
    wua_p = _pad2(w_ua.astype(f32), HP, HP)
    bua_p = _pad2(b_ua.astype(f32), 1, HP)
    wuu_p = _pad2(w_uu.astype(f32), HP, HP)
    buu_p = _pad2(b_uu.astype(f32), 1, HP)
    wct_p = _pad2(w_c[:H].astype(f32), HP, OP)
    wcb_p = _pad2(w_c[H:].astype(f32), HP, OP)
    bc_p = _pad2(b_c.astype(f32), 1, OP)

    # eps as traced data (row 0 = 1+eps1, row 1 = 1+eps2, broadcast over lanes)
    eps_col = 1.0 + jnp.stack([jnp.asarray(eps1, f32), jnp.asarray(eps2, f32)])
    eps_rows = (eps_col[:, None] * jnp.ones((1, HP), f32)).astype(f32)

    def _res(shape):  # whole-array VMEM-resident block (constant index map)
        return pl.BlockSpec(shape, lambda k, *_: (0, 0))

    in_specs = [
        _res((2, HP)),                                    # eps rows
        _res((NP_, HP)),                                  # x
        _res((NP_, BCP)),                                 # ncsel
        _res((BCP, HP)),                                  # attr_flat
        pl.BlockSpec((TE, HP), lambda k, *_: (k, 0)),     # e   (edge-tiled)
        _res((HP, HP)), _res((1, HP)),                    # w_madj, b_madj
        _res((HP, HP)), _res((1, HP)),                    # w_mup,  b_mup
        _res((HP, HP)), _res((1, HP)),                    # w_ua,   b_ua
        _res((HP, HP)), _res((1, HP)),                    # w_uu,   b_uu
        _res((HP, OP)), _res((HP, OP)),                   # w_c top / bottom
        _res((1, OP)),                                    # b_c
    ]

    grid_spec = pltpu.PrefetchScalarGridSpec(
        num_scalar_prefetch=2,                            # eii, eij -> SMEM
        grid=(n_tiles,),
        in_specs=in_specs,
        out_specs=pl.BlockSpec((TE, OP), lambda k, *_: (k, 0)),
        scratch_shapes=[pltpu.VMEM((NP_, HP), f32),       # msg_adj (gather table)
                        pltpu.VMEM((NP_, HP), f32),       # msg_up  (gather table)
                        pltpu.VMEM((TE, HP), f32),        # agg_adj (per-tile)
                        pltpu.VMEM((TE, HP), f32)])       # agg_up  (per-tile)

    out_pad = pl.pallas_call(
        functools.partial(_econv_kernel, te=TE),
        grid_spec=grid_spec,
        out_shape=jax.ShapeDtypeStruct((EP, OP), f32),
        compiler_params=pltpu.CompilerParams(
            dimension_semantics=("arbitrary",),
            vmem_limit_bytes=32 * 1024 * 1024),
    )(eii, eij, eps_rows, x_p, ncsel, attr_flat, e_p,
      wmadj_p, bmadj_p, wmup_p, bmup_p, wua_p, bua_p, wuu_p, buu_p,
      wct_p, wcb_p, bc_p)

    return out_pad[:E, :O]


# ---------------------------------------------------------------------------
# pure-JAX reference (faithful to the PyTorch forward) for correctness check
# ---------------------------------------------------------------------------
def econv_reference(params, x, e, edge_index, attr1, nc1, node_batch, node_pos):
    (w_madj, b_madj, w_mup, b_mup, w_ua, b_ua,
     w_uu, b_uu, w_c, b_c, eps1, eps2) = params
    with jax.default_matmul_precision("highest"):
        ei_j, ei_i = edge_index[0], edge_index[1]
        msg_adj = x @ w_madj + b_madj
        agg_adj = msg_adj[ei_i] + msg_adj[ei_j]
        dense_up = jnp.matmul(nc1, attr1 @ w_mup + b_mup)
        msg_up = dense_up[node_batch, node_pos]
        agg_up = msg_up[ei_i] + msg_up[ei_j]
        out_adj = jax.nn.relu((agg_adj + (1.0 + eps1) * e) @ w_ua + b_ua)
        out_up = jax.nn.relu((agg_up + (1.0 + eps2) * e) @ w_uu + b_uu)
        return jnp.concatenate([out_adj, out_up], axis=-1) @ w_c + b_c


if __name__ == "__main__":
    # Small synthetic graph batch consistent with MPParam:
    #   B=2 graphs, nodes per graph [8, 6] -> N=14, N_max=8,
    #   C=4 sub-structures per graph, hidden H=32, output O=32, E=24 edges.
    # Sub-nns are Linear (+ReLU on the update nets) with deterministic init.
    B, Nmax, C, H, O = 2, 8, 4, 32, 32
    nodes_per_graph = [8, 6]
    N = sum(nodes_per_graph)

    key = jax.random.PRNGKey(0)
    ks = jax.random.split(key, 16)

    # graph structure (within-graph edges)
    src0 = jax.random.randint(ks[0], (14,), 0, 8)
    dst0 = jax.random.randint(ks[1], (14,), 0, 8)
    src1 = 8 + jax.random.randint(ks[2], (10,), 0, 6)
    dst1 = 8 + jax.random.randint(ks[3], (10,), 0, 6)
    edge_index = jnp.stack(
        [jnp.concatenate([src0, src1]), jnp.concatenate([dst0, dst1])]
    ).astype(jnp.int32)                                     # [2, E], E=24
    E = edge_index.shape[1]

    node_batch = jnp.array([0] * 8 + [1] * 6, dtype=jnp.int32)   # x_idx graph id
    node_pos = jnp.array(list(range(8)) + list(range(6)), dtype=jnp.int32)

    # features
    x = jax.random.normal(ks[4], (N, H), dtype=jnp.float32)          # param.x
    e = jax.random.normal(ks[5], (E, H), dtype=jnp.float32)          # param.e
    attr1 = jax.random.normal(ks[6], (B, C, H), dtype=jnp.float32)   # attr_list[1]
    nc1 = jax.random.normal(ks[7], (B, Nmax, C), dtype=jnp.float32)  # nc_list[1]

    # deterministic parameters
    s = 0.1
    w_madj = s * jax.random.normal(ks[8], (H, H), dtype=jnp.float32)
    b_madj = s * jax.random.normal(ks[9], (1, H), dtype=jnp.float32)
    w_mup = s * jax.random.normal(ks[10], (H, H), dtype=jnp.float32)
    b_mup = s * jax.random.normal(ks[11], (1, H), dtype=jnp.float32)
    w_ua = s * jax.random.normal(ks[12], (H, H), dtype=jnp.float32)
    b_ua = jnp.zeros((1, H), dtype=jnp.float32)
    w_uu = s * jax.random.normal(ks[13], (H, H), dtype=jnp.float32)
    b_uu = jnp.zeros((1, H), dtype=jnp.float32)
    w_c = s * jax.random.normal(ks[14], (2 * H, O), dtype=jnp.float32)
    b_c = s * jax.random.normal(ks[15], (1, O), dtype=jnp.float32)
    # eps buffers passed as arrays (stay live if trained / reassigned)
    eps1 = jnp.asarray(0.25, dtype=jnp.float32)
    eps2 = jnp.asarray(-0.50, dtype=jnp.float32)

    params = (w_madj, b_madj, w_mup, b_mup, w_ua, b_ua,
              w_uu, b_uu, w_c, b_c, eps1, eps2)

    out = econv_forward(params, x, e, edge_index, attr1, nc1,
                        node_batch, node_pos)
    out = jax.block_until_ready(out)

    ref = econv_reference(params, x, e, edge_index, attr1, nc1,
                          node_batch, node_pos)
    # True gather + HIGHEST-precision matmuls in both kernel and reference ->
    # tight tolerance (the old 1e-2 hid bf16 MXU rounding in the one-hot path).
    np.testing.assert_allclose(np.asarray(out), np.asarray(ref),
                               rtol=1e-4, atol=1e-4)
    assert out.shape == (E, O)
    print("KERNEL_OK")
</pallas_src>

<mosaic_0001>
module attributes {stable_mosaic.version = 11 : i64} {
  func.func @_econv_kernel(%arg0: i32, %arg1: memref<24xi32, #tpu.memory_space<smem>>, %arg2: memref<24xi32, #tpu.memory_space<smem>>, %arg3: memref<2x128xf32, #tpu.memory_space<vmem>>, %arg4: memref<16x128xf32, #tpu.memory_space<vmem>>, %arg5: memref<16x8xf32, #tpu.memory_space<vmem>>, %arg6: memref<8x128xf32, #tpu.memory_space<vmem>>, %arg7: memref<24x128xf32, #tpu.memory_space<vmem>>, %arg8: memref<128x128xf32, #tpu.memory_space<vmem>>, %arg9: memref<1x128xf32, #tpu.memory_space<vmem>>, %arg10: memref<128x128xf32, #tpu.memory_space<vmem>>, %arg11: memref<1x128xf32, #tpu.memory_space<vmem>>, %arg12: memref<128x128xf32, #tpu.memory_space<vmem>>, %arg13: memref<1x128xf32, #tpu.memory_space<vmem>>, %arg14: memref<128x128xf32, #tpu.memory_space<vmem>>, %arg15: memref<1x128xf32, #tpu.memory_space<vmem>>, %arg16: memref<128x128xf32, #tpu.memory_space<vmem>>, %arg17: memref<128x128xf32, #tpu.memory_space<vmem>>, %arg18: memref<1x128xf32, #tpu.memory_space<vmem>>, %arg19: memref<24x128xf32, #tpu.memory_space<vmem>>, %arg20: memref<16x128xf32, #tpu.memory_space<vmem>>, %arg21: memref<16x128xf32, #tpu.memory_space<vmem>>, %arg22: memref<24x128xf32, #tpu.memory_space<vmem>>, %arg23: memref<24x128xf32, #tpu.memory_space<vmem>>) attributes {dimension_semantics = [#tpu.dimension_semantics<arbitrary>], iteration_bounds = array<i64: 1>, scalar_prefetch = 2 : i64, scratch_operands = 4 : i64, tpu.core_type = #tpu.core_type<tc>, window_params = [{pipeline_mode = #tpu.pipeline_mode<synchronous>, transform_indices = @transform_0, window_bounds = array<i64: 2, 128>}, {pipeline_mode = #tpu.pipeline_mode<synchronous>, transform_indices = @transform_1, window_bounds = array<i64: 16, 128>}, {pipeline_mode = #tpu.pipeline_mode<synchronous>, transform_indices = @transform_2, window_bounds = array<i64: 16, 8>}, {pipeline_mode = #tpu.pipeline_mode<synchronous>, transform_indices = @transform_3, window_bounds = array<i64: 8, 128>}, {transform_indices = @transform_4, window_bounds = array<i64: 24, 128>}, {pipeline_mode = #tpu.pipeline_mode<synchronous>, transform_indices = @transform_5, window_bounds = array<i64: 128, 128>}, {pipeline_mode = #tpu.pipeline_mode<synchronous>, transform_indices = @transform_6, window_bounds = array<i64: 1, 128>}, {pipeline_mode = #tpu.pipeline_mode<synchronous>, transform_indices = @transform_7, window_bounds = array<i64: 128, 128>}, {pipeline_mode = #tpu.pipeline_mode<synchronous>, transform_indices = @transform_8, window_bounds = array<i64: 1, 128>}, {pipeline_mode = #tpu.pipeline_mode<synchronous>, transform_indices = @transform_9, window_bounds = array<i64: 128, 128>}, {pipeline_mode = #tpu.pipeline_mode<synchronous>, transform_indices = @transform_10, window_bounds = array<i64: 1, 128>}, {pipeline_mode = #tpu.pipeline_mode<synchronous>, transform_indices = @transform_11, window_bounds = array<i64: 128, 128>}, {pipeline_mode = #tpu.pipeline_mode<synchronous>, transform_indices = @transform_12, window_bounds = array<i64: 1, 128>}, {pipeline_mode = #tpu.pipeline_mode<synchronous>, transform_indices = @transform_13, window_bounds = array<i64: 128, 128>}, {pipeline_mode = #tpu.pipeline_mode<synchronous>, transform_indices = @transform_14, window_bounds = array<i64: 128, 128>}, {pipeline_mode = #tpu.pipeline_mode<synchronous>, transform_indices = @transform_15, window_bounds = array<i64: 1, 128>}, {transform_indices = @transform_16, window_bounds = array<i64: 24, 128>}]} {
    %c0_i32 = arith.constant 0 : i32
    %0 = arith.cmpi eq, %arg0, %c0_i32 : i32
    %1 = arith.extui %0 : i1 to i32
    %c0_i32_0 = arith.constant 0 : i32
    %2 = arith.cmpi ne, %1, %c0_i32_0 : i32
    scf.if %2 {
      %c0_33 = arith.constant 0 : index
      %c0_34 = arith.constant 0 : index
      %39 = vector.load %arg4[%c0_33, %c0_34] : memref<16x128xf32, #tpu.memory_space<vmem>>, vector<16x128xf32>
      %c0_35 = arith.constant 0 : index
      %c0_36 = arith.constant 0 : index
      %40 = vector.load %arg8[%c0_35, %c0_36] : memref<128x128xf32, #tpu.memory_space<vmem>>, vector<128x128xf32>
      %cst_37 = arith.constant dense<0.000000e+00> : vector<16x128xf32>
      %41 = tpu.matmul %39, %40, %cst_37 {dimension_numbers = #tpu.dot_dimension_numbers<[1], [0], [0], [1], [0, 0, 1, 1], [], []>, precision = #tpu.contract_precision<fp32>} : vector<16x128xf32>, vector<128x128xf32>, vector<16x128xf32> -> vector<16x128xf32>
      %c0_38 = arith.constant 0 : index
      %c0_39 = arith.constant 0 : index
      %42 = vector.load %arg9[%c0_38, %c0_39] : memref<1x128xf32, #tpu.memory_space<vmem>>, vector<1x128xf32>
      %43 = vector.broadcast %42 : vector<1x128xf32> to vector<16x128xf32>
      %44 = arith.addf %41, %43 : vector<16x128xf32>
      %c0_40 = arith.constant 0 : index
      %c0_41 = arith.constant 0 : index
      %45 = vector.load %arg20[%c0_40, %c0_41] : memref<16x128xf32, #tpu.memory_space<vmem>>, vector<16x128xf32>
      tpu.vector_store %arg20[%c0_40, %c0_41], %44 {strides = array<i32>} : memref<16x128xf32, #tpu.memory_space<vmem>>, vector<16x128xf32>,
      %c0_42 = arith.constant 0 : index
      %c0_43 = arith.constant 0 : index
      %46 = vector.load %arg6[%c0_42, %c0_43] : memref<8x128xf32, #tpu.memory_space<vmem>>, vector<8x128xf32>
      %c0_44 = arith.constant 0 : index
      %c0_45 = arith.constant 0 : index
      %47 = vector.load %arg10[%c0_44, %c0_45] : memref<128x128xf32, #tpu.memory_space<vmem>>, vector<128x128xf32>
      %cst_46 = arith.constant dense<0.000000e+00> : vector<8x128xf32>
      %48 = tpu.matmul %46, %47, %cst_46 {dimension_numbers = #tpu.dot_dimension_numbers<[1], [0], [0], [1], [0, 0, 1, 1], [], []>, precision = #tpu.contract_precision<fp32>} : vector<8x128xf32>, vector<128x128xf32>, vector<8x128xf32> -> vector<8x128xf32>
      %c0_47 = arith.constant 0 : index
      %c0_48 = arith.constant 0 : index
      %49 = vector.load %arg11[%c0_47, %c0_48] : memref<1x128xf32, #tpu.memory_space<vmem>>, vector<1x128xf32>
      %50 = vector.broadcast %49 : vector<1x128xf32> to vector<8x128xf32>
      %51 = arith.addf %48, %50 : vector<8x128xf32>
      %c0_49 = arith.constant 0 : index
      %c0_50 = arith.constant 0 : index
      %52 = vector.load %arg5[%c0_49, %c0_50] : memref<16x8xf32, #tpu.memory_space<vmem>>, vector<16x8xf32>
      %cst_51 = arith.constant dense<0.000000e+00> : vector<16x128xf32>
      %53 = tpu.matmul %52, %51, %cst_51 {dimension_numbers = #tpu.dot_dimension_numbers<[1], [0], [0], [1], [0, 0, 1, 1], [], []>, precision = #tpu.contract_precision<fp32>} : vector<16x8xf32>, vector<8x128xf32>, vector<16x128xf32> -> vector<16x128xf32>
      %c0_52 = arith.constant 0 : index
      %c0_53 = arith.constant 0 : index
      %54 = vector.load %arg21[%c0_52, %c0_53] : memref<16x128xf32, #tpu.memory_space<vmem>>, vector<16x128xf32>
      tpu.vector_store %arg21[%c0_52, %c0_53], %53 {strides = array<i32>} : memref<16x128xf32, #tpu.memory_space<vmem>>, vector<16x128xf32>,
    } else {
    }
    %c24_i32 = arith.constant 24 : i32
    %3 = arith.muli %arg0, %c24_i32 : i32
    %c0_i32_1 = arith.constant 0 : i32
    %c24_i32_2 = arith.constant 24 : i32
    %4 = arith.addi %c0_i32_1, %c24_i32_2 : i32
    %c1_i32 = arith.constant 1 : i32
    scf.for %arg24 = %c0_i32_1 to %4 step %c1_i32  : i32 {
      %39 = arith.addi %3, %arg24 : i32
      %40 = arith.index_cast %39 : i32 to index
      %41 = memref.load %arg1[%40] : memref<24xi32, #tpu.memory_space<smem>>
      %42 = arith.addi %3, %arg24 : i32
      %43 = arith.index_cast %42 : i32 to index
      %44 = memref.load %arg2[%43] : memref<24xi32, #tpu.memory_space<smem>>
      %45 = arith.index_cast %41 : i32 to index
      %c0_33 = arith.constant 0 : index
      %46 = vector.load %arg20[%45, %c0_33] : memref<16x128xf32, #tpu.memory_space<vmem>>, vector<1x128xf32>
      %47 = arith.index_cast %44 : i32 to index
      %c0_34 = arith.constant 0 : index
      %48 = vector.load %arg20[%47, %c0_34] : memref<16x128xf32, #tpu.memory_space<vmem>>, vector<1x128xf32>
      %49 = arith.addf %46, %48 : vector<1x128xf32>
      %50 = arith.index_cast %arg24 : i32 to index
      %c0_35 = arith.constant 0 : index
      %51 = vector.load %arg22[%50, %c0_35] : memref<24x128xf32, #tpu.memory_space<vmem>>, vector<1x128xf32>
      tpu.vector_store %arg22[%50, %c0_35], %49 {strides = array<i32>} : memref<24x128xf32, #tpu.memory_space<vmem>>, vector<1x128xf32>,
      %52 = arith.index_cast %41 : i32 to index
      %c0_36 = arith.constant 0 : index
      %53 = vector.load %arg21[%52, %c0_36] : memref<16x128xf32, #tpu.memory_space<vmem>>, vector<1x128xf32>
      %54 = arith.index_cast %44 : i32 to index
      %c0_37 = arith.constant 0 : index
      %55 = vector.load %arg21[%54, %c0_37] : memref<16x128xf32, #tpu.memory_space<vmem>>, vector<1x128xf32>
      %56 = arith.addf %53, %55 : vector<1x128xf32>
      %57 = arith.index_cast %arg24 : i32 to index
      %c0_38 = arith.constant 0 : index
      %58 = vector.load %arg23[%57, %c0_38] : memref<24x128xf32, #tpu.memory_space<vmem>>, vector<1x128xf32>
      tpu.vector_store %arg23[%57, %c0_38], %56 {strides = array<i32>} : memref<24x128xf32, #tpu.memory_space<vmem>>, vector<1x128xf32>,
    }
    %c24_i32_3 = arith.constant 24 : i32
    %c0 = arith.constant 0 : index
    %c0_4 = arith.constant 0 : index
    %5 = vector.load %arg7[%c0, %c0_4] : memref<24x128xf32, #tpu.memory_space<vmem>>, vector<24x128xf32>
    %c0_5 = arith.constant 0 : index
    %c0_6 = arith.constant 0 : index
    %6 = vector.load %arg3[%c0_5, %c0_6] : memref<2x128xf32, #tpu.memory_space<vmem>>, vector<1x128xf32>
    %7 = vector.broadcast %6 : vector<1x128xf32> to vector<24x128xf32>
    %8 = arith.mulf %7, %5 : vector<24x128xf32>
    %c1 = arith.constant 1 : index
    %c0_7 = arith.constant 0 : index
    %9 = vector.load %arg3[%c1, %c0_7] : memref<2x128xf32, #tpu.memory_space<vmem>>, vector<1x128xf32>
    %10 = vector.broadcast %9 : vector<1x128xf32> to vector<24x128xf32>
    %11 = arith.mulf %10, %5 : vector<24x128xf32>
    %c0_8 = arith.constant 0 : index
    %c0_9 = arith.constant 0 : index
    %12 = vector.load %arg22[%c0_8, %c0_9] : memref<24x128xf32, #tpu.memory_space<vmem>>, vector<24x128xf32>
    %13 = arith.addf %12, %8 : vector<24x128xf32>
    %c0_10 = arith.constant 0 : index
    %c0_11 = arith.constant 0 : index
    %14 = vector.load %arg12[%c0_10, %c0_11] : memref<128x128xf32, #tpu.memory_space<vmem>>, vector<128x128xf32>
    %cst = arith.constant dense<0.000000e+00> : vector<24x128xf32>
    %15 = tpu.matmul %13, %14, %cst {dimension_numbers = #tpu.dot_dimension_numbers<[1], [0], [0], [1], [0, 0, 1, 1], [], []>, precision = #tpu.contract_precision<fp32>} : vector<24x128xf32>, vector<128x128xf32>, vector<24x128xf32> -> vector<24x128xf32>
    %c0_12 = arith.constant 0 : index
    %c0_13 = arith.constant 0 : index
    %16 = vector.load %arg13[%c0_12, %c0_13] : memref<1x128xf32, #tpu.memory_space<vmem>>, vector<1x128xf32>
    %17 = vector.broadcast %16 : vector<1x128xf32> to vector<24x128xf32>
    %18 = arith.addf %15, %17 : vector<24x128xf32>
    %cst_14 = arith.constant 0.000000e+00 : f32
    %19 = vector.broadcast %cst_14 : f32 to vector<24x128xf32>
    %20 = arith.maximumf %18, %19 : vector<24x128xf32>
    %c0_15 = arith.constant 0 : index
    %c0_16 = arith.constant 0 : index
    %21 = vector.load %arg23[%c0_15, %c0_16] : memref<24x128xf32, #tpu.memory_space<vmem>>, vector<24x128xf32>
    %22 = arith.addf %21, %11 : vector<24x128xf32>
    %c0_17 = arith.constant 0 : index
    %c0_18 = arith.constant 0 : index
    %23 = vector.load %arg14[%c0_17, %c0_18] : memref<128x128xf32, #tpu.memory_space<vmem>>, vector<128x128xf32>
    %cst_19 = arith.constant dense<0.000000e+00> : vector<24x128xf32>
    %24 = tpu.matmul %22, %23, %cst_19 {dimension_numbers = #tpu.dot_dimension_numbers<[1], [0], [0], [1], [0, 0, 1, 1], [], []>, precision = #tpu.contract_precision<fp32>} : vector<24x128xf32>, vector<128x128xf32>, vector<24x128xf32> -> vector<24x128xf32>
    %c0_20 = arith.constant 0 : index
    %c0_21 = arith.constant 0 : index
    %25 = vector.load %arg15[%c0_20, %c0_21] : memref<1x128xf32, #tpu.memory_space<vmem>>, vector<1x128xf32>
    %26 = vector.broadcast %25 : vector<1x128xf32> to vector<24x128xf32>
    %27 = arith.addf %24, %26 : vector<24x128xf32>
    %cst_22 = arith.constant 0.000000e+00 : f32
    %28 = vector.broadcast %cst_22 : f32 to vector<24x128xf32>
    %29 = arith.maximumf %27, %28 : vector<24x128xf32>
    %c0_23 = arith.constant 0 : index
    %c0_24 = arith.constant 0 : index
    %30 = vector.load %arg16[%c0_23, %c0_24] : memref<128x128xf32, #tpu.memory_space<vmem>>, vector<128x128xf32>
    %cst_25 = arith.constant dense<0.000000e+00> : vector<24x128xf32>
    %31 = tpu.matmul %20, %30, %cst_25 {dimension_numbers = #tpu.dot_dimension_numbers<[1], [0], [0], [1], [0, 0, 1, 1], [], []>, precision = #tpu.contract_precision<fp32>} : vector<24x128xf32>, vector<128x128xf32>, vector<24x128xf32> -> vector<24x128xf32>
    %c0_26 = arith.constant 0 : index
    %c0_27 = arith.constant 0 : index
    %32 = vector.load %arg17[%c0_26, %c0_27] : memref<128x128xf32, #tpu.memory_space<vmem>>, vector<128x128xf32>
    %cst_28 = arith.constant dense<0.000000e+00> : vector<24x128xf32>
    %33 = tpu.matmul %29, %32, %cst_28 {dimension_numbers = #tpu.dot_dimension_numbers<[1], [0], [0], [1], [0, 0, 1, 1], [], []>, precision = #tpu.contract_precision<fp32>} : vector<24x128xf32>, vector<128x128xf32>, vector<24x128xf32> -> vector<24x128xf32>
    %34 = arith.addf %31, %33 : vector<24x128xf32>
    %c0_29 = arith.constant 0 : index
    %c0_30 = arith.constant 0 : index
    %35 = vector.load %arg18[%c0_29, %c0_30] : memref<1x128xf32, #tpu.memory_space<vmem>>, vector<1x128xf32>
    %36 = vector.broadcast %35 : vector<1x128xf32> to vector<24x128xf32>
    %37 = arith.addf %34, %36 : vector<24x128xf32>
    %c0_31 = arith.constant 0 : index
    %c0_32 = arith.constant 0 : index
    %38 = vector.load %arg19[%c0_31, %c0_32] : memref<24x128xf32, #tpu.memory_space<vmem>>, vector<24x128xf32>
    tpu.vector_store %arg19[%c0_31, %c0_32], %37 {strides = array<i32>} : memref<24x128xf32, #tpu.memory_space<vmem>>, vector<24x128xf32>,
    return
  }
  func.func @transform_0(%arg0: i32, %arg1: memref<24xi32, #tpu.memory_space<smem>>, %arg2: memref<24xi32, #tpu.memory_space<smem>>) -> (i32, i32) {
    %c0_i32 = arith.constant 0 : i32
    %c0_i32_0 = arith.constant 0 : i32
    %c0_i32_1 = arith.constant 0 : i32
    return %c0_i32, %c0_i32_0 : i32, i32
  }
  func.func @transform_1(%arg0: i32, %arg1: memref<24xi32, #tpu.memory_space<smem>>, %arg2: memref<24xi32, #tpu.memory_space<smem>>) -> (i32, i32) {
    %c0_i32 = arith.constant 0 : i32
    %c0_i32_0 = arith.constant 0 : i32
    %c0_i32_1 = arith.constant 0 : i32
    return %c0_i32, %c0_i32_0 : i32, i32
  }
  func.func @transform_2(%arg0: i32, %arg1: memref<24xi32, #tpu.memory_space<smem>>, %arg2: memref<24xi32, #tpu.memory_space<smem>>) -> (i32, i32) {
    %c0_i32 = arith.constant 0 : i32
    %c0_i32_0 = arith.constant 0 : i32
    %c0_i32_1 = arith.constant 0 : i32
    return %c0_i32, %c0_i32_0 : i32, i32
  }
  func.func @transform_3(%arg0: i32, %arg1: memref<24xi32, #tpu.memory_space<smem>>, %arg2: memref<24xi32, #tpu.memory_space<smem>>) -> (i32, i32) {
    %c0_i32 = arith.constant 0 : i32
    %c0_i32_0 = arith.constant 0 : i32
    %c0_i32_1 = arith.constant 0 : i32
    return %c0_i32, %c0_i32_0 : i32, i32
  }
  func.func @transform_4(%arg0: i32, %arg1: memref<24xi32, #tpu.memory_space<smem>>, %arg2: memref<24xi32, #tpu.memory_space<smem>>) -> (i32, i32) {
    %c0_i32 = arith.constant 0 : i32
    %c0_i32_0 = arith.constant 0 : i32
    return %arg0, %c0_i32 : i32, i32
  }
  func.func @transform_5(%arg0: i32, %arg1: memref<24xi32, #tpu.memory_space<smem>>, %arg2: memref<24xi32, #tpu.memory_space<smem>>) -> (i32, i32) {
    %c0_i32 = arith.constant 0 : i32
    %c0_i32_0 = arith.constant 0 : i32
    %c0_i32_1 = arith.constant 0 : i32
    return %c0_i32, %c0_i32_0 : i32, i32
  }
  func.func @transform_6(%arg0: i32, %arg1: memref<24xi32, #tpu.memory_space<smem>>, %arg2: memref<24xi32, #tpu.memory_space<smem>>) -> (i32, i32) {
    %c0_i32 = arith.constant 0 : i32
    %c0_i32_0 = arith.constant 0 : i32
    %c0_i32_1 = arith.constant 0 : i32
    return %c0_i32, %c0_i32_0 : i32, i32
  }
  func.func @transform_7(%arg0: i32, %arg1: memref<24xi32, #tpu.memory_space<smem>>, %arg2: memref<24xi32, #tpu.memory_space<smem>>) -> (i32, i32) {
    %c0_i32 = arith.constant 0 : i32
    %c0_i32_0 = arith.constant 0 : i32
    %c0_i32_1 = arith.constant 0 : i32
    return %c0_i32, %c0_i32_0 : i32, i32
  }
  func.func @transform_8(%arg0: i32, %arg1: memref<24xi32, #tpu.memory_space<smem>>, %arg2: memref<24xi32, #tpu.memory_space<smem>>) -> (i32, i32) {
    %c0_i32 = arith.constant 0 : i32
    %c0_i32_0 = arith.constant 0 : i32
    %c0_i32_1 = arith.constant 0 : i32
    return %c0_i32, %c0_i32_0 : i32, i32
  }
  func.func @transform_9(%arg0: i32, %arg1: memref<24xi32, #tpu.memory_space<smem>>, %arg2: memref<24xi32, #tpu.memory_space<smem>>) -> (i32, i32) {
    %c0_i32 = arith.constant 0 : i32
    %c0_i32_0 = arith.constant 0 : i32
    %c0_i32_1 = arith.constant 0 : i32
    return %c0_i32, %c0_i32_0 : i32, i32
  }
  func.func @transform_10(%arg0: i32, %arg1: memref<24xi32, #tpu.memory_space<smem>>, %arg2: memref<24xi32, #tpu.memory_space<smem>>) -> (i32, i32) {
    %c0_i32 = arith.constant 0 : i32
    %c0_i32_0 = arith.constant 0 : i32
    %c0_i32_1 = arith.constant 0 : i32
    return %c0_i32, %c0_i32_0 : i32, i32
  }
  func.func @transform_11(%arg0: i32, %arg1: memref<24xi32, #tpu.memory_space<smem>>, %arg2: memref<24xi32, #tpu.memory_space<smem>>) -> (i32, i32) {
    %c0_i32 = arith.constant 0 : i32
    %c0_i32_0 = arith.constant 0 : i32
    %c0_i32_1 = arith.constant 0 : i32
    return %c0_i32, %c0_i32_0 : i32, i32
  }
  func.func @transform_12(%arg0: i32, %arg1: memref<24xi32, #tpu.memory_space<smem>>, %arg2: memref<24xi32, #tpu.memory_space<smem>>) -> (i32, i32) {
    %c0_i32 = arith.constant 0 : i32
    %c0_i32_0 = arith.constant 0 : i32
    %c0_i32_1 = arith.constant 0 : i32
    return %c0_i32, %c0_i32_0 : i32, i32
  }
  func.func @transform_13(%arg0: i32, %arg1: memref<24xi32, #tpu.memory_space<smem>>, %arg2: memref<24xi32, #tpu.memory_space<smem>>) -> (i32, i32) {
    %c0_i32 = arith.constant 0 : i32
    %c0_i32_0 = arith.constant 0 : i32
    %c0_i32_1 = arith.constant 0 : i32
    return %c0_i32, %c0_i32_0 : i32, i32
  }
  func.func @transform_14(%arg0: i32, %arg1: memref<24xi32, #tpu.memory_space<smem>>, %arg2: memref<24xi32, #tpu.memory_space<smem>>) -> (i32, i32) {
    %c0_i32 = arith.constant 0 : i32
    %c0_i32_0 = arith.constant 0 : i32
    %c0_i32_1 = arith.constant 0 : i32
    return %c0_i32, %c0_i32_0 : i32, i32
  }
  func.func @transform_15(%arg0: i32, %arg1: memref<24xi32, #tpu.memory_space<smem>>, %arg2: memref<24xi32, #tpu.memory_space<smem>>) -> (i32, i32) {
    %c0_i32 = arith.constant 0 : i32
    %c0_i32_0 = arith.constant 0 : i32
    %c0_i32_1 = arith.constant 0 : i32
    return %c0_i32, %c0_i32_0 : i32, i32
  }
  func.func @transform_16(%arg0: i32, %arg1: memref<24xi32, #tpu.memory_space<smem>>, %arg2: memref<24xi32, #tpu.memory_space<smem>>) -> (i32, i32) {
    %c0_i32 = arith.constant 0 : i32
    %c0_i32_0 = arith.constant 0 : i32
    return %arg0, %c0_i32 : i32, i32
  }
}

</mosaic_0001>

<llo_original>
// kernel: mul.19
$region0: #{mul.19}
  #allocation0 [shape = 's32[1]{0}', space=sflag, size = 0x4, scoped, tag = 'scoped memory for mul.19']
  %s0 = inlined_call_operand.vmem [shape: f32[2], index: 0, kind: input, shape index: {}]
  %s1 = inlined_call_operand.vmem [shape: f32[2,128], index: 1, kind: output, shape index: {}]
  // Predicated region
  $region2: #{mul.19} parent=0 // pred_check
    _
  $region3: #{mul.19} parent=0 // pred_check_branch
    %3 = sbr.rel (0) target = $region5
  $region4: #{mul.19} parent=0 // pred_region
    _
  $region5: #{mul.19} parent=0 // pred_fallthru
    _
  %v4 = vld [vmem:[%s0] ss:$0 sm:$0xff]
  %6 = vbcast.lane.b32.xlu0 %v4, 256
  %v7 = vpop.permute.xlu0 %6
  %8 = vst [vmem:[%s1] sm:$0x3] %v7

// kernel: econv_forward.1
$region0: #{econv_forward.1}
  #allocation0 [shape = 'u32[]', space=smem, size = 0x4, offset = 0x4, fixed_abs, tag = 'smem constant byte address 0x4 - core index']
  #allocation1 [shape = 'u32[144,128]{1,0:T(1,128)}', space=vmem, size = 0x12000, scoped, tag = 'internal scratch']
  #allocation2 [shape = 'f32[16,128]{1,0:T(8,128)}', space=vmem, size = 0x2000, scoped, tag = 'scratch operand']
  #allocation3 [shape = 'f32[16,128]{1,0:T(8,128)}', space=vmem, size = 0x2000, scoped, tag = 'scratch operand']
  #allocation4 [shape = 'f32[24,128]{1,0:T(8,128)}', space=vmem, size = 0x3000, scoped, tag = 'scratch operand']
  #allocation5 [shape = 'f32[24,128]{1,0:T(8,128)}', space=vmem, size = 0x3000, scoped, tag = 'scratch operand']
  #allocation6 [shape = 's32[1]{0}', space=sflag, size = 0x4, scoped, tag = 'scoped memory for econv_forward.1']
  #allocation7 [shape = 'u8[512]{0}', space=smem, size = 0x200, scoped, tag = 'prefetched SMEM operand 0']
  #allocation8 [shape = 'u8[512]{0}', space=smem, size = 0x200, scoped, tag = 'prefetched SMEM operand 1']
  %s0 = inlined_call_operand.vmem [shape: s32[24], index: 0, kind: input, shape index: {}]
  %s1 = inlined_call_operand.vmem [shape: s32[24], index: 1, kind: input, shape index: {}]
  %s2 = inlined_call_operand.vmem [shape: f32[2,128], index: 2, kind: input, shape index: {}]
  %s3 = inlined_call_operand.vmem [shape: f32[16,128], index: 3, kind: input, shape index: {}]
  %s4 = inlined_call_operand.vmem [shape: f32[16,8], index: 4, kind: input, shape index: {}]
  %s5 = inlined_call_operand.vmem [shape: f32[8,128], index: 5, kind: input, shape index: {}]
  %s6 = inlined_call_operand.vmem [shape: f32[24,128], index: 6, kind: input, shape index: {}]
  %s7 = inlined_call_operand.vmem [shape: f32[128,128], index: 7, kind: input, shape index: {}]
  %s8 = inlined_call_operand.vmem [shape: f32[1,128], index: 8, kind: input, shape index: {}]
  %s9 = inlined_call_operand.vmem [shape: f32[128,128], index: 9, kind: input, shape index: {}]
  %s10 = inlined_call_operand.vmem [shape: f32[1,128], index: 10, kind: input, shape index: {}]
  %s11 = inlined_call_operand.vmem [shape: f32[128,128], index: 11, kind: input, shape index: {}]
  %s12 = inlined_call_operand.vmem [shape: f32[1,128], index: 12, kind: input, shape index: {}]
  %s13 = inlined_call_operand.vmem [shape: f32[128,128], index: 13, kind: input, shape index: {}]
  %s14 = inlined_call_operand.vmem [shape: f32[1,128], index: 14, kind: input, shape index: {}]
  %s15 = inlined_call_operand.vmem [shape: f32[128,128], index: 15, kind: input, shape index: {}]
  %s16 = inlined_call_operand.vmem [shape: f32[128,128], index: 16, kind: input, shape index: {}]
  %s17 = inlined_call_operand.vmem [shape: f32[1,128], index: 17, kind: input, shape index: {}]
  %s18 = inlined_call_operand.hbm [shape: f32[24,128], index: 18, kind: output, shape index: {}]
  %s19 = sld [smem:[#allocation0]]
  $region85: #{econv_forward.1} parent=0
    _
  %s21 = ssub.s32 1, %s19
  %s22 = scalar_select 0, %s21, %s19
  %s23 = sshll.u32 %s0, 4
  %s24 = int_to_ptr.vmem [resolvable:$true] %s23
  %26 = dma.vmem_to_smem %s24, 16, [#allocation7], [#allocation6]
  %s27 = sshll.u32 %s1, 4
  %s28 = int_to_ptr.vmem [resolvable:$true] %s27
  %30 = dma.vmem_to_smem %s28, 16, [#allocation8], [#allocation6]
  %31 = dma.done [#allocation6], 32
  %32 = sfence
  $region1: #{econv_forward.1} parent=0
    #allocation9 [shape = 'u8[12288]{0}', space=vmem, size = 0x3000, scoped, tag = 'output window, operand 0, single buffered']
    #allocation10 [shape = 's32[1]{0}', space=sflag, size = 0x4, scoped, tag = 'scoped memory for econv_forward.1']
    %33 = vsyncpa [#allocation10], 0
    // Predicated region
    $region2: #{econv_forward.1} parent=1 // pred_check
      _
    $region3: #{econv_forward.1} parent=1 // pred_check_branch
      %35 = sbr.rel (0) target = $region5
    $region4: #{econv_forward.1} parent=1 // pred_region
      _
    $region5: #{econv_forward.1} parent=1 // pred_fallthru
      _
    // Predicated region
    $region6: #{econv_forward.1} parent=1 // pred_check
      _
    $region7: #{econv_forward.1} parent=1 // pred_check_branch
      %37 = sbr.rel (0) target = $region9
    $region8: #{econv_forward.1} parent=1 // pred_region
      _
    $region9: #{econv_forward.1} parent=1 // pred_fallthru
      _
    // Predicated region
    $region10: #{econv_forward.1} parent=1 // pred_check
      _
    $region11: #{econv_forward.1} parent=1 // pred_check_branch
      %39 = sbr.rel (0) target = $region13
    $region12: #{econv_forward.1} parent=1 // pred_region
      _
    $region13: #{econv_forward.1} parent=1 // pred_fallthru
      _
    // Predicated region
    $region14: #{econv_forward.1} parent=1 // pred_check
      _
    $region15: #{econv_forward.1} parent=1 // pred_check_branch
      %41 = sbr.rel (0) target = $region17
    $region16: #{econv_forward.1} parent=1 // pred_region
      _
    $region17: #{econv_forward.1} parent=1 // pred_fallthru
      _
    // Predicated region
    $region18: #{econv_forward.1} parent=1 // pred_check
      _
    $region19: #{econv_forward.1} parent=1 // pred_check_branch
      %43 = sbr.rel (0) target = $region21
    $region20: #{econv_forward.1} parent=1 // pred_region
      _
    $region21: #{econv_forward.1} parent=1 // pred_fallthru
      _
    // Predicated region
    $region22: #{econv_forward.1} parent=1 // pred_check
      _
    $region23: #{econv_forward.1} parent=1 // pred_check_branch
      %45 = sbr.rel (0) target = $region25
    $region24: #{econv_forward.1} parent=1 // pred_region
      _
    $region25: #{econv_forward.1} parent=1 // pred_fallthru
      _
    // Predicated region
    $region26: #{econv_forward.1} parent=1 // pred_check
      _
    $region27: #{econv_forward.1} parent=1 // pred_check_branch
      %47 = sbr.rel (0) target = $region29
    $region28: #{econv_forward.1} parent=1 // pred_region
      _
    $region29: #{econv_forward.1} parent=1 // pred_fallthru
      _
    // Predicated region
    $region30: #{econv_forward.1} parent=1 // pred_check
      _
    $region31: #{econv_forward.1} parent=1 // pred_check_branch
      %49 = sbr.rel (0) target = $region33
    $region32: #{econv_forward.1} parent=1 // pred_region
      _
    $region33: #{econv_forward.1} parent=1 // pred_fallthru
      _
    // Predicated region
    $region34: #{econv_forward.1} parent=1 // pred_check
      _
    $region35: #{econv_forward.1} parent=1 // pred_check_branch
      %51 = sbr.rel (0) target = $region37
    $region36: #{econv_forward.1} parent=1 // pred_region
      _
    $region37: #{econv_forward.1} parent=1 // pred_fallthru
      _
    // Predicated region
    $region38: #{econv_forward.1} parent=1 // pred_check
      _
    $region39: #{econv_forward.1} parent=1 // pred_check_branch
      %53 = sbr.rel (0) target = $region41
    $region40: #{econv_forward.1} parent=1 // pred_region
      _
    $region41: #{econv_forward.1} parent=1 // pred_fallthru
      _
    // Predicated region
    $region42: #{econv_forward.1} parent=1 // pred_check
      _
    $region43: #{econv_forward.1} parent=1 // pred_check_branch
      %55 = sbr.rel (0) target = $region45
    $region44: #{econv_forward.1} parent=1 // pred_region
      _
    $region45: #{econv_forward.1} parent=1 // pred_fallthru
      _
    // Predicated region
    $region46: #{econv_forward.1} parent=1 // pred_check
      _
    $region47: #{econv_forward.1} parent=1 // pred_check_branch
      %57 = sbr.rel (0) target = $region49
    $region48: #{econv_forward.1} parent=1 // pred_region
      _
    $region49: #{econv_forward.1} parent=1 // pred_fallthru
      _
    // Predicated region
    $region50: #{econv_forward.1} parent=1 // pred_check
      _
    $region51: #{econv_forward.1} parent=1 // pred_check_branch
      %59 = sbr.rel (0) target = $region53
    $region52: #{econv_forward.1} parent=1 // pred_region
      _
    $region53: #{econv_forward.1} parent=1 // pred_fallthru
      _
    // Predicated region
    $region54: #{econv_forward.1} parent=1 // pred_check
      _
    $region55: #{econv_forward.1} parent=1 // pred_check_branch
      %61 = sbr.rel (0) target = $region57
    $region56: #{econv_forward.1} parent=1 // pred_region
      _
    $region57: #{econv_forward.1} parent=1 // pred_fallthru
      _
    // Predicated region
    $region58: #{econv_forward.1} parent=1 // pred_check
      _
    $region59: #{econv_forward.1} parent=1 // pred_check_branch
      %63 = sbr.rel (0) target = $region61
    $region60: #{econv_forward.1} parent=1 // pred_region
      _
    $region61: #{econv_forward.1} parent=1 // pred_fallthru
      _
    // Predicated region
    $region62: #{econv_forward.1} parent=1 // pred_check
      _
    $region63: #{econv_forward.1} parent=1 // pred_check_branch
      %65 = sbr.rel (0) target = $region65
    $region64: #{econv_forward.1} parent=1 // pred_region
      _
    $region65: #{econv_forward.1} parent=1 // pred_fallthru
      _
    %p66 = scmp.eq.s32.totalorder 0, 0
    // Predicated region
    $region66: #{econv_forward.1} parent=1 // pred_check
      %p67 = pneg %p66
    $region67: #{econv_forward.1} parent=1 // pred_check_branch
      %69 = sbr.rel (%p67) target = $region69
    $region68: #{econv_forward.1} parent=1 // pred_region
      %v70 = vld [vmem:[%s3] sm:$0xff]
      %v71 = vld [vmem:[%s3 + $0x8] sm:$0xff]
      %v72 = vld [vmem:[%s7] sm:$0xff]
      %v73 = vld [vmem:[%s7 + $0x8] sm:$0xff]
      %v74 = vld [vmem:[%s7 + $0x10] sm:$0xff]
      %v75 = vld [vmem:[%s7 + $0x18] sm:$0xff]
      %v76 = vld [vmem:[%s7 + $0x20] sm:$0xff]
      %v77 = vld [vmem:[%s7 + $0x28] sm:$0xff]
      %v78 = vld [vmem:[%s7 + $0x30] sm:$0xff]
      %v79 = vld [vmem:[%s7 + $0x38] sm:$0xff]
      %v80 = vld [vmem:[%s7 + $0x40] sm:$0xff]
      %v81 = vld [vmem:[%s7 + $0x48] sm:$0xff]
      %v82 = vld [vmem:[%s7 + $0x50] sm:$0xff]
      %v83 = vld [vmem:[%s7 + $0x58] sm:$0xff]
      %v84 = vld [vmem:[%s7 + $0x60] sm:$0xff]
      %v85 = vld [vmem:[%s7 + $0x68] sm:$0xff]
      %v86 = vld [vmem:[%s7 + $0x70] sm:$0xff]
      %v87 = vld [vmem:[%s7 + $0x78] sm:$0xff]
      %v88 = vld [vmem:[%s8] sm:$0x1]
      %v90 = vlaneseq
      %v91 = vshrl.u32 %v90, 7
      %v92 = vsub.s32 0, %v91
      %v93 = vrot.slane %v88, %v92
      %95 = vmatprep.subr.mxu0 0.0
      %v96 = vand.u32 %v72, 4294901760
      %97 = vmatpush1.msra.mxu0 %v96
      %98 = vmatprep.subr.mxu0 0.0
      %v99 = vand.u32 %v73, 4294901760
      %100 = vmatpush1.msra.mxu0 %v99
      %101 = vmatprep.subr.mxu0 0.0
      %v102 = vand.u32 %v74, 4294901760
      %103 = vmatpush1.msra.mxu0 %v102
      %104 = vmatprep.subr.mxu0 0.0
      %v105 = vand.u32 %v75, 4294901760
      %106 = vmatpush1.msra.mxu0 %v105
      %107 = vmatprep.subr.mxu0 0.0
      %v108 = vand.u32 %v76, 4294901760
      %109 = vmatpush1.msra.mxu0 %v108
      %110 = vmatprep.subr.mxu0 0.0
      %v111 = vand.u32 %v77, 4294901760
      %112 = vmatpush1.msra.mxu0 %v111
      %113 = vmatprep.subr.mxu0 0.0
      %v114 = vand.u32 %v78, 4294901760
      %115 = vmatpush1.msra.mxu0 %v114
      %116 = vmatprep.subr.mxu0 0.0
      %v117 = vand.u32 %v79, 4294901760
      %118 = vmatpush1.msra.mxu0 %v117
      %119 = vmatprep.subr.mxu0 0.0
      %v120 = vand.u32 %v80, 4294901760
      %121 = vmatpush1.msra.mxu0 %v120
      %122 = vmatprep.subr.mxu0 0.0
      %v123 = vand.u32 %v81, 4294901760
      %124 = vmatpush1.msra.mxu0 %v123
      %125 = vmatprep.subr.mxu0 0.0
      %v126 = vand.u32 %v82, 4294901760
      %127 = vmatpush1.msra.mxu0 %v126
      %128 = vmatprep.subr.mxu0 0.0
      %v129 = vand.u32 %v83, 4294901760
      %130 = vmatpush1.msra.mxu0 %v129
      %131 = vmatprep.subr.mxu0 0.0
      %v132 = vand.u32 %v84, 4294901760
      %133 = vmatpush1.msra.mxu0 %v132
      %134 = vmatprep.subr.mxu0 0.0
      %v135 = vand.u32 %v85, 4294901760
      %136 = vmatpush1.msra.mxu0 %v135
      %137 = vmatprep.subr.mxu0 0.0
      %v138 = vand.u32 %v86, 4294901760
      %139 = vmatpush1.msra.mxu0 %v138
      %140 = vmatprep.subr.mxu0 0.0
      %v141 = vand.u32 %v87, 4294901760
      %142 = vmatpush1.msra.mxu0 %v141
      %143 = vmatprep.subr.mxu0 0.0
      %144 = vmatpush1.msra.mxu0 0.0
      %145 = vmatprep.subr.mxu0 0.0
      %146 = vmatpush1.msra.mxu0 0.0
      %147 = vmatprep.subr.mxu0 0.0
      %148 = vmatpush1.msra.mxu0 0.0
      %149 = vmatprep.subr.mxu0 0.0
      %150 = vmatpush1.msra.mxu0 0.0
      %151 = vmatprep.subr.mxu0 0.0
      %152 = vmatpush1.msra.mxu0 0.0
      %153 = vmatprep.subr.mxu0 0.0
      %154 = vmatpush1.msra.mxu0 0.0
      %155 = vmatprep.subr.mxu0 0.0
      %156 = vmatpush1.msra.mxu0 0.0
      %157 = vmatprep.subr.mxu0 0.0
      %158 = vmatpush1.msra.mxu0 0.0
      %159 = vmatprep.subr.mxu0 0.0
      %160 = vmatpush1.msra.mxu0 0.0
      %161 = vmatprep.subr.mxu0 0.0
      %162 = vmatpush1.msra.mxu0 0.0
      %163 = vmatprep.subr.mxu0 0.0
      %164 = vmatpush1.msra.mxu0 0.0
      %165 = vmatprep.subr.mxu0 0.0
      %166 = vmatpush1.msra.mxu0 0.0
      %167 = vmatprep.subr.mxu0 0.0
      %168 = vmatpush1.msra.mxu0 0.0
      %169 = vmatprep.subr.mxu0 0.0
      %170 = vmatpush1.msra.mxu0 0.0
      %171 = vmatprep.subr.mxu0 0.0
      %172 = vmatpush1.msra.mxu0 0.0
      %173 = vmatprep.subr.mxu0 0.0
      %174 = vmatpush1.msra.mxu0 0.0
      %175 = vmatprep.mubr.f32.mxu0 0.0
      %v176 = vand.u32 %v70, 4294901760
      %v177 = vsub.f32 %v70, %v176
      %v178 = vand.u32 %v177, 4294901760
      %v179 = vsub.f32 %v177, %v178
      %v180 = vand.u32 %v179, 4294901760
      %181 = vmatmul.mubr.f32.gmra.mrb[0].mxu0 %v180
      %v182 = vpop.f32.mrb[0].mxu0
      %v183 = vadd.f32 %v93, %v182
      %v184 = vpop.f32.mrb[0].mxu0
      %185 = vmatprep.mubr.f32.mxu0 0.0
      %v186 = vand.u32 %v71, 4294901760
      %v187 = vsub.f32 %v71, %v186
      %v188 = vand.u32 %v187, 4294901760
      %v189 = vsub.f32 %v187, %v188
      %v190 = vand.u32 %v189, 4294901760
      %191 = vmatmul.mubr.f32.gmra.mrb[0].mxu0 %v190
      %v192 = vpop.f32.mrb[0].mxu0
      %v193 = vadd.f32 %v93, %v192
      %v194 = vpop.f32.mrb[0].mxu0
      %195 = vdwg.mxu0
      %196 = vmatprep.subr.mxu0 0.0
      %v197 = vand.u32 %v72, 4294901760
      %v198 = vsub.f32 %v72, %v197
      %v199 = vand.u32 %v198, 4294901760
      %v200 = vsub.f32 %v198, %v199
      %v201 = vand.u32 %v200, 4294901760
      %202 = vmatpush1.msra.mxu0 %v201
      %203 = vmatprep.subr.mxu0 0.0
      %v204 = vand.u32 %v73, 4294901760
      %v205 = vsub.f32 %v73, %v204
      %v206 = vand.u32 %v205, 4294901760
      %v207 = vsub.f32 %v205, %v206
      %v208 = vand.u32 %v207, 4294901760
      %209 = vmatpush1.msra.mxu0 %v208
      %210 = vmatprep.subr.mxu0 0.0
      %v211 = vand.u32 %v74, 4294901760
      %v212 = vsub.f32 %v74, %v211
      %v213 = vand.u32 %v212, 4294901760
      %v214 = vsub.f32 %v212, %v213
      %v215 = vand.u32 %v214, 4294901760
      %216 = vmatpush1.msra.mxu0 %v215
      %217 = vmatprep.subr.mxu0 0.0
      %v218 = vand.u32 %v75, 4294901760
      %v219 = vsub.f32 %v75, %v218
      %v220 = vand.u32 %v219, 4294901760
      %v221 = vsub.f32 %v219, %v220
      %v222 = vand.u32 %v221, 4294901760
      %223 = vmatpush1.msra.mxu0 %v222
      %224 = vmatprep.subr.mxu0 0.0
      %v225 = vand.u32 %v76, 4294901760
      %v226 = vsub.f32 %v76, %v225
      %v227 = vand.u32 %v226, 4294901760
      %v228 = vsub.f32 %v226, %v227
      %v229 = vand.u32 %v228, 4294901760
      %230 = vmatpush1.msra.mxu0 %v229
      %231 = vmatprep.subr.mxu0 0.0
      %v232 = vand.u32 %v77, 4294901760
      %v233 = vsub.f32 %v77, %v232
      %v234 = vand.u32 %v233, 4294901760
      %v235 = vsub.f32 %v233, %v234
      %v236 = vand.u32 %v235, 4294901760
      %237 = vmatpush1.msra.mxu0 %v236
      %238 = vmatprep.subr.mxu0 0.0
      %v239 = vand.u32 %v78, 4294901760
      %v240 = vsub.f32 %v78, %v239
      %v241 = vand.u32 %v240, 4294901760
      %v242 = vsub.f32 %v240, %v241
      %v243 = vand.u32 %v242, 4294901760
      %244 = vmatpush1.msra.mxu0 %v243
      %245 = vmatprep.subr.mxu0 0.0
      %v246 = vand.u32 %v79, 4294901760
      %v247 = vsub.f32 %v79, %v246
      %v248 = vand.u32 %v247, 4294901760
      %v249 = vsub.f32 %v247, %v248
      %v250 = vand.u32 %v249, 4294901760
      %251 = vmatpush1.msra.mxu0 %v250
      %252 = vmatprep.subr.mxu0 0.0
      %v253 = vand.u32 %v80, 4294901760
      %v254 = vsub.f32 %v80, %v253
      %v255 = vand.u32 %v254, 4294901760
      %v256 = vsub.f32 %v254, %v255
      %v257 = vand.u32 %v256, 4294901760
      %258 = vmatpush1.msra.mxu0 %v257
      %259 = vmatprep.subr.mxu0 0.0
      %v260 = vand.u32 %v81, 4294901760
      %v261 = vsub.f32 %v81, %v260
      %v262 = vand.u32 %v261, 4294901760
      %v263 = vsub.f32 %v261, %v262
      %v264 = vand.u32 %v263, 4294901760
      %265 = vmatpush1.msra.mxu0 %v264
      %266 = vmatprep.subr.mxu0 0.0
      %v267 = vand.u32 %v82, 4294901760
      %v268 = vsub.f32 %v82, %v267
      %v269 = vand.u32 %v268, 4294901760
      %v270 = vsub.f32 %v268, %v269
      %v271 = vand.u32 %v270, 4294901760
      %272 = vmatpush1.msra.mxu0 %v271
      %273 = vmatprep.subr.mxu0 0.0
      %v274 = vand.u32 %v83, 4294901760
      %v275 = vsub.f32 %v83, %v274
      %v276 = vand.u32 %v275, 4294901760
      %v277 = vsub.f32 %v275, %v276
      %v278 = vand.u32 %v277, 4294901760
      %279 = vmatpush1.msra.mxu0 %v278
      %280 = vmatprep.subr.mxu0 0.0
      %v281 = vand.u32 %v84, 4294901760
      %v282 = vsub.f32 %v84, %v281
      %v283 = vand.u32 %v282, 4294901760
      %v284 = vsub.f32 %v282, %v283
      %v285 = vand.u32 %v284, 4294901760
      %286 = vmatpush1.msra.mxu0 %v285
      %287 = vmatprep.subr.mxu0 0.0
      %v288 = vand.u32 %v85, 4294901760
      %v289 = vsub.f32 %v85, %v288
      %v290 = vand.u32 %v289, 4294901760
      %v291 = vsub.f32 %v289, %v290
      %v292 = vand.u32 %v291, 4294901760
      %293 = vmatpush1.msra.mxu0 %v292
      %294 = vmatprep.subr.mxu0 0.0
      %v295 = vand.u32 %v86, 4294901760
      %v296 = vsub.f32 %v86, %v295
      %v297 = vand.u32 %v296, 4294901760
      %v298 = vsub.f32 %v296, %v297
      %v299 = vand.u32 %v298, 4294901760
      %300 = vmatpush1.msra.mxu0 %v299
      %301 = vmatprep.subr.mxu0 0.0
      %v302 = vand.u32 %v87, 4294901760
      %v303 = vsub.f32 %v87, %v302
      %v304 = vand.u32 %v303, 4294901760
      %v305 = vsub.f32 %v303, %v304
      %v306 = vand.u32 %v305, 4294901760
      %307 = vmatpush1.msra.mxu0 %v306
      %308 = vmatprep.subr.mxu0 0.0
      %309 = vmatpush1.msra.mxu0 0.0
      %310 = vmatprep.subr.mxu0 0.0
      %311 = vmatpush1.msra.mxu0 0.0
      %312 = vmatprep.subr.mxu0 0.0
      %313 = vmatpush1.msra.mxu0 0.0
      %314 = vmatprep.subr.mxu0 0.0
      %315 = vmatpush1.msra.mxu0 0.0
      %316 = vmatprep.subr.mxu0 0.0
      %317 = vmatpush1.msra.mxu0 0.0
      %318 = vmatprep.subr.mxu0 0.0
      %319 = vmatpush1.msra.mxu0 0.0
      %320 = vmatprep.subr.mxu0 0.0
      %321 = vmatpush1.msra.mxu0 0.0
      %322 = vmatprep.subr.mxu0 0.0
      %323 = vmatpush1.msra.mxu0 0.0
      %324 = vmatprep.subr.mxu0 0.0
      %325 = vmatpush1.msra.mxu0 0.0
      %326 = vmatprep.subr.mxu0 0.0
      %327 = vmatpush1.msra.mxu0 0.0
      %328 = vmatprep.subr.mxu0 0.0
      %329 = vmatpush1.msra.mxu0 0.0
      %330 = vmatprep.subr.mxu0 0.0
      %331 = vmatpush1.msra.mxu0 0.0
      %332 = vmatprep.subr.mxu0 0.0
      %333 = vmatpush1.msra.mxu0 0.0
      %334 = vmatprep.subr.mxu0 0.0
      %335 = vmatpush1.msra.mxu0 0.0
      %336 = vmatprep.subr.mxu0 0.0
      %337 = vmatpush1.msra.mxu0 0.0
      %338 = vmatprep.subr.mxu0 0.0
      %339 = vmatpush1.msra.mxu0 0.0
      %340 = vmatprep.mubr.f32.mxu0 0.0
      %v341 = vand.u32 %v70, 4294901760
      %342 = vmatmul.mubr.f32.gmra.mrb[0].mxu0 %v341
      %v343 = vpop.f32.mrb[0].mxu0
      %v344 = vadd.f32 %v183, %v343
      %v345 = vpop.f32.mrb[0].mxu0
      %346 = vmatprep.mubr.f32.mxu0 0.0
      %v347 = vand.u32 %v71, 4294901760
      %348 = vmatmul.mubr.f32.gmra.mrb[0].mxu0 %v347
      %v349 = vpop.f32.mrb[0].mxu0
      %v350 = vadd.f32 %v193, %v349
      %v351 = vpop.f32.mrb[0].mxu0
      %352 = vdwg.mxu0
      %353 = vmatprep.subr.mxu0 0.0
      %v354 = vand.u32 %v72, 4294901760
      %v355 = vsub.f32 %v72, %v354
      %356 = vmatpush1.msra.mxu0 %v355
      %357 = vmatprep.subr.mxu0 0.0
      %v358 = vand.u32 %v73, 4294901760
      %v359 = vsub.f32 %v73, %v358
      %360 = vmatpush1.msra.mxu0 %v359
      %361 = vmatprep.subr.mxu0 0.0
      %v362 = vand.u32 %v74, 4294901760
      %v363 = vsub.f32 %v74, %v362
      %364 = vmatpush1.msra.mxu0 %v363
      %365 = vmatprep.subr.mxu0 0.0
      %v366 = vand.u32 %v75, 4294901760
      %v367 = vsub.f32 %v75, %v366
      %368 = vmatpush1.msra.mxu0 %v367
      %369 = vmatprep.subr.mxu0 0.0
      %v370 = vand.u32 %v76, 4294901760
      %v371 = vsub.f32 %v76, %v370
      %372 = vmatpush1.msra.mxu0 %v371
      %373 = vmatprep.subr.mxu0 0.0
      %v374 = vand.u32 %v77, 4294901760
      %v375 = vsub.f32 %v77, %v374
      %376 = vmatpush1.msra.mxu0 %v375
      %377 = vmatprep.subr.mxu0 0.0
      %v378 = vand.u32 %v78, 4294901760
      %v379 = vsub.f32 %v78, %v378
      %380 = vmatpush1.msra.mxu0 %v379
      %381 = vmatprep.subr.mxu0 0.0
      %v382 = vand.u32 %v79, 4294901760
      %v383 = vsub.f32 %v79, %v382
      %384 = vmatpush1.msra.mxu0 %v383
      %385 = vmatprep.subr.mxu0 0.0
      %v386 = vand.u32 %v80, 4294901760
      %v387 = vsub.f32 %v80, %v386
      %388 = vmatpush1.msra.mxu0 %v387
      %389 = vmatprep.subr.mxu0 0.0
      %v390 = vand.u32 %v81, 4294901760
      %v391 = vsub.f32 %v81, %v390
      %392 = vmatpush1.msra.mxu0 %v391
      %393 = vmatprep.subr.mxu0 0.0
      %v394 = vand.u32 %v82, 4294901760
      %v395 = vsub.f32 %v82, %v394
      %396 = vmatpush1.msra.mxu0 %v395
      %397 = vmatprep.subr.mxu0 0.0
      %v398 = vand.u32 %v83, 4294901760
      %v399 = vsub.f32 %v83, %v398
      %400 = vmatpush1.msra.mxu0 %v399
      %401 = vmatprep.subr.mxu0 0.0
      %v402 = vand.u32 %v84, 4294901760
      %v403 = vsub.f32 %v84, %v402
      %404 = vmatpush1.msra.mxu0 %v403
      %405 = vmatprep.subr.mxu0 0.0
      %v406 = vand.u32 %v85, 4294901760
      %v407 = vsub.f32 %v85, %v406
      %408 = vmatpush1.msra.mxu0 %v407
      %409 = vmatprep.subr.mxu0 0.0
      %v410 = vand.u32 %v86, 4294901760
      %v411 = vsub.f32 %v86, %v410
      %412 = vmatpush1.msra.mxu0 %v411
      %413 = vmatprep.subr.mxu0 0.0
      %v414 = vand.u32 %v87, 4294901760
      %v415 = vsub.f32 %v87, %v414
      %416 = vmatpush1.msra.mxu0 %v415
      %417 = vmatprep.subr.mxu0 0.0
      %418 = vmatpush1.msra.mxu0 0.0
      %419 = vmatprep.subr.mxu0 0.0
      %420 = vmatpush1.msra.mxu0 0.0
      %421 = vmatprep.subr.mxu0 0.0
      %422 = vmatpush1.msra.mxu0 0.0
      %423 = vmatprep.subr.mxu0 0.0
      %424 = vmatpush1.msra.mxu0 0.0
      %425 = vmatprep.subr.mxu0 0.0
      %426 = vmatpush1.msra.mxu0 0.0
      %427 = vmatprep.subr.mxu0 0.0
      %428 = vmatpush1.msra.mxu0 0.0
      %429 = vmatprep.subr.mxu0 0.0
      %430 = vmatpush1.msra.mxu0 0.0
      %431 = vmatprep.subr.mxu0 0.0
      %432 = vmatpush1.msra.mxu0 0.0
      %433 = vmatprep.subr.mxu0 0.0
      %434 = vmatpush1.msra.mxu0 0.0
      %435 = vmatprep.subr.mxu0 0.0
      %436 = vmatpush1.msra.mxu0 0.0
      %437 = vmatprep.subr.mxu0 0.0
      %438 = vmatpush1.msra.mxu0 0.0
      %439 = vmatprep.subr.mxu0 0.0
      %440 = vmatpush1.msra.mxu0 0.0
      %441 = vmatprep.subr.mxu0 0.0
      %442 = vmatpush1.msra.mxu0 0.0
      %443 = vmatprep.subr.mxu0 0.0
      %444 = vmatpush1.msra.mxu0 0.0
      %445 = vmatprep.subr.mxu0 0.0
      %446 = vmatpush1.msra.mxu0 0.0
      %447 = vmatprep.subr.mxu0 0.0
      %448 = vmatpush1.msra.mxu0 0.0
      %449 = vmatprep.mubr.f32.mxu0 0.0
      %v450 = vand.u32 %v70, 4294901760
      %v451 = vsub.f32 %v70, %v450
      %452 = vmatmul.mubr.f32.gmra.mrb[0].mxu0 %v451
      %v453 = vpop.f32.mrb[0].mxu0
      %v454 = vadd.f32 %v344, %v453
      %v455 = vpop.f32.mrb[0].mxu0
      %456 = vmatprep.mubr.f32.mxu0 0.0
      %v457 = vand.u32 %v71, 4294901760
      %v458 = vsub.f32 %v71, %v457
      %459 = vmatmul.mubr.f32.gmra.mrb[0].mxu0 %v458
      %v460 = vpop.f32.mrb[0].mxu0
      %v461 = vadd.f32 %v350, %v460
      %v462 = vpop.f32.mrb[0].mxu0
      %463 = vdwg.mxu0
      %464 = vmatprep.subr.mxu0 0.0
      %v465 = vand.u32 %v72, 4294901760
      %466 = vmatpush1.msra.mxu0 %v465
      %467 = vmatprep.subr.mxu0 0.0
      %v468 = vand.u32 %v73, 4294901760
      %469 = vmatpush1.msra.mxu0 %v468
      %470 = vmatprep.subr.mxu0 0.0
      %v471 = vand.u32 %v74, 4294901760
      %472 = vmatpush1.msra.mxu0 %v471
      %473 = vmatprep.subr.mxu0 0.0
      %v474 = vand.u32 %v75, 4294901760
      %475 = vmatpush1.msra.mxu0 %v474
      %476 = vmatprep.subr.mxu0 0.0
      %v477 = vand.u32 %v76, 4294901760
      %478 = vmatpush1.msra.mxu0 %v477
      %479 = vmatprep.subr.mxu0 0.0
      %v480 = vand.u32 %v77, 4294901760
      %481 = vmatpush1.msra.mxu0 %v480
      %482 = vmatprep.subr.mxu0 0.0
      %v483 = vand.u32 %v78, 4294901760
      %484 = vmatpush1.msra.mxu0 %v483
      %485 = vmatprep.subr.mxu0 0.0
      %v486 = vand.u32 %v79, 4294901760
      %487 = vmatpush1.msra.mxu0 %v486
      %488 = vmatprep.subr.mxu0 0.0
      %v489 = vand.u32 %v80, 4294901760
      %490 = vmatpush1.msra.mxu0 %v489
      %491 = vmatprep.subr.mxu0 0.0
      %v492 = vand.u32 %v81, 4294901760
      %493 = vmatpush1.msra.mxu0 %v492
      %494 = vmatprep.subr.mxu0 0.0
      %v495 = vand.u32 %v82, 4294901760
      %496 = vmatpush1.msra.mxu0 %v495
      %497 = vmatprep.subr.mxu0 0.0
      %v498 = vand.u32 %v83, 4294901760
      %499 = vmatpush1.msra.mxu0 %v498
      %500 = vmatprep.subr.mxu0 0.0
      %v501 = vand.u32 %v84, 4294901760
      %502 = vmatpush1.msra.mxu0 %v501
      %503 = vmatprep.subr.mxu0 0.0
      %v504 = vand.u32 %v85, 4294901760
      %505 = vmatpush1.msra.mxu0 %v504
      %506 = vmatprep.subr.mxu0 0.0
      %v507 = vand.u32 %v86, 4294901760
      %508 = vmatpush1.msra.mxu0 %v507
      %509 = vmatprep.subr.mxu0 0.0
      %v510 = vand.u32 %v87, 4294901760
      %511 = vmatpush1.msra.mxu0 %v510
      %512 = vmatprep.subr.mxu0 0.0
      %513 = vmatpush1.msra.mxu0 0.0
      %514 = vmatprep.subr.mxu0 0.0
      %515 = vmatpush1.msra.mxu0 0.0
      %516 = vmatprep.subr.mxu0 0.0
      %517 = vmatpush1.msra.mxu0 0.0
      %518 = vmatprep.subr.mxu0 0.0
      %519 = vmatpush1.msra.mxu0 0.0
      %520 = vmatprep.subr.mxu0 0.0
      %521 = vmatpush1.msra.mxu0 0.0
      %522 = vmatprep.subr.mxu0 0.0
      %523 = vmatpush1.msra.mxu0 0.0
      %524 = vmatprep.subr.mxu0 0.0
      %525 = vmatpush1.msra.mxu0 0.0
      %526 = vmatprep.subr.mxu0 0.0
      %527 = vmatpush1.msra.mxu0 0.0
      %528 = vmatprep.subr.mxu0 0.0
      %529 = vmatpush1.msra.mxu0 0.0
      %530 = vmatprep.subr.mxu0 0.0
      %531 = vmatpush1.msra.mxu0 0.0
      %532 = vmatprep.subr.mxu0 0.0
      %533 = vmatpush1.msra.mxu0 0.0
      %534 = vmatprep.subr.mxu0 0.0
      %535 = vmatpush1.msra.mxu0 0.0
      %536 = vmatprep.subr.mxu0 0.0
      %537 = vmatpush1.msra.mxu0 0.0
      %538 = vmatprep.subr.mxu0 0.0
      %539 = vmatpush1.msra.mxu0 0.0
      %540 = vmatprep.subr.mxu0 0.0
      %541 = vmatpush1.msra.mxu0 0.0
      %542 = vmatprep.subr.mxu0 0.0
      %543 = vmatpush1.msra.mxu0 0.0
      %544 = vmatprep.mubr.f32.mxu0 0.0
      %v545 = vand.u32 %v70, 4294901760
      %v546 = vsub.f32 %v70, %v545
      %v547 = vand.u32 %v546, 4294901760
      %548 = vmatmul.mubr.f32.gmra.mrb[0].mxu0 %v547
      %v549 = vpop.f32.mrb[0].mxu0
      %v550 = vadd.f32 %v454, %v549
      %v551 = vpop.f32.mrb[0].mxu0
      %552 = vmatprep.mubr.f32.mxu0 0.0
      %v553 = vand.u32 %v71, 4294901760
      %v554 = vsub.f32 %v71, %v553
      %v555 = vand.u32 %v554, 4294901760
      %556 = vmatmul.mubr.f32.gmra.mrb[0].mxu0 %v555
      %v557 = vpop.f32.mrb[0].mxu0
      %v558 = vadd.f32 %v461, %v557
      %v559 = vpop.f32.mrb[0].mxu0
      %560 = vdwg.mxu0
      %561 = vmatprep.subr.mxu0 0.0
      %v562 = vand.u32 %v72, 4294901760
      %v563 = vsub.f32 %v72, %v562
      %v564 = vand.u32 %v563, 4294901760
      %565 = vmatpush1.msra.mxu0 %v564
      %566 = vmatprep.subr.mxu0 0.0
      %v567 = vand.u32 %v73, 4294901760
      %v568 = vsub.f32 %v73, %v567
      %v569 = vand.u32 %v568, 4294901760
      %570 = vmatpush1.msra.mxu0 %v569
      %571 = vmatprep.subr.mxu0 0.0
      %v572 = vand.u32 %v74, 4294901760
      %v573 = vsub.f32 %v74, %v572
      %v574 = vand.u32 %v573, 4294901760
      %575 = vmatpush1.msra.mxu0 %v574
      %576 = vmatprep.subr.mxu0 0.0
      %v577 = vand.u32 %v75, 4294901760
      %v578 = vsub.f32 %v75, %v577
      %v579 = vand.u32 %v578, 4294901760
      %580 = vmatpush1.msra.mxu0 %v579
      %581 = vmatprep.subr.mxu0 0.0
      %v582 = vand.u32 %v76, 4294901760
      %v583 = vsub.f32 %v76, %v582
      %v584 = vand.u32 %v583, 4294901760
      %585 = vmatpush1.msra.mxu0 %v584
      %586 = vmatprep.subr.mxu0 0.0
      %v587 = vand.u32 %v77, 4294901760
      %v588 = vsub.f32 %v77, %v587
      %v589 = vand.u32 %v588, 4294901760
      %590 = vmatpush1.msra.mxu0 %v589
      %591 = vmatprep.subr.mxu0 0.0
      %v592 = vand.u32 %v78, 4294901760
      %v593 = vsub.f32 %v78, %v592
      %v594 = vand.u32 %v593, 4294901760
      %595 = vmatpush1.msra.mxu0 %v594
      %596 = vmatprep.subr.mxu0 0.0
      %v597 = vand.u32 %v79, 4294901760
      %v598 = vsub.f32 %v79, %v597
      %v599 = vand.u32 %v598, 4294901760
      %600 = vmatpush1.msra.mxu0 %v599
      %601 = vmatprep.subr.mxu0 0.0
      %v602 = vand.u32 %v80, 4294901760
      %v603 = vsub.f32 %v80, %v602
      %v604 = vand.u32 %v603, 4294901760
      %605 = vmatpush1.msra.mxu0 %v604
      %606 = vmatprep.subr.mxu0 0.0
      %v607 = vand.u32 %v81, 4294901760
      %v608 = vsub.f32 %v81, %v607
      %v609 = vand.u32 %v608, 4294901760
      %610 = vmatpush1.msra.mxu0 %v609
      %611 = vmatprep.subr.mxu0 0.0
      %v612 = vand.u32 %v82, 4294901760
      %v613 = vsub.f32 %v82, %v612
      %v614 = vand.u32 %v613, 4294901760
      %615 = vmatpush1.msra.mxu0 %v614
      %616 = vmatprep.subr.mxu0 0.0
      %v617 = vand.u32 %v83, 4294901760
      %v618 = vsub.f32 %v83, %v617
      %v619 = vand.u32 %v618, 4294901760
      %620 = vmatpush1.msra.mxu0 %v619
      %621 = vmatprep.subr.mxu0 0.0
      %v622 = vand.u32 %v84, 4294901760
      %v623 = vsub.f32 %v84, %v622
      %v624 = vand.u32 %v623, 4294901760
      %625 = vmatpush1.msra.mxu0 %v624
      %626 = vmatprep.subr.mxu0 0.0
      %v627 = vand.u32 %v85, 4294901760
      %v628 = vsub.f32 %v85, %v627
      %v629 = vand.u32 %v628, 4294901760
      %630 = vmatpush1.msra.mxu0 %v629
      %631 = vmatprep.subr.mxu0 0.0
      %v632 = vand.u32 %v86, 4294901760
      %v633 = vsub.f32 %v86, %v632
      %v634 = vand.u32 %v633, 4294901760
      %635 = vmatpush1.msra.mxu0 %v634
      %636 = vmatprep.subr.mxu0 0.0
      %v637 = vand.u32 %v87, 4294901760
      %v638 = vsub.f32 %v87, %v637
      %v639 = vand.u32 %v638, 4294901760
      %640 = vmatpush1.msra.mxu0 %v639
      %641 = vmatprep.subr.mxu0 0.0
      %642 = vmatpush1.msra.mxu0 0.0
      %643 = vmatprep.subr.mxu0 0.0
      %644 = vmatpush1.msra.mxu0 0.0
      %645 = vmatprep.subr.mxu0 0.0
      %646 = vmatpush1.msra.mxu0 0.0
      %647 = vmatprep.subr.mxu0 0.0
      %648 = vmatpush1.msra.mxu0 0.0
      %649 = vmatprep.subr.mxu0 0.0
      %650 = vmatpush1.msra.mxu0 0.0
      %651 = vmatprep.subr.mxu0 0.0
      %652 = vmatpush1.msra.mxu0 0.0
      %653 = vmatprep.subr.mxu0 0.0
      %654 = vmatpush1.msra.mxu0 0.0
      %655 = vmatprep.subr.mxu0 0.0
      %656 = vmatpush1.msra.mxu0 0.0
      %657 = vmatprep.subr.mxu0 0.0
      %658 = vmatpush1.msra.mxu0 0.0
      %659 = vmatprep.subr.mxu0 0.0
      %660 = vmatpush1.msra.mxu0 0.0
      %661 = vmatprep.subr.mxu0 0.0
      %662 = vmatpush1.msra.mxu0 0.0
      %663 = vmatprep.subr.mxu0 0.0
      %664 = vmatpush1.msra.mxu0 0.0
      %665 = vmatprep.subr.mxu0 0.0
      %666 = vmatpush1.msra.mxu0 0.0
      %667 = vmatprep.subr.mxu0 0.0
      %668 = vmatpush1.msra.mxu0 0.0
      %669 = vmatprep.subr.mxu0 0.0
      %670 = vmatpush1.msra.mxu0 0.0
      %671 = vmatprep.subr.mxu0 0.0
      %672 = vmatpush1.msra.mxu0 0.0
      %673 = vmatprep.mubr.f32.mxu0 0.0
      %v674 = vand.u32 %v70, 4294901760
      %675 = vmatmul.mubr.f32.gmra.mrb[0].mxu0 %v674
      %v676 = vpop.f32.mrb[0].mxu0
      %v677 = vadd.f32 %v550, %v676
      %v678 = vpop.f32.mrb[0].mxu0
      %679 = vmatprep.mubr.f32.mxu0 0.0
      %v680 = vand.u32 %v71, 4294901760
      %681 = vmatmul.mubr.f32.gmra.mrb[0].mxu0 %v680
      %v682 = vpop.f32.mrb[0].mxu0
      %v683 = vadd.f32 %v558, %v682
      %v684 = vpop.f32.mrb[0].mxu0
      %685 = vdwg.mxu0
      %686 = vmatprep.subr.mxu0 0.0
      %v687 = vand.u32 %v72, 4294901760
      %688 = vmatpush1.msra.mxu0 %v687
      %689 = vmatprep.subr.mxu0 0.0
      %v690 = vand.u32 %v73, 4294901760
      %691 = vmatpush1.msra.mxu0 %v690
      %692 = vmatprep.subr.mxu0 0.0
      %v693 = vand.u32 %v74, 4294901760
      %694 = vmatpush1.msra.mxu0 %v693
      %695 = vmatprep.subr.mxu0 0.0
      %v696 = vand.u32 %v75, 4294901760
      %697 = vmatpush1.msra.mxu0 %v696
      %698 = vmatprep.subr.mxu0 0.0
      %v699 = vand.u32 %v76, 4294901760
      %700 = vmatpush1.msra.mxu0 %v699
      %701 = vmatprep.subr.mxu0 0.0
      %v702 = vand.u32 %v77, 4294901760
      %703 = vmatpush1.msra.mxu0 %v702
      %704 = vmatprep.subr.mxu0 0.0
      %v705 = vand.u32 %v78, 4294901760
      %706 = vmatpush1.msra.mxu0 %v705
      %707 = vmatprep.subr.mxu0 0.0
      %v708 = vand.u32 %v79, 4294901760
      %709 = vmatpush1.msra.mxu0 %v708
      %710 = vmatprep.subr.mxu0 0.0
      %v711 = vand.u32 %v80, 4294901760
      %712 = vmatpush1.msra.mxu0 %v711
      %713 = vmatprep.subr.mxu0 0.0
      %v714 = vand.u32 %v81, 4294901760
      %715 = vmatpush1.msra.mxu0 %v714
      %716 = vmatprep.subr.mxu0 0.0
      %v717 = vand.u32 %v82, 4294901760
      %718 = vmatpush1.msra.mxu0 %v717
      %719 = vmatprep.subr.mxu0 0.0
      %v720 = vand.u32 %v83, 4294901760
      %721 = vmatpush1.msra.mxu0 %v720
      %722 = vmatprep.subr.mxu0 0.0
      %v723 = vand.u32 %v84, 4294901760
      %724 = vmatpush1.msra.mxu0 %v723
      %725 = vmatprep.subr.mxu0 0.0
      %v726 = vand.u32 %v85, 4294901760
      %727 = vmatpush1.msra.mxu0 %v726
      %728 = vmatprep.subr.mxu0 0.0
      %v729 = vand.u32 %v86, 4294901760
      %730 = vmatpush1.msra.mxu0 %v729
      %731 = vmatprep.subr.mxu0 0.0
      %v732 = vand.u32 %v87, 4294901760
      %733 = vmatpush1.msra.mxu0 %v732
      %734 = vmatprep.subr.mxu0 0.0
      %735 = vmatpush1.msra.mxu0 0.0
      %736 = vmatprep.subr.mxu0 0.0
      %737 = vmatpush1.msra.mxu0 0.0
      %738 = vmatprep.subr.mxu0 0.0
      %739 = vmatpush1.msra.mxu0 0.0
      %740 = vmatprep.subr.mxu0 0.0
      %741 = vmatpush1.msra.mxu0 0.0
      %742 = vmatprep.subr.mxu0 0.0
      %743 = vmatpush1.msra.mxu0 0.0
      %744 = vmatprep.subr.mxu0 0.0
      %745 = vmatpush1.msra.mxu0 0.0
      %746 = vmatprep.subr.mxu0 0.0
      %747 = vmatpush1.msra.mxu0 0.0
      %748 = vmatprep.subr.mxu0 0.0
      %749 = vmatpush1.msra.mxu0 0.0
      %750 = vmatprep.subr.mxu0 0.0
      %751 = vmatpush1.msra.mxu0 0.0
      %752 = vmatprep.subr.mxu0 0.0
      %753 = vmatpush1.msra.mxu0 0.0
      %754 = vmatprep.subr.mxu0 0.0
      %755 = vmatpush1.msra.mxu0 0.0
      %756 = vmatprep.subr.mxu0 0.0
      %757 = vmatpush1.msra.mxu0 0.0
      %758 = vmatprep.subr.mxu0 0.0
      %759 = vmatpush1.msra.mxu0 0.0
      %760 = vmatprep.subr.mxu0 0.0
      %761 = vmatpush1.msra.mxu0 0.0
      %762 = vmatprep.subr.mxu0 0.0
      %763 = vmatpush1.msra.mxu0 0.0
      %764 = vmatprep.subr.mxu0 0.0
      %765 = vmatpush1.msra.mxu0 0.0
      %766 = vmatprep.mubr.f32.mxu0 0.0
      %v767 = vand.u32 %v70, 4294901760
      %768 = vmatmul.mubr.f32.gmra.mrb[0].mxu0 %v767
      %v769 = vpop.f32.mrb[0].mxu0
      %v770 = vadd.f32 %v677, %v769
      %v771 = vpop.f32.mrb[0].mxu0
      %772 = vmatprep.mubr.f32.mxu0 0.0
      %v773 = vand.u32 %v71, 4294901760
      %774 = vmatmul.mubr.f32.gmra.mrb[0].mxu0 %v773
      %v775 = vpop.f32.mrb[0].mxu0
      %v776 = vadd.f32 %v683, %v775
      %v777 = vpop.f32.mrb[0].mxu0
      %778 = vdwg.mxu0
      %779 = vst [vmem:[#allocation2] sm:$0xff] %v770
      %780 = vst [vmem:[#allocation2 + $0x8] sm:$0xff] %v776
      %v781 = vld [vmem:[%s5] sm:$0xff]
      %v782 = vld [vmem:[%s9] sm:$0xff]
      %v783 = vld [vmem:[%s9 + $0x8] sm:$0xff]
      %v784 = vld [vmem:[%s9 + $0x10] sm:$0xff]
      %v785 = vld [vmem:[%s9 + $0x18] sm:$0xff]
      %v786 = vld [vmem:[%s9 + $0x20] sm:$0xff]
      %v787 = vld [vmem:[%s9 + $0x28] sm:$0xff]
      %v788 = vld [vmem:[%s9 + $0x30] sm:$0xff]
      %v789 = vld [vmem:[%s9 + $0x38] sm:$0xff]
      %v790 = vld [vmem:[%s9 + $0x40] sm:$0xff]
      %v791 = vld [vmem:[%s9 + $0x48] sm:$0xff]
      %v792 = vld [vmem:[%s9 + $0x50] sm:$0xff]
      %v793 = vld [vmem:[%s9 + $0x58] sm:$0xff]
      %v794 = vld [vmem:[%s9 + $0x60] sm:$0xff]
      %v795 = vld [vmem:[%s9 + $0x68] sm:$0xff]
      %v796 = vld [vmem:[%s9 + $0x70] sm:$0xff]
      %v797 = vld [vmem:[%s9 + $0x78] sm:$0xff]
      %v798 = vld [vmem:[%s10] sm:$0x1]
      %v800 = vlaneseq
      %v801 = vshrl.u32 %v800, 7
      %v802 = vsub.s32 0, %v801
      %v803 = vrot.slane %v798, %v802
      %805 = vmatprep.subr.mxu0 0.0
      %v806 = vand.u32 %v782, 4294901760
      %807 = vmatpush1.msra.mxu0 %v806
      %808 = vmatprep.subr.mxu0 0.0
      %v809 = vand.u32 %v783, 4294901760
      %810 = vmatpush1.msra.mxu0 %v809
      %811 = vmatprep.subr.mxu0 0.0
      %v812 = vand.u32 %v784, 4294901760
      %813 = vmatpush1.msra.mxu0 %v812
      %814 = vmatprep.subr.mxu0 0.0
      %v815 = vand.u32 %v785, 4294901760
      %816 = vmatpush1.msra.mxu0 %v815
      %817 = vmatprep.subr.mxu0 0.0
      %v818 = vand.u32 %v786, 4294901760
      %819 = vmatpush1.msra.mxu0 %v818
      %820 = vmatprep.subr.mxu0 0.0
      %v821 = vand.u32 %v787, 4294901760
      %822 = vmatpush1.msra.mxu0 %v821
      %823 = vmatprep.subr.mxu0 0.0
      %v824 = vand.u32 %v788, 4294901760
      %825 = vmatpush1.msra.mxu0 %v824
      %826 = vmatprep.subr.mxu0 0.0
      %v827 = vand.u32 %v789, 4294901760
      %828 = vmatpush1.msra.mxu0 %v827
      %829 = vmatprep.subr.mxu0 0.0
      %v830 = vand.u32 %v790, 4294901760
      %831 = vmatpush1.msra.mxu0 %v830
      %832 = vmatprep.subr.mxu0 0.0
      %v833 = vand.u32 %v791, 4294901760
      %834 = vmatpush1.msra.mxu0 %v833
      %835 = vmatprep.subr.mxu0 0.0
      %v836 = vand.u32 %v792, 4294901760
      %837 = vmatpush1.msra.mxu0 %v836
      %838 = vmatprep.subr.mxu0 0.0
      %v839 = vand.u32 %v793, 4294901760
      %840 = vmatpush1.msra.mxu0 %v839
      %841 = vmatprep.subr.mxu0 0.0
      %v842 = vand.u32 %v794, 4294901760
      %843 = vmatpush1.msra.mxu0 %v842
      %844 = vmatprep.subr.mxu0 0.0
      %v845 = vand.u32 %v795, 4294901760
      %846 = vmatpush1.msra.mxu0 %v845
      %847 = vmatprep.subr.mxu0 0.0
      %v848 = vand.u32 %v796, 4294901760
      %849 = vmatpush1.msra.mxu0 %v848
      %850 = vmatprep.subr.mxu0 0.0
      %v851 = vand.u32 %v797, 4294901760
      %852 = vmatpush1.msra.mxu0 %v851
      %853 = vmatprep.subr.mxu0 0.0
      %854 = vmatpush1.msra.mxu0 0.0
      %855 = vmatprep.subr.mxu0 0.0
      %856 = vmatpush1.msra.mxu0 0.0
      %857 = vmatprep.subr.mxu0 0.0
      %858 = vmatpush1.msra.mxu0 0.0
      %859 = vmatprep.subr.mxu0 0.0
      %860 = vmatpush1.msra.mxu0 0.0
      %861 = vmatprep.subr.mxu0 0.0
      %862 = vmatpush1.msra.mxu0 0.0
      %863 = vmatprep.subr.mxu0 0.0
      %864 = vmatpush1.msra.mxu0 0.0
      %865 = vmatprep.subr.mxu0 0.0
      %866 = vmatpush1.msra.mxu0 0.0
      %867 = vmatprep.subr.mxu0 0.0
      %868 = vmatpush1.msra.mxu0 0.0
      %869 = vmatprep.subr.mxu0 0.0
      %870 = vmatpush1.msra.mxu0 0.0
      %871 = vmatprep.subr.mxu0 0.0
      %872 = vmatpush1.msra.mxu0 0.0
      %873 = vmatprep.subr.mxu0 0.0
      %874 = vmatpush1.msra.mxu0 0.0
      %875 = vmatprep.subr.mxu0 0.0
      %876 = vmatpush1.msra.mxu0 0.0
      %877 = vmatprep.subr.mxu0 0.0
      %878 = vmatpush1.msra.mxu0 0.0
      %879 = vmatprep.subr.mxu0 0.0
      %880 = vmatpush1.msra.mxu0 0.0
      %881 = vmatprep.subr.mxu0 0.0
      %882 = vmatpush1.msra.mxu0 0.0
      %883 = vmatprep.subr.mxu0 0.0
      %884 = vmatpush1.msra.mxu0 0.0
      %885 = vmatprep.mubr.f32.mxu0 0.0
      %v886 = vand.u32 %v781, 4294901760
      %v887 = vsub.f32 %v781, %v886
      %v888 = vand.u32 %v887, 4294901760
      %v889 = vsub.f32 %v887, %v888
      %v890 = vand.u32 %v889, 4294901760
      %891 = vmatmul.mubr.f32.gmra.mrb[0].mxu0 %v890
      %v892 = vpop.f32.mrb[0].mxu0
      %v893 = vadd.f32 %v803, %v892
      %v894 = vpop.f32.mrb[0].mxu0
      %895 = vdwg.mxu0
      %896 = vmatprep.subr.mxu0 0.0
      %v897 = vand.u32 %v782, 4294901760
      %v898 = vsub.f32 %v782, %v897
      %v899 = vand.u32 %v898, 4294901760
      %v900 = vsub.f32 %v898, %v899
      %v901 = vand.u32 %v900, 4294901760
      %902 = vmatpush1.msra.mxu0 %v901
      %903 = vmatprep.subr.mxu0 0.0
      %v904 = vand.u32 %v783, 4294901760
      %v905 = vsub.f32 %v783, %v904
      %v906 = vand.u32 %v905, 4294901760
      %v907 = vsub.f32 %v905, %v906
      %v908 = vand.u32 %v907, 4294901760
      %909 = vmatpush1.msra.mxu0 %v908
      %910 = vmatprep.subr.mxu0 0.0
      %v911 = vand.u32 %v784, 4294901760
      %v912 = vsub.f32 %v784, %v911
      %v913 = vand.u32 %v912, 4294901760
      %v914 = vsub.f32 %v912, %v913
      %v915 = vand.u32 %v914, 4294901760
      %916 = vmatpush1.msra.mxu0 %v915
      %917 = vmatprep.subr.mxu0 0.0
      %v918 = vand.u32 %v785, 4294901760
      %v919 = vsub.f32 %v785, %v918
      %v920 = vand.u32 %v919, 4294901760
      %v921 = vsub.f32 %v919, %v920
      %v922 = vand.u32 %v921, 4294901760
      %923 = vmatpush1.msra.mxu0 %v922
      %924 = vmatprep.subr.mxu0 0.0
      %v925 = vand.u32 %v786, 4294901760
      %v926 = vsub.f32 %v786, %v925
      %v927 = vand.u32 %v926, 4294901760
      %v928 = vsub.f32 %v926, %v927
      %v929 = vand.u32 %v928, 4294901760
      %930 = vmatpush1.msra.mxu0 %v929
      %931 = vmatprep.subr.mxu0 0.0
      %v932 = vand.u32 %v787, 4294901760
      %v933 = vsub.f32 %v787, %v932
      %v934 = vand.u32 %v933, 4294901760
      %v935 = vsub.f32 %v933, %v934
      %v936 = vand.u32 %v935, 4294901760
      %937 = vmatpush1.msra.mxu0 %v936
      %938 = vmatprep.subr.mxu0 0.0
      %v939 = vand.u32 %v788, 4294901760
      %v940 = vsub.f32 %v788, %v939
      %v941 = vand.u32 %v940, 4294901760
      %v942 = vsub.f32 %v940, %v941
      %v943 = vand.u32 %v942, 4294901760
      %944 = vmatpush1.msra.mxu0 %v943
      %945 = vmatprep.subr.mxu0 0.0
      %v946 = vand.u32 %v789, 4294901760
      %v947 = vsub.f32 %v789, %v946
      %v948 = vand.u32 %v947, 4294901760
      %v949 = vsub.f32 %v947, %v948
      %v950 = vand.u32 %v949, 4294901760
      %951 = vmatpush1.msra.mxu0 %v950
      %952 = vmatprep.subr.mxu0 0.0
      %v953 = vand.u32 %v790, 4294901760
      %v954 = vsub.f32 %v790, %v953
      %v955 = vand.u32 %v954, 4294901760
      %v956 = vsub.f32 %v954, %v955
      %v957 = vand.u32 %v956, 4294901760
      %958 = vmatpush1.msra.mxu0 %v957
      %959 = vmatprep.subr.mxu0 0.0
      %v960 = vand.u32 %v791, 4294901760
      %v961 = vsub.f32 %v791, %v960
      %v962 = vand.u32 %v961, 4294901760
      %v963 = vsub.f32 %v961, %v962
      %v964 = vand.u32 %v963, 4294901760
      %965 = vmatpush1.msra.mxu0 %v964
      %966 = vmatprep.subr.mxu0 0.0
      %v967 = vand.u32 %v792, 4294901760
      %v968 = vsub.f32 %v792, %v967
      %v969 = vand.u32 %v968, 4294901760
      %v970 = vsub.f32 %v968, %v969
      %v971 = vand.u32 %v970, 4294901760
      %972 = vmatpush1.msra.mxu0 %v971
      %973 = vmatprep.subr.mxu0 0.0
      %v974 = vand.u32 %v793, 4294901760
      %v975 = vsub.f32 %v793, %v974
      %v976 = vand.u32 %v975, 4294901760
      %v977 = vsub.f32 %v975, %v976
      %v978 = vand.u32 %v977, 4294901760
      %979 = vmatpush1.msra.mxu0 %v978
      %980 = vmatprep.subr.mxu0 0.0
      %v981 = vand.u32 %v794, 4294901760
      %v982 = vsub.f32 %v794, %v981
      %v983 = vand.u32 %v982, 4294901760
      %v984 = vsub.f32 %v982, %v983
      %v985 = vand.u32 %v984, 4294901760
      %986 = vmatpush1.msra.mxu0 %v985
      %987 = vmatprep.subr.mxu0 0.0
      %v988 = vand.u32 %v795, 4294901760
      %v989 = vsub.f32 %v795, %v988
      %v990 = vand.u32 %v989, 4294901760
      %v991 = vsub.f32 %v989, %v990
      %v992 = vand.u32 %v991, 4294901760
      %993 = vmatpush1.msra.mxu0 %v992
      %994 = vmatprep.subr.mxu0 0.0
      %v995 = vand.u32 %v796, 4294901760
      %v996 = vsub.f32 %v796, %v995
      %v997 = vand.u32 %v996, 4294901760
      %v998 = vsub.f32 %v996, %v997
      %v999 = vand.u32 %v998, 4294901760
      %1000 = vmatpush1.msra.mxu0 %v999
      %1001 = vmatprep.subr.mxu0 0.0
      %v1002 = vand.u32 %v797, 4294901760
      %v1003 = vsub.f32 %v797, %v1002
      %v1004 = vand.u32 %v1003, 4294901760
      %v1005 = vsub.f32 %v1003, %v1004
      %v1006 = vand.u32 %v1005, 4294901760
      %1007 = vmatpush1.msra.mxu0 %v1006
      %1008 = vmatprep.subr.mxu0 0.0
      %1009 = vmatpush1.msra.mxu0 0.0
      %1010 = vmatprep.subr.mxu0 0.0
      %1011 = vmatpush1.msra.mxu0 0.0
      %1012 = vmatprep.subr.mxu0 0.0
      %1013 = vmatpush1.msra.mxu0 0.0
      %1014 = vmatprep.subr.mxu0 0.0
      %1015 = vmatpush1.msra.mxu0 0.0
      %1016 = vmatprep.subr.mxu0 0.0
      %1017 = vmatpush1.msra.mxu0 0.0
      %1018 = vmatprep.subr.mxu0 0.0
      %1019 = vmatpush1.msra.mxu0 0.0
      %1020 = vmatprep.subr.mxu0 0.0
      %1021 = vmatpush1.msra.mxu0 0.0
      %1022 = vmatprep.subr.mxu0 0.0
      %1023 = vmatpush1.msra.mxu0 0.0
      %1024 = vmatprep.subr.mxu0 0.0
      %1025 = vmatpush1.msra.mxu0 0.0
      %1026 = vmatprep.subr.mxu0 0.0
      %1027 = vmatpush1.msra.mxu0 0.0
      %1028 = vmatprep.subr.mxu0 0.0
      %1029 = vmatpush1.msra.mxu0 0.0
      %1030 = vmatprep.subr.mxu0 0.0
      %1031 = vmatpush1.msra.mxu0 0.0
      %1032 = vmatprep.subr.mxu0 0.0
      %1033 = vmatpush1.msra.mxu0 0.0
      %1034 = vmatprep.subr.mxu0 0.0
      %1035 = vmatpush1.msra.mxu0 0.0
      %1036 = vmatprep.subr.mxu0 0.0
      %1037 = vmatpush1.msra.mxu0 0.0
      %1038 = vmatprep.subr.mxu0 0.0
      %1039 = vmatpush1.msra.mxu0 0.0
      %1040 = vmatprep.mubr.f32.mxu0 0.0
      %v1041 = vand.u32 %v781, 4294901760
      %1042 = vmatmul.mubr.f32.gmra.mrb[0].mxu0 %v1041
      %v1043 = vpop.f32.mrb[0].mxu0
      %v1044 = vadd.f32 %v893, %v1043
      %v1045 = vpop.f32.mrb[0].mxu0
      %1046 = vdwg.mxu0
      %1047 = vmatprep.subr.mxu0 0.0
      %v1048 = vand.u32 %v782, 4294901760
      %v1049 = vsub.f32 %v782, %v1048
      %1050 = vmatpush1.msra.mxu0 %v1049
      %1051 = vmatprep.subr.mxu0 0.0
      %v1052 = vand.u32 %v783, 4294901760
      %v1053 = vsub.f32 %v783, %v1052
      %1054 = vmatpush1.msra.mxu0 %v1053
      %1055 = vmatprep.subr.mxu0 0.0
      %v1056 = vand.u32 %v784, 4294901760
      %v1057 = vsub.f32 %v784, %v1056
      %1058 = vmatpush1.msra.mxu0 %v1057
      %1059 = vmatprep.subr.mxu0 0.0
      %v1060 = vand.u32 %v785, 4294901760
      %v1061 = vsub.f32 %v785, %v1060
      %1062 = vmatpush1.msra.mxu0 %v1061
      %1063 = vmatprep.subr.mxu0 0.0
      %v1064 = vand.u32 %v786, 4294901760
      %v1065 = vsub.f32 %v786, %v1064
      %1066 = vmatpush1.msra.mxu0 %v1065
      %1067 = vmatprep.subr.mxu0 0.0
      %v1068 = vand.u32 %v787, 4294901760
      %v1069 = vsub.f32 %v787, %v1068
      %1070 = vmatpush1.msra.mxu0 %v1069
      %1071 = vmatprep.subr.mxu0 0.0
      %v1072 = vand.u32 %v788, 4294901760
      %v1073 = vsub.f32 %v788, %v1072
      %1074 = vmatpush1.msra.mxu0 %v1073
      %1075 = vmatprep.subr.mxu0 0.0
      %v1076 = vand.u32 %v789, 4294901760
      %v1077 = vsub.f32 %v789, %v1076
      %1078 = vmatpush1.msra.mxu0 %v1077
      %1079 = vmatprep.subr.mxu0 0.0
      %v1080 = vand.u32 %v790, 4294901760
      %v1081 = vsub.f32 %v790, %v1080
      %1082 = vmatpush1.msra.mxu0 %v1081
      %1083 = vmatprep.subr.mxu0 0.0
      %v1084 = vand.u32 %v791, 4294901760
      %v1085 = vsub.f32 %v791, %v1084
      %1086 = vmatpush1.msra.mxu0 %v1085
      %1087 = vmatprep.subr.mxu0 0.0
      %v1088 = vand.u32 %v792, 4294901760
      %v1089 = vsub.f32 %v792, %v1088
      %1090 = vmatpush1.msra.mxu0 %v1089
      %1091 = vmatprep.subr.mxu0 0.0
      %v1092 = vand.u32 %v793, 4294901760
      %v1093 = vsub.f32 %v793, %v1092
      %1094 = vmatpush1.msra.mxu0 %v1093
      %1095 = vmatprep.subr.mxu0 0.0
      %v1096 = vand.u32 %v794, 4294901760
      %v1097 = vsub.f32 %v794, %v1096
      %1098 = vmatpush1.msra.mxu0 %v1097
      %1099 = vmatprep.subr.mxu0 0.0
      %v1100 = vand.u32 %v795, 4294901760
      %v1101 = vsub.f32 %v795, %v1100
      %1102 = vmatpush1.msra.mxu0 %v1101
      %1103 = vmatprep.subr.mxu0 0.0
      %v1104 = vand.u32 %v796, 4294901760
      %v1105 = vsub.f32 %v796, %v1104
      %1106 = vmatpush1.msra.mxu0 %v1105
      %1107 = vmatprep.subr.mxu0 0.0
      %v1108 = vand.u32 %v797, 4294901760
      %v1109 = vsub.f32 %v797, %v1108
      %1110 = vmatpush1.msra.mxu0 %v1109
      %1111 = vmatprep.subr.mxu0 0.0
      %1112 = vmatpush1.msra.mxu0 0.0
      %1113 = vmatprep.subr.mxu0 0.0
      %1114 = vmatpush1.msra.mxu0 0.0
      %1115 = vmatprep.subr.mxu0 0.0
      %1116 = vmatpush1.msra.mxu0 0.0
      %1117 = vmatprep.subr.mxu0 0.0
      %1118 = vmatpush1.msra.mxu0 0.0
      %1119 = vmatprep.subr.mxu0 0.0
      %1120 = vmatpush1.msra.mxu0 0.0
      %1121 = vmatprep.subr.mxu0 0.0
      %1122 = vmatpush1.msra.mxu0 0.0
      %1123 = vmatprep.subr.mxu0 0.0
      %1124 = vmatpush1.msra.mxu0 0.0
      %1125 = vmatprep.subr.mxu0 0.0
      %1126 = vmatpush1.msra.mxu0 0.0
      %1127 = vmatprep.subr.mxu0 0.0
      %1128 = vmatpush1.msra.mxu0 0.0
      %1129 = vmatprep.subr.mxu0 0.0
      %1130 = vmatpush1.msra.mxu0 0.0
      %1131 = vmatprep.subr.mxu0 0.0
      %1132 = vmatpush1.msra.mxu0 0.0
      %1133 = vmatprep.subr.mxu0 0.0
      %1134 = vmatpush1.msra.mxu0 0.0
      %1135 = vmatprep.subr.mxu0 0.0
      %1136 = vmatpush1.msra.mxu0 0.0
      %1137 = vmatprep.subr.mxu0 0.0
      %1138 = vmatpush1.msra.mxu0 0.0
      %1139 = vmatprep.subr.mxu0 0.0
      %1140 = vmatpush1.msra.mxu0 0.0
      %1141 = vmatprep.subr.mxu0 0.0
      %1142 = vmatpush1.msra.mxu0 0.0
      %1143 = vmatprep.mubr.f32.mxu0 0.0
      %v1144 = vand.u32 %v781, 4294901760
      %v1145 = vsub.f32 %v781, %v1144
      %1146 = vmatmul.mubr.f32.gmra.mrb[0].mxu0 %v1145
      %v1147 = vpop.f32.mrb[0].mxu0
      %v1148 = vadd.f32 %v1044, %v1147
      %v1149 = vpop.f32.mrb[0].mxu0
      %1150 = vdwg.mxu0
      %1151 = vmatprep.subr.mxu0 0.0
      %v1152 = vand.u32 %v782, 4294901760
      %1153 = vmatpush1.msra.mxu0 %v1152
      %1154 = vmatprep.subr.mxu0 0.0
      %v1155 = vand.u32 %v783, 4294901760
      %1156 = vmatpush1.msra.mxu0 %v1155
      %1157 = vmatprep.subr.mxu0 0.0
      %v1158 = vand.u32 %v784, 4294901760
      %1159 = vmatpush1.msra.mxu0 %v1158
      %1160 = vmatprep.subr.mxu0 0.0
      %v1161 = vand.u32 %v785, 4294901760
      %1162 = vmatpush1.msra.mxu0 %v1161
      %1163 = vmatprep.subr.mxu0 0.0
      %v1164 = vand.u32 %v786, 4294901760
      %1165 = vmatpush1.msra.mxu0 %v1164
      %1166 = vmatprep.subr.mxu0 0.0
      %v1167 = vand.u32 %v787, 4294901760
      %1168 = vmatpush1.msra.mxu0 %v1167
      %1169 = vmatprep.subr.mxu0 0.0
      %v1170 = vand.u32 %v788, 4294901760
      %1171 = vmatpush1.msra.mxu0 %v1170
      %1172 = vmatprep.subr.mxu0 0.0
      %v1173 = vand.u32 %v789, 4294901760
      %1174 = vmatpush1.msra.mxu0 %v1173
      %1175 = vmatprep.subr.mxu0 0.0
      %v1176 = vand.u32 %v790, 4294901760
      %1177 = vmatpush1.msra.mxu0 %v1176
      %1178 = vmatprep.subr.mxu0 0.0
      %v1179 = vand.u32 %v791, 4294901760
      %1180 = vmatpush1.msra.mxu0 %v1179
      %1181 = vmatprep.subr.mxu0 0.0
      %v1182 = vand.u32 %v792, 4294901760
      %1183 = vmatpush1.msra.mxu0 %v1182
      %1184 = vmatprep.subr.mxu0 0.0
      %v1185 = vand.u32 %v793, 4294901760
      %1186 = vmatpush1.msra.mxu0 %v1185
      %1187 = vmatprep.subr.mxu0 0.0
      %v1188 = vand.u32 %v794, 4294901760
      %1189 = vmatpush1.msra.mxu0 %v1188
      %1190 = vmatprep.subr.mxu0 0.0
      %v1191 = vand.u32 %v795, 4294901760
      %1192 = vmatpush1.msra.mxu0 %v1191
      %1193 = vmatprep.subr.mxu0 0.0
      %v1194 = vand.u32 %v796, 4294901760
      %1195 = vmatpush1.msra.mxu0 %v1194
      %1196 = vmatprep.subr.mxu0 0.0
      %v1197 = vand.u32 %v797, 4294901760
      %1198 = vmatpush1.msra.mxu0 %v1197
      %1199 = vmatprep.subr.mxu0 0.0
      %1200 = vmatpush1.msra.mxu0 0.0
      %1201 = vmatprep.subr.mxu0 0.0
      %1202 = vmatpush1.msra.mxu0 0.0
      %1203 = vmatprep.subr.mxu0 0.0
      %1204 = vmatpush1.msra.mxu0 0.0
      %1205 = vmatprep.subr.mxu0 0.0
      %1206 = vmatpush1.msra.mxu0 0.0
      %1207 = vmatprep.subr.mxu0 0.0
      %1208 = vmatpush1.msra.mxu0 0.0
      %1209 = vmatprep.subr.mxu0 0.0
      %1210 = vmatpush1.msra.mxu0 0.0
      %1211 = vmatprep.subr.mxu0 0.0
      %1212 = vmatpush1.msra.mxu0 0.0
      %1213 = vmatprep.subr.mxu0 0.0
      %1214 = vmatpush1.msra.mxu0 0.0
      %1215 = vmatprep.subr.mxu0 0.0
      %1216 = vmatpush1.msra.mxu0 0.0
      %1217 = vmatprep.subr.mxu0 0.0
      %1218 = vmatpush1.msra.mxu0 0.0
      %1219 = vmatprep.subr.mxu0 0.0
      %1220 = vmatpush1.msra.mxu0 0.0
      %1221 = vmatprep.subr.mxu0 0.0
      %1222 = vmatpush1.msra.mxu0 0.0
      %1223 = vmatprep.subr.mxu0 0.0
      %1224 = vmatpush1.msra.mxu0 0.0
      %1225 = vmatprep.subr.mxu0 0.0
      %1226 = vmatpush1.msra.mxu0 0.0
      %1227 = vmatprep.subr.mxu0 0.0
      %1228 = vmatpush1.msra.mxu0 0.0
      %1229 = vmatprep.subr.mxu0 0.0
      %1230 = vmatpush1.msra.mxu0 0.0
      %1231 = vmatprep.mubr.f32.mxu0 0.0
      %v1232 = vand.u32 %v781, 4294901760
      %v1233 = vsub.f32 %v781, %v1232
      %v1234 = vand.u32 %v1233, 4294901760
      %1235 = vmatmul.mubr.f32.gmra.mrb[0].mxu0 %v1234
      %v1236 = vpop.f32.mrb[0].mxu0
      %v1237 = vadd.f32 %v1148, %v1236
      %v1238 = vpop.f32.mrb[0].mxu0
      %1239 = vdwg.mxu0
      %1240 = vmatprep.subr.mxu0 0.0
      %v1241 = vand.u32 %v782, 4294901760
      %v1242 = vsub.f32 %v782, %v1241
      %v1243 = vand.u32 %v1242, 4294901760
      %1244 = vmatpush1.msra.mxu0 %v1243
      %1245 = vmatprep.subr.mxu0 0.0
      %v1246 = vand.u32 %v783, 4294901760
      %v1247 = vsub.f32 %v783, %v1246
      %v1248 = vand.u32 %v1247, 4294901760
      %1249 = vmatpush1.msra.mxu0 %v1248
      %1250 = vmatprep.subr.mxu0 0.0
      %v1251 = vand.u32 %v784, 4294901760
      %v1252 = vsub.f32 %v784, %v1251
      %v1253 = vand.u32 %v1252, 4294901760
      %1254 = vmatpush1.msra.mxu0 %v1253
      %1255 = vmatprep.subr.mxu0 0.0
      %v1256 = vand.u32 %v785, 4294901760
      %v1257 = vsub.f32 %v785, %v1256
      %v1258 = vand.u32 %v1257, 4294901760
      %1259 = vmatpush1.msra.mxu0 %v1258
      %1260 = vmatprep.subr.mxu0 0.0
      %v1261 = vand.u32 %v786, 4294901760
      %v1262 = vsub.f32 %v786, %v1261
      %v1263 = vand.u32 %v1262, 4294901760
      %1264 = vmatpush1.msra.mxu0 %v1263
      %1265 = vmatprep.subr.mxu0 0.0
      %v1266 = vand.u32 %v787, 4294901760
      %v1267 = vsub.f32 %v787, %v1266
      %v1268 = vand.u32 %v1267, 4294901760
      %1269 = vmatpush1.msra.mxu0 %v1268
      %1270 = vmatprep.subr.mxu0 0.0
      %v1271 = vand.u32 %v788, 4294901760
      %v1272 = vsub.f32 %v788, %v1271
      %v1273 = vand.u32 %v1272, 4294901760
      %1274 = vmatpush1.msra.mxu0 %v1273
      %1275 = vmatprep.subr.mxu0 0.0
      %v1276 = vand.u32 %v789, 4294901760
      %v1277 = vsub.f32 %v789, %v1276
      %v1278 = vand.u32 %v1277, 4294901760
      %1279 = vmatpush1.msra.mxu0 %v1278
      %1280 = vmatprep.subr.mxu0 0.0
      %v1281 = vand.u32 %v790, 4294901760
      %v1282 = vsub.f32 %v790, %v1281
      %v1283 = vand.u32 %v1282, 4294901760
      %1284 = vmatpush1.msra.mxu0 %v1283
      %1285 = vmatprep.subr.mxu0 0.0
      %v1286 = vand.u32 %v791, 4294901760
      %v1287 = vsub.f32 %v791, %v1286
      %v1288 = vand.u32 %v1287, 4294901760
      %1289 = vmatpush1.msra.mxu0 %v1288
      %1290 = vmatprep.subr.mxu0 0.0
      %v1291 = vand.u32 %v792, 4294901760
      %v1292 = vsub.f32 %v792, %v1291
      %v1293 = vand.u32 %v1292, 4294901760
      %1294 = vmatpush1.msra.mxu0 %v1293
      %1295 = vmatprep.subr.mxu0 0.0
      %v1296 = vand.u32 %v793, 4294901760
      %v1297 = vsub.f32 %v793, %v1296
      %v1298 = vand.u32 %v1297, 4294901760
      %1299 = vmatpush1.msra.mxu0 %v1298
      %1300 = vmatprep.subr.mxu0 0.0
      %v1301 = vand.u32 %v794, 4294901760
      %v1302 = vsub.f32 %v794, %v1301
      %v1303 = vand.u32 %v1302, 4294901760
      %1304 = vmatpush1.msra.mxu0 %v1303
      %1305 = vmatprep.subr.mxu0 0.0
      %v1306 = vand.u32 %v795, 4294901760
      %v1307 = vsub.f32 %v795, %v1306
      %v1308 = vand.u32 %v1307, 4294901760
      %1309 = vmatpush1.msra.mxu0 %v1308
      %1310 = vmatprep.subr.mxu0 0.0
      %v1311 = vand.u32 %v796, 4294901760
      %v1312 = vsub.f32 %v796, %v1311
      %v1313 = vand.u32 %v1312, 4294901760
      %1314 = vmatpush1.msra.mxu0 %v1313
      %1315 = vmatprep.subr.mxu0 0.0
      %v1316 = vand.u32 %v797, 4294901760
      %v1317 = vsub.f32 %v797, %v1316
      %v1318 = vand.u32 %v1317, 4294901760
      %1319 = vmatpush1.msra.mxu0 %v1318
      %1320 = vmatprep.subr.mxu0 0.0
      %1321 = vmatpush1.msra.mxu0 0.0
      %1322 = vmatprep.subr.mxu0 0.0
      %1323 = vmatpush1.msra.mxu0 0.0
      %1324 = vmatprep.subr.mxu0 0.0
      %1325 = vmatpush1.msra.mxu0 0.0
      %1326 = vmatprep.subr.mxu0 0.0
      %1327 = vmatpush1.msra.mxu0 0.0
      %1328 = vmatprep.subr.mxu0 0.0
      %1329 = vmatpush1.msra.mxu0 0.0
      %1330 = vmatprep.subr.mxu0 0.0
      %1331 = vmatpush1.msra.mxu0 0.0
      %1332 = vmatprep.subr.mxu0 0.0
      %1333 = vmatpush1.msra.mxu0 0.0
      %1334 = vmatprep.subr.mxu0 0.0
      %1335 = vmatpush1.msra.mxu0 0.0
      %1336 = vmatprep.subr.mxu0 0.0
      %1337 = vmatpush1.msra.mxu0 0.0
      %1338 = vmatprep.subr.mxu0 0.0
      %1339 = vmatpush1.msra.mxu0 0.0
      %1340 = vmatprep.subr.mxu0 0.0
      %1341 = vmatpush1.msra.mxu0 0.0
      %1342 = vmatprep.subr.mxu0 0.0
      %1343 = vmatpush1.msra.mxu0 0.0
      %1344 = vmatprep.subr.mxu0 0.0
      %1345 = vmatpush1.msra.mxu0 0.0
      %1346 = vmatprep.subr.mxu0 0.0
      %1347 = vmatpush1.msra.mxu0 0.0
      %1348 = vmatprep.subr.mxu0 0.0
      %1349 = vmatpush1.msra.mxu0 0.0
      %1350 = vmatprep.subr.mxu0 0.0
      %1351 = vmatpush1.msra.mxu0 0.0
      %1352 = vmatprep.mubr.f32.mxu0 0.0
      %v1353 = vand.u32 %v781, 4294901760
      %1354 = vmatmul.mubr.f32.gmra.mrb[0].mxu0 %v1353
      %v1355 = vpop.f32.mrb[0].mxu0
      %v1356 = vadd.f32 %v1237, %v1355
      %v1357 = vpop.f32.mrb[0].mxu0
      %1358 = vdwg.mxu0
      %1359 = vmatprep.subr.mxu0 0.0
      %v1360 = vand.u32 %v782, 4294901760
      %1361 = vmatpush1.msra.mxu0 %v1360
      %1362 = vmatprep.subr.mxu0 0.0
      %v1363 = vand.u32 %v783, 4294901760
      %1364 = vmatpush1.msra.mxu0 %v1363
      %1365 = vmatprep.subr.mxu0 0.0
      %v1366 = vand.u32 %v784, 4294901760
      %1367 = vmatpush1.msra.mxu0 %v1366
      %1368 = vmatprep.subr.mxu0 0.0
      %v1369 = vand.u32 %v785, 4294901760
      %1370 = vmatpush1.msra.mxu0 %v1369
      %1371 = vmatprep.subr.mxu0 0.0
      %v1372 = vand.u32 %v786, 4294901760
      %1373 = vmatpush1.msra.mxu0 %v1372
      %1374 = vmatprep.subr.mxu0 0.0
      %v1375 = vand.u32 %v787, 4294901760
      %1376 = vmatpush1.msra.mxu0 %v1375
      %1377 = vmatprep.subr.mxu0 0.0
      %v1378 = vand.u32 %v788, 4294901760
      %1379 = vmatpush1.msra.mxu0 %v1378
      %1380 = vmatprep.subr.mxu0 0.0
      %v1381 = vand.u32 %v789, 4294901760
      %1382 = vmatpush1.msra.mxu0 %v1381
      %1383 = vmatprep.subr.mxu0 0.0
      %v1384 = vand.u32 %v790, 4294901760
      %1385 = vmatpush1.msra.mxu0 %v1384
      %1386 = vmatprep.subr.mxu0 0.0
      %v1387 = vand.u32 %v791, 4294901760
      %1388 = vmatpush1.msra.mxu0 %v1387
      %1389 = vmatprep.subr.mxu0 0.0
      %v1390 = vand.u32 %v792, 4294901760
      %1391 = vmatpush1.msra.mxu0 %v1390
      %1392 = vmatprep.subr.mxu0 0.0
      %v1393 = vand.u32 %v793, 4294901760
      %1394 = vmatpush1.msra.mxu0 %v1393
      %1395 = vmatprep.subr.mxu0 0.0
      %v1396 = vand.u32 %v794, 4294901760
      %1397 = vmatpush1.msra.mxu0 %v1396
      %1398 = vmatprep.subr.mxu0 0.0
      %v1399 = vand.u32 %v795, 4294901760
      %1400 = vmatpush1.msra.mxu0 %v1399
      %1401 = vmatprep.subr.mxu0 0.0
      %v1402 = vand.u32 %v796, 4294901760
      %1403 = vmatpush1.msra.mxu0 %v1402
      %1404 = vmatprep.subr.mxu0 0.0
      %v1405 = vand.u32 %v797, 4294901760
      %1406 = vmatpush1.msra.mxu0 %v1405
      %1407 = vmatprep.subr.mxu0 0.0
      %1408 = vmatpush1.msra.mxu0 0.0
      %1409 = vmatprep.subr.mxu0 0.0
      %1410 = vmatpush1.msra.mxu0 0.0
      %1411 = vmatprep.subr.mxu0 0.0
      %1412 = vmatpush1.msra.mxu0 0.0
      %1413 = vmatprep.subr.mxu0 0.0
      %1414 = vmatpush1.msra.mxu0 0.0
      %1415 = vmatprep.subr.mxu0 0.0
      %1416 = vmatpush1.msra.mxu0 0.0
      %1417 = vmatprep.subr.mxu0 0.0
      %1418 = vmatpush1.msra.mxu0 0.0
      %1419 = vmatprep.subr.mxu0 0.0
      %1420 = vmatpush1.msra.mxu0 0.0
      %1421 = vmatprep.subr.mxu0 0.0
      %1422 = vmatpush1.msra.mxu0 0.0
      %1423 = vmatprep.subr.mxu0 0.0
      %1424 = vmatpush1.msra.mxu0 0.0
      %1425 = vmatprep.subr.mxu0 0.0
      %1426 = vmatpush1.msra.mxu0 0.0
      %1427 = vmatprep.subr.mxu0 0.0
      %1428 = vmatpush1.msra.mxu0 0.0
      %1429 = vmatprep.subr.mxu0 0.0
      %1430 = vmatpush1.msra.mxu0 0.0
      %1431 = vmatprep.subr.mxu0 0.0
      %1432 = vmatpush1.msra.mxu0 0.0
      %1433 = vmatprep.subr.mxu0 0.0
      %1434 = vmatpush1.msra.mxu0 0.0
      %1435 = vmatprep.subr.mxu0 0.0
      %1436 = vmatpush1.msra.mxu0 0.0
      %1437 = vmatprep.subr.mxu0 0.0
      %1438 = vmatpush1.msra.mxu0 0.0
      %1439 = vmatprep.mubr.f32.mxu0 0.0
      %v1440 = vand.u32 %v781, 4294901760
      %1441 = vmatmul.mubr.f32.gmra.mrb[0].mxu0 %v1440
      %v1442 = vpop.f32.mrb[0].mxu0
      %v1443 = vadd.f32 %v1356, %v1442
      %v1444 = vpop.f32.mrb[0].mxu0
      %1445 = vdwg.mxu0
      %v1446 = vld [vmem:[%s4] sm:$0xff]
      %v1447 = vld [vmem:[%s4 + $0x8] sm:$0xff]
      %vm1448 = vcmask 64512
      %v1450 = vsel %vm1448, %v1446, 0
      %v1453 = vsel %vm1448, %v1447, 0
      %1455 = vmatprep.subr.mxu0 0.0
      %v1456 = vand.u32 %v1443, 4294901760
      %1457 = vmatpush1.msra.mxu0 %v1456
      %1458 = vmatprep.subr.mxu0 0.0
      %1459 = vmatpush1.msra.mxu0 0.0
      %1460 = vmatprep.subr.mxu0 0.0
      %1461 = vmatpush1.msra.mxu0 0.0
      %1462 = vmatprep.subr.mxu0 0.0
      %1463 = vmatpush1.msra.mxu0 0.0
      %1464 = vmatprep.subr.mxu0 0.0
      %1465 = vmatpush1.msra.mxu0 0.0
      %1466 = vmatprep.subr.mxu0 0.0
      %1467 = vmatpush1.msra.mxu0 0.0
      %1468 = vmatprep.subr.mxu0 0.0
      %1469 = vmatpush1.msra.mxu0 0.0
      %1470 = vmatprep.subr.mxu0 0.0
      %1471 = vmatpush1.msra.mxu0 0.0
      %1472 = vmatprep.subr.mxu0 0.0
      %1473 = vmatpush1.msra.mxu0 0.0
      %1474 = vmatprep.subr.mxu0 0.0
      %1475 = vmatpush1.msra.mxu0 0.0
      %1476 = vmatprep.subr.mxu0 0.0
      %1477 = vmatpush1.msra.mxu0 0.0
      %1478 = vmatprep.subr.mxu0 0.0
      %1479 = vmatpush1.msra.mxu0 0.0
      %1480 = vmatprep.subr.mxu0 0.0
      %1481 = vmatpush1.msra.mxu0 0.0
      %1482 = vmatprep.subr.mxu0 0.0
      %1483 = vmatpush1.msra.mxu0 0.0
      %1484 = vmatprep.subr.mxu0 0.0
      %1485 = vmatpush1.msra.mxu0 0.0
      %1486 = vmatprep.subr.mxu0 0.0
      %1487 = vmatpush1.msra.mxu0 0.0
      %1488 = vmatprep.subr.mxu0 0.0
      %1489 = vmatpush1.msra.mxu0 0.0
      %1490 = vmatprep.subr.mxu0 0.0
      %1491 = vmatpush1.msra.mxu0 0.0
      %1492 = vmatprep.subr.mxu0 0.0
      %1493 = vmatpush1.msra.mxu0 0.0
      %1494 = vmatprep.subr.mxu0 0.0
      %1495 = vmatpush1.msra.mxu0 0.0
      %1496 = vmatprep.subr.mxu0 0.0
      %1497 = vmatpush1.msra.mxu0 0.0
      %1498 = vmatprep.subr.mxu0 0.0
      %1499 = vmatpush1.msra.mxu0 0.0
      %1500 = vmatprep.subr.mxu0 0.0
      %1501 = vmatpush1.msra.mxu0 0.0
      %1502 = vmatprep.subr.mxu0 0.0
      %1503 = vmatpush1.msra.mxu0 0.0
      %1504 = vmatprep.subr.mxu0 0.0
      %1505 = vmatpush1.msra.mxu0 0.0
      %1506 = vmatprep.subr.mxu0 0.0
      %1507 = vmatpush1.msra.mxu0 0.0
      %1508 = vmatprep.subr.mxu0 0.0
      %1509 = vmatpush1.msra.mxu0 0.0
      %1510 = vmatprep.subr.mxu0 0.0
      %1511 = vmatpush1.msra.mxu0 0.0
      %1512 = vmatprep.subr.mxu0 0.0
      %1513 = vmatpush1.msra.mxu0 0.0
      %1514 = vmatprep.subr.mxu0 0.0
      %1515 = vmatpush1.msra.mxu0 0.0
      %1516 = vmatprep.subr.mxu0 0.0
      %1517 = vmatpush1.msra.mxu0 0.0
      %1518 = vmatprep.subr.mxu0 0.0
      %1519 = vmatpush1.msra.mxu0 0.0
      %1520 = vmatprep.mubr.f32.mxu0 0.0
      %v1521 = vand.u32 %v1450, 4294901760
      %v1522 = vsub.f32 %v1450, %v1521
      %v1523 = vand.u32 %v1522, 4294901760
      %v1524 = vsub.f32 %v1522, %v1523
      %v1525 = vand.u32 %v1524, 4294901760
      %1526 = vmatmul.mubr.f32.gmra.mrb[0].mxu0 %v1525
      %v1527 = vpop.f32.mrb[0].mxu0
      %v1528 = vadd.f32 0.0, %v1527
      %v1529 = vpop.f32.mrb[0].mxu0
      %1530 = vmatprep.mubr.f32.mxu0 0.0
      %v1531 = vand.u32 %v1453, 4294901760
      %v1532 = vsub.f32 %v1453, %v1531
      %v1533 = vand.u32 %v1532, 4294901760
      %v1534 = vsub.f32 %v1532, %v1533
      %v1535 = vand.u32 %v1534, 4294901760
      %1536 = vmatmul.mubr.f32.gmra.mrb[0].mxu0 %v1535
      %v1537 = vpop.f32.mrb[0].mxu0
      %v1538 = vadd.f32 0.0, %v1537
      %v1539 = vpop.f32.mrb[0].mxu0
      %1540 = vdwg.mxu0
      %1541 = vmatprep.subr.mxu0 0.0
      %v1542 = vand.u32 %v1443, 4294901760
      %v1543 = vsub.f32 %v1443, %v1542
      %v1544 = vand.u32 %v1543, 4294901760
      %v1545 = vsub.f32 %v1543, %v1544
      %v1546 = vand.u32 %v1545, 4294901760
      %1547 = vmatpush1.msra.mxu0 %v1546
      %1548 = vmatprep.subr.mxu0 0.0
      %1549 = vmatpush1.msra.mxu0 0.0
      %1550 = vmatprep.subr.mxu0 0.0
      %1551 = vmatpush1.msra.mxu0 0.0
      %1552 = vmatprep.subr.mxu0 0.0
      %1553 = vmatpush1.msra.mxu0 0.0
      %1554 = vmatprep.subr.mxu0 0.0
      %1555 = vmatpush1.msra.mxu0 0.0
      %1556 = vmatprep.subr.mxu0 0.0
      %1557 = vmatpush1.msra.mxu0 0.0
      %1558 = vmatprep.subr.mxu0 0.0
      %1559 = vmatpush1.msra.mxu0 0.0
      %1560 = vmatprep.subr.mxu0 0.0
      %1561 = vmatpush1.msra.mxu0 0.0
      %1562 = vmatprep.subr.mxu0 0.0
      %1563 = vmatpush1.msra.mxu0 0.0
      %1564 = vmatprep.subr.mxu0 0.0
      %1565 = vmatpush1.msra.mxu0 0.0
      %1566 = vmatprep.subr.mxu0 0.0
      %1567 = vmatpush1.msra.mxu0 0.0
      %1568 = vmatprep.subr.mxu0 0.0
      %1569 = vmatpush1.msra.mxu0 0.0
      %1570 = vmatprep.subr.mxu0 0.0
      %1571 = vmatpush1.msra.mxu0 0.0
      %1572 = vmatprep.subr.mxu0 0.0
      %1573 = vmatpush1.msra.mxu0 0.0
      %1574 = vmatprep.subr.mxu0 0.0
      %1575 = vmatpush1.msra.mxu0 0.0
      %1576 = vmatprep.subr.mxu0 0.0
      %1577 = vmatpush1.msra.mxu0 0.0
      %1578 = vmatprep.subr.mxu0 0.0
      %1579 = vmatpush1.msra.mxu0 0.0
      %1580 = vmatprep.subr.mxu0 0.0
      %1581 = vmatpush1.msra.mxu0 0.0
      %1582 = vmatprep.subr.mxu0 0.0
      %1583 = vmatpush1.msra.mxu0 0.0
      %1584 = vmatprep.subr.mxu0 0.0
      %1585 = vmatpush1.msra.mxu0 0.0
      %1586 = vmatprep.subr.mxu0 0.0
      %1587 = vmatpush1.msra.mxu0 0.0
      %1588 = vmatprep.subr.mxu0 0.0
      %1589 = vmatpush1.msra.mxu0 0.0
      %1590 = vmatprep.subr.mxu0 0.0
      %1591 = vmatpush1.msra.mxu0 0.0
      %1592 = vmatprep.subr.mxu0 0.0
      %1593 = vmatpush1.msra.mxu0 0.0
      %1594 = vmatprep.subr.mxu0 0.0
      %1595 = vmatpush1.msra.mxu0 0.0
      %1596 = vmatprep.subr.mxu0 0.0
      %1597 = vmatpush1.msra.mxu0 0.0
      %1598 = vmatprep.subr.mxu0 0.0
      %1599 = vmatpush1.msra.mxu0 0.0
      %1600 = vmatprep.subr.mxu0 0.0
      %1601 = vmatpush1.msra.mxu0 0.0
      %1602 = vmatprep.subr.mxu0 0.0
      %1603 = vmatpush1.msra.mxu0 0.0
      %1604 = vmatprep.subr.mxu0 0.0
      %1605 = vmatpush1.msra.mxu0 0.0
      %1606 = vmatprep.subr.mxu0 0.0
      %1607 = vmatpush1.msra.mxu0 0.0
      %1608 = vmatprep.subr.mxu0 0.0
      %1609 = vmatpush1.msra.mxu0 0.0
      %1610 = vmatprep.mubr.f32.mxu0 0.0
      %v1611 = vand.u32 %v1450, 4294901760
      %1612 = vmatmul.mubr.f32.gmra.mrb[0].mxu0 %v1611
      %v1613 = vpop.f32.mrb[0].mxu0
      %v1614 = vadd.f32 %v1528, %v1613
      %v1615 = vpop.f32.mrb[0].mxu0
      %1616 = vmatprep.mubr.f32.mxu0 0.0
      %v1617 = vand.u32 %v1453, 4294901760
      %1618 = vmatmul.mubr.f32.gmra.mrb[0].mxu0 %v1617
      %v1619 = vpop.f32.mrb[0].mxu0
      %v1620 = vadd.f32 %v1538, %v1619
      %v1621 = vpop.f32.mrb[0].mxu0
      %1622 = vdwg.mxu0
      %1623 = vmatprep.subr.mxu0 0.0
      %v1624 = vand.u32 %v1443, 4294901760
      %v1625 = vsub.f32 %v1443, %v1624
      %1626 = vmatpush1.msra.mxu0 %v1625
      %1627 = vmatprep.subr.mxu0 0.0
      %1628 = vmatpush1.msra.mxu0 0.0
      %1629 = vmatprep.subr.mxu0 0.0
      %1630 = vmatpush1.msra.mxu0 0.0
      %1631 = vmatprep.subr.mxu0 0.0
      %1632 = vmatpush1.msra.mxu0 0.0
      %1633 = vmatprep.subr.mxu0 0.0
      %1634 = vmatpush1.msra.mxu0 0.0
      %1635 = vmatprep.subr.mxu0 0.0
      %1636 = vmatpush1.msra.mxu0 0.0
      %1637 = vmatprep.subr.mxu0 0.0
      %1638 = vmatpush1.msra.mxu0 0.0
      %1639 = vmatprep.subr.mxu0 0.0
      %1640 = vmatpush1.msra.mxu0 0.0
      %1641 = vmatprep.subr.mxu0 0.0
      %1642 = vmatpush1.msra.mxu0 0.0
      %1643 = vmatprep.subr.mxu0 0.0
      %1644 = vmatpush1.msra.mxu0 0.0
      %1645 = vmatprep.subr.mxu0 0.0
      %1646 = vmatpush1.msra.mxu0 0.0
      %1647 = vmatprep.subr.mxu0 0.0
      %1648 = vmatpush1.msra.mxu0 0.0
      %1649 = vmatprep.subr.mxu0 0.0
      %1650 = vmatpush1.msra.mxu0 0.0
      %1651 = vmatprep.subr.mxu0 0.0
      %1652 = vmatpush1.msra.mxu0 0.0
      %1653 = vmatprep.subr.mxu0 0.0
      %1654 = vmatpush1.msra.mxu0 0.0
      %1655 = vmatprep.subr.mxu0 0.0
      %1656 = vmatpush1.msra.mxu0 0.0
      %1657 = vmatprep.subr.mxu0 0.0
      %1658 = vmatpush1.msra.mxu0 0.0
      %1659 = vmatprep.subr.mxu0 0.0
      %1660 = vmatpush1.msra.mxu0 0.0
      %1661 = vmatprep.subr.mxu0 0.0
      %1662 = vmatpush1.msra.mxu0 0.0
      %1663 = vmatprep.subr.mxu0 0.0
      %1664 = vmatpush1.msra.mxu0 0.0
      %1665 = vmatprep.subr.mxu0 0.0
      %1666 = vmatpush1.msra.mxu0 0.0
      %1667 = vmatprep.subr.mxu0 0.0
      %1668 = vmatpush1.msra.mxu0 0.0
      %1669 = vmatprep.subr.mxu0 0.0
      %1670 = vmatpush1.msra.mxu0 0.0
      %1671 = vmatprep.subr.mxu0 0.0
      %1672 = vmatpush1.msra.mxu0 0.0
      %1673 = vmatprep.subr.mxu0 0.0
      %1674 = vmatpush1.msra.mxu0 0.0
      %1675 = vmatprep.subr.mxu0 0.0
      %1676 = vmatpush1.msra.mxu0 0.0
      %1677 = vmatprep.subr.mxu0 0.0
      %1678 = vmatpush1.msra.mxu0 0.0
      %1679 = vmatprep.subr.mxu0 0.0
      %1680 = vmatpush1.msra.mxu0 0.0
      %1681 = vmatprep.subr.mxu0 0.0
      %1682 = vmatpush1.msra.mxu0 0.0
      %1683 = vmatprep.subr.mxu0 0.0
      %1684 = vmatpush1.msra.mxu0 0.0
      %1685 = vmatprep.subr.mxu0 0.0
      %1686 = vmatpush1.msra.mxu0 0.0
      %1687 = vmatprep.subr.mxu0 0.0
      %1688 = vmatpush1.msra.mxu0 0.0
      %1689 = vmatprep.mubr.f32.mxu0 0.0
      %v1690 = vand.u32 %v1450, 4294901760
      %v1691 = vsub.f32 %v1450, %v1690
      %1692 = vmatmul.mubr.f32.gmra.mrb[0].mxu0 %v1691
      %v1693 = vpop.f32.mrb[0].mxu0
      %v1694 = vadd.f32 %v1614, %v1693
      %v1695 = vpop.f32.mrb[0].mxu0
      %1696 = vmatprep.mubr.f32.mxu0 0.0
      %v1697 = vand.u32 %v1453, 4294901760
      %v1698 = vsub.f32 %v1453, %v1697
      %1699 = vmatmul.mubr.f32.gmra.mrb[0].mxu0 %v1698
      %v1700 = vpop.f32.mrb[0].mxu0
      %v1701 = vadd.f32 %v1620, %v1700
      %v1702 = vpop.f32.mrb[0].mxu0
      %1703 = vdwg.mxu0
      %1704 = vmatprep.subr.mxu0 0.0
      %v1705 = vand.u32 %v1443, 4294901760
      %1706 = vmatpush1.msra.mxu0 %v1705
      %1707 = vmatprep.subr.mxu0 0.0
      %1708 = vmatpush1.msra.mxu0 0.0
      %1709 = vmatprep.subr.mxu0 0.0
      %1710 = vmatpush1.msra.mxu0 0.0
      %1711 = vmatprep.subr.mxu0 0.0
      %1712 = vmatpush1.msra.mxu0 0.0
      %1713 = vmatprep.subr.mxu0 0.0
      %1714 = vmatpush1.msra.mxu0 0.0
      %1715 = vmatprep.subr.mxu0 0.0
      %1716 = vmatpush1.msra.mxu0 0.0
      %1717 = vmatprep.subr.mxu0 0.0
      %1718 = vmatpush1.msra.mxu0 0.0
      %1719 = vmatprep.subr.mxu0 0.0
      %1720 = vmatpush1.msra.mxu0 0.0
      %1721 = vmatprep.subr.mxu0 0.0
      %1722 = vmatpush1.msra.mxu0 0.0
      %1723 = vmatprep.subr.mxu0 0.0
      %1724 = vmatpush1.msra.mxu0 0.0
      %1725 = vmatprep.subr.mxu0 0.0
      %1726 = vmatpush1.msra.mxu0 0.0
      %1727 = vmatprep.subr.mxu0 0.0
      %1728 = vmatpush1.msra.mxu0 0.0
      %1729 = vmatprep.subr.mxu0 0.0
      %1730 = vmatpush1.msra.mxu0 0.0
      %1731 = vmatprep.subr.mxu0 0.0
      %1732 = vmatpush1.msra.mxu0 0.0
      %1733 = vmatprep.subr.mxu0 0.0
      %1734 = vmatpush1.msra.mxu0 0.0
      %1735 = vmatprep.subr.mxu0 0.0
      %1736 = vmatpush1.msra.mxu0 0.0
      %1737 = vmatprep.subr.mxu0 0.0
      %1738 = vmatpush1.msra.mxu0 0.0
      %1739 = vmatprep.subr.mxu0 0.0
      %1740 = vmatpush1.msra.mxu0 0.0
      %1741 = vmatprep.subr.mxu0 0.0
      %1742 = vmatpush1.msra.mxu0 0.0
      %1743 = vmatprep.subr.mxu0 0.0
      %1744 = vmatpush1.msra.mxu0 0.0
      %1745 = vmatprep.subr.mxu0 0.0
      %1746 = vmatpush1.msra.mxu0 0.0
      %1747 = vmatprep.subr.mxu0 0.0
      %1748 = vmatpush1.msra.mxu0 0.0
      %1749 = vmatprep.subr.mxu0 0.0
      %1750 = vmatpush1.msra.mxu0 0.0
      %1751 = vmatprep.subr.mxu0 0.0
      %1752 = vmatpush1.msra.mxu0 0.0
      %1753 = vmatprep.subr.mxu0 0.0
      %1754 = vmatpush1.msra.mxu0 0.0
      %1755 = vmatprep.subr.mxu0 0.0
      %1756 = vmatpush1.msra.mxu0 0.0
      %1757 = vmatprep.subr.mxu0 0.0
      %1758 = vmatpush1.msra.mxu0 0.0
      %1759 = vmatprep.subr.mxu0 0.0
      %1760 = vmatpush1.msra.mxu0 0.0
      %1761 = vmatprep.subr.mxu0 0.0
      %1762 = vmatpush1.msra.mxu0 0.0
      %1763 = vmatprep.subr.mxu0 0.0
      %1764 = vmatpush1.msra.mxu0 0.0
      %1765 = vmatprep.subr.mxu0 0.0
      %1766 = vmatpush1.msra.mxu0 0.0
      %1767 = vmatprep.subr.mxu0 0.0
      %1768 = vmatpush1.msra.mxu0 0.0
      %1769 = vmatprep.mubr.f32.mxu0 0.0
      %v1770 = vand.u32 %v1450, 4294901760
      %v1771 = vsub.f32 %v1450, %v1770
      %v1772 = vand.u32 %v1771, 4294901760
      %1773 = vmatmul.mubr.f32.gmra.mrb[0].mxu0 %v1772
      %v1774 = vpop.f32.mrb[0].mxu0
      %v1775 = vadd.f32 %v1694, %v1774
      %v1776 = vpop.f32.mrb[0].mxu0
      %1777 = vmatprep.mubr.f32.mxu0 0.0
      %v1778 = vand.u32 %v1453, 4294901760
      %v1779 = vsub.f32 %v1453, %v1778
      %v1780 = vand.u32 %v1779, 4294901760
      %1781 = vmatmul.mubr.f32.gmra.mrb[0].mxu0 %v1780
      %v1782 = vpop.f32.mrb[0].mxu0
      %v1783 = vadd.f32 %v1701, %v1782
      %v1784 = vpop.f32.mrb[0].mxu0
      %1785 = vdwg.mxu0
      %1786 = vmatprep.subr.mxu0 0.0
      %v1787 = vand.u32 %v1443, 4294901760
      %v1788 = vsub.f32 %v1443, %v1787
      %v1789 = vand.u32 %v1788, 4294901760
      %1790 = vmatpush1.msra.mxu0 %v1789
      %1791 = vmatprep.subr.mxu0 0.0
      %1792 = vmatpush1.msra.mxu0 0.0
      %1793 = vmatprep.subr.mxu0 0.0
      %1794 = vmatpush1.msra.mxu0 0.0
      %1795 = vmatprep.subr.mxu0 0.0
      %1796 = vmatpush1.msra.mxu0 0.0
      %1797 = vmatprep.subr.mxu0 0.0
      %1798 = vmatpush1.msra.mxu0 0.0
      %1799 = vmatprep.subr.mxu0 0.0
      %1800 = vmatpush1.msra.mxu0 0.0
      %1801 = vmatprep.subr.mxu0 0.0
      %1802 = vmatpush1.msra.mxu0 0.0
      %1803 = vmatprep.subr.mxu0 0.0
      %1804 = vmatpush1.msra.mxu0 0.0
      %1805 = vmatprep.subr.mxu0 0.0
      %1806 = vmatpush1.msra.mxu0 0.0
      %1807 = vmatprep.subr.mxu0 0.0
      %1808 = vmatpush1.msra.mxu0 0.0
      %1809 = vmatprep.subr.mxu0 0.0
      %1810 = vmatpush1.msra.mxu0 0.0
      %1811 = vmatprep.subr.mxu0 0.0
      %1812 = vmatpush1.msra.mxu0 0.0
      %1813 = vmatprep.subr.mxu0 0.0
      %1814 = vmatpush1.msra.mxu0 0.0
      %1815 = vmatprep.subr.mxu0 0.0
      %1816 = vmatpush1.msra.mxu0 0.0
      %1817 = vmatprep.subr.mxu0 0.0
      %1818 = vmatpush1.msra.mxu0 0.0
      %1819 = vmatprep.subr.mxu0 0.0
      %1820 = vmatpush1.msra.mxu0 0.0
      %1821 = vmatprep.subr.mxu0 0.0
      %1822 = vmatpush1.msra.mxu0 0.0
      %1823 = vmatprep.subr.mxu0 0.0
      %1824 = vmatpush1.msra.mxu0 0.0
      %1825 = vmatprep.subr.mxu0 0.0
      %1826 = vmatpush1.msra.mxu0 0.0
      %1827 = vmatprep.subr.mxu0 0.0
      %1828 = vmatpush1.msra.mxu0 0.0
      %1829 = vmatprep.subr.mxu0 0.0
      %1830 = vmatpush1.msra.mxu0 0.0
      %1831 = vmatprep.subr.mxu0 0.0
      %1832 = vmatpush1.msra.mxu0 0.0
      %1833 = vmatprep.subr.mxu0 0.0
      %1834 = vmatpush1.msra.mxu0 0.0
      %1835 = vmatprep.subr.mxu0 0.0
      %1836 = vmatpush1.msra.mxu0 0.0
      %1837 = vmatprep.subr.mxu0 0.0
      %1838 = vmatpush1.msra.mxu0 0.0
      %1839 = vmatprep.subr.mxu0 0.0
      %1840 = vmatpush1.msra.mxu0 0.0
      %1841 = vmatprep.subr.mxu0 0.0
      %1842 = vmatpush1.msra.mxu0 0.0
      %1843 = vmatprep.subr.mxu0 0.0
      %1844 = vmatpush1.msra.mxu0 0.0
      %1845 = vmatprep.subr.mxu0 0.0
      %1846 = vmatpush1.msra.mxu0 0.0
      %1847 = vmatprep.subr.mxu0 0.0
      %1848 = vmatpush1.msra.mxu0 0.0
      %1849 = vmatprep.subr.mxu0 0.0
      %1850 = vmatpush1.msra.mxu0 0.0
      %1851 = vmatprep.subr.mxu0 0.0
      %1852 = vmatpush1.msra.mxu0 0.0
      %1853 = vmatprep.mubr.f32.mxu0 0.0
      %v1854 = vand.u32 %v1450, 4294901760
      %1855 = vmatmul.mubr.f32.gmra.mrb[0].mxu0 %v1854
      %v1856 = vpop.f32.mrb[0].mxu0
      %v1857 = vadd.f32 %v1775, %v1856
      %v1858 = vpop.f32.mrb[0].mxu0
      %1859 = vmatprep.mubr.f32.mxu0 0.0
      %v1860 = vand.u32 %v1453, 4294901760
      %1861 = vmatmul.mubr.f32.gmra.mrb[0].mxu0 %v1860
      %v1862 = vpop.f32.mrb[0].mxu0
      %v1863 = vadd.f32 %v1783, %v1862
      %v1864 = vpop.f32.mrb[0].mxu0
      %1865 = vdwg.mxu0
      %1866 = vmatprep.subr.mxu0 0.0
      %v1867 = vand.u32 %v1443, 4294901760
      %1868 = vmatpush1.msra.mxu0 %v1867
      %1869 = vmatprep.subr.mxu0 0.0
      %1870 = vmatpush1.msra.mxu0 0.0
      %1871 = vmatprep.subr.mxu0 0.0
      %1872 = vmatpush1.msra.mxu0 0.0
      %1873 = vmatprep.subr.mxu0 0.0
      %1874 = vmatpush1.msra.mxu0 0.0
      %1875 = vmatprep.subr.mxu0 0.0
      %1876 = vmatpush1.msra.mxu0 0.0
      %1877 = vmatprep.subr.mxu0 0.0
      %1878 = vmatpush1.msra.mxu0 0.0
      %1879 = vmatprep.subr.mxu0 0.0
      %1880 = vmatpush1.msra.mxu0 0.0
      %1881 = vmatprep.subr.mxu0 0.0
      %1882 = vmatpush1.msra.mxu0 0.0
      %1883 = vmatprep.subr.mxu0 0.0
      %1884 = vmatpush1.msra.mxu0 0.0
      %1885 = vmatprep.subr.mxu0 0.0
      %1886 = vmatpush1.msra.mxu0 0.0
      %1887 = vmatprep.subr.mxu0 0.0
      %1888 = vmatpush1.msra.mxu0 0.0
      %1889 = vmatprep.subr.mxu0 0.0
      %1890 = vmatpush1.msra.mxu0 0.0
      %1891 = vmatprep.subr.mxu0 0.0
      %1892 = vmatpush1.msra.mxu0 0.0
      %1893 = vmatprep.subr.mxu0 0.0
      %1894 = vmatpush1.msra.mxu0 0.0
      %1895 = vmatprep.subr.mxu0 0.0
      %1896 = vmatpush1.msra.mxu0 0.0
      %1897 = vmatprep.subr.mxu0 0.0
      %1898 = vmatpush1.msra.mxu0 0.0
      %1899 = vmatprep.subr.mxu0 0.0
      %1900 = vmatpush1.msra.mxu0 0.0
      %1901 = vmatprep.subr.mxu0 0.0
      %1902 = vmatpush1.msra.mxu0 0.0
      %1903 = vmatprep.subr.mxu0 0.0
      %1904 = vmatpush1.msra.mxu0 0.0
      %1905 = vmatprep.subr.mxu0 0.0
      %1906 = vmatpush1.msra.mxu0 0.0
      %1907 = vmatprep.subr.mxu0 0.0
      %1908 = vmatpush1.msra.mxu0 0.0
      %1909 = vmatprep.subr.mxu0 0.0
      %1910 = vmatpush1.msra.mxu0 0.0
      %1911 = vmatprep.subr.mxu0 0.0
      %1912 = vmatpush1.msra.mxu0 0.0
      %1913 = vmatprep.subr.mxu0 0.0
      %1914 = vmatpush1.msra.mxu0 0.0
      %1915 = vmatprep.subr.mxu0 0.0
      %1916 = vmatpush1.msra.mxu0 0.0
      %1917 = vmatprep.subr.mxu0 0.0
      %1918 = vmatpush1.msra.mxu0 0.0
      %1919 = vmatprep.subr.mxu0 0.0
      %1920 = vmatpush1.msra.mxu0 0.0
      %1921 = vmatprep.subr.mxu0 0.0
      %1922 = vmatpush1.msra.mxu0 0.0
      %1923 = vmatprep.subr.mxu0 0.0
      %1924 = vmatpush1.msra.mxu0 0.0
      %1925 = vmatprep.subr.mxu0 0.0
      %1926 = vmatpush1.msra.mxu0 0.0
      %1927 = vmatprep.subr.mxu0 0.0
      %1928 = vmatpush1.msra.mxu0 0.0
      %1929 = vmatprep.subr.mxu0 0.0
      %1930 = vmatpush1.msra.mxu0 0.0
      %1931 = vmatprep.mubr.f32.mxu0 0.0
      %v1932 = vand.u32 %v1450, 4294901760
      %1933 = vmatmul.mubr.f32.gmra.mrb[0].mxu0 %v1932
      %v1934 = vpop.f32.mrb[0].mxu0
      %v1935 = vadd.f32 %v1857, %v1934
      %v1936 = vpop.f32.mrb[0].mxu0
      %1937 = vmatprep.mubr.f32.mxu0 0.0
      %v1938 = vand.u32 %v1453, 4294901760
      %1939 = vmatmul.mubr.f32.gmra.mrb[0].mxu0 %v1938
      %v1940 = vpop.f32.mrb[0].mxu0
      %v1941 = vadd.f32 %v1863, %v1940
      %v1942 = vpop.f32.mrb[0].mxu0
      %1943 = vdwg.mxu0
      %1944 = vst [vmem:[#allocation3] sm:$0xff] %v1935
      %1945 = vst [vmem:[#allocation3 + $0x8] sm:$0xff] %v1941
    $region69: #{econv_forward.1} parent=1 // pred_fallthru
      _
    %s1946 = smul.u32 0, 24
    loop: start=0, step=1, limit=24
    $region70: #{econv_forward.1} parent=1 // loop_pre_header
      _
    $region71: #{econv_forward.1} parent=1 // loop_header
      %s1948 = sphi 0, %s1952
      %p1949 = scmp.ge.s32.totalorder %s1948, 24
    $region72: #{econv_forward.1} parent=1 // loop_header_branch
      %1951 = sbr.rel (%p1949) target = $region76
    $region73: #{econv_forward.1} parent=1 // loop_body
      %s1953 = sadd.s32 %s1946, %s1948
      %s1954 = sld [smem:[#allocation7 + %s1953]]
      %s1955 = sld [smem:[#allocation8 + %s1953]]
      %s1956 = scalar_lea.vmem [#allocation2], %s1954
      %v1957 = vld [vmem:[%s1956] sm:$0x1]
      %s1958 = scalar_lea.vmem [#allocation2], %s1955
      %v1959 = vld [vmem:[%s1958] sm:$0x1]
      %v1960 = vadd.f32 %v1957, %v1959
      %s1961 = scalar_lea.vmem [#allocation4], %s1948
      %1962 = vst [vmem:[%s1961] sm:$0x1] %v1960
      %s1963 = scalar_lea.vmem [#allocation3], %s1954
      %v1964 = vld [vmem:[%s1963] sm:$0x1]
      %s1965 = scalar_lea.vmem [#allocation3], %s1955
      %v1966 = vld [vmem:[%s1965] sm:$0x1]
      %v1967 = vadd.f32 %v1964, %v1966
      %s1968 = scalar_lea.vmem [#allocation5], %s1948
      %1969 = vst [vmem:[%s1968] sm:$0x1] %v1967
    $region74: #{econv_forward.1} parent=1 // loop_footer
      %s1952 = sadd.s32 1, %s1948
    $region75: #{econv_forward.1} parent=1 // loop_footer_branch
      %1947 = sbr.rel target = $region71
    $region76: #{econv_forward.1} parent=1 // loop_exit
      _
    %v1970 = vld [vmem:[%s6] sm:$0xff]
    %v1971 = vld [vmem:[%s6 + $0x8] sm:$0xff]
    %v1972 = vld [vmem:[%s6 + $0x10] sm:$0xff]
    %v1973 = vld [vmem:[%s2] sm:$0x1]
    %v1974 = vlaneseq
    %v1975 = vshrl.u32 %v1974, 7
    %v1976 = vsub.s32 0, %v1975
    %v1977 = vrot.slane %v1973, %v1976
    %v1978 = vmul.f32 %v1977, %v1970
    %v1979 = vmul.f32 %v1977, %v1971
    %v1980 = vmul.f32 %v1977, %v1972
    %v1981 = vld [vmem:[%s2 + $0x1] sm:$0x1]
    %v1982 = vlaneseq
    %v1983 = vshrl.u32 %v1982, 7
    %v1984 = vsub.s32 0, %v1983
    %v1985 = vrot.slane %v1981, %v1984
    %v1986 = vmul.f32 %v1985, %v1970
    %v1987 = vmul.f32 %v1985, %v1971
    %v1988 = vmul.f32 %v1985, %v1972
    %v1989 = vld [vmem:[#allocation4] sm:$0xff]
    %v1990 = vld [vmem:[#allocation4 + $0x8] sm:$0xff]
    %v1991 = vld [vmem:[#allocation4 + $0x10] sm:$0xff]
    %v1992 = vadd.f32 %v1989, %v1978
    %v1993 = vadd.f32 %v1990, %v1979
    %v1994 = vadd.f32 %v1991, %v1980
    %v1995 = vld [vmem:[%s11] sm:$0xff]
    %v1996 = vld [vmem:[%s11 + $0x8] sm:$0xff]
    %v1997 = vld [vmem:[%s11 + $0x10] sm:$0xff]
    %v1998 = vld [vmem:[%s11 + $0x18] sm:$0xff]
    %v1999 = vld [vmem:[%s11 + $0x20] sm:$0xff]
    %v2000 = vld [vmem:[%s11 + $0x28] sm:$0xff]
    %v2001 = vld [vmem:[%s11 + $0x30] sm:$0xff]
    %v2002 = vld [vmem:[%s11 + $0x38] sm:$0xff]
    %v2003 = vld [vmem:[%s11 + $0x40] sm:$0xff]
    %v2004 = vld [vmem:[%s11 + $0x48] sm:$0xff]
    %v2005 = vld [vmem:[%s11 + $0x50] sm:$0xff]
    %v2006 = vld [vmem:[%s11 + $0x58] sm:$0xff]
    %v2007 = vld [vmem:[%s11 + $0x60] sm:$0xff]
    %v2008 = vld [vmem:[%s11 + $0x68] sm:$0xff]
    %v2009 = vld [vmem:[%s11 + $0x70] sm:$0xff]
    %v2010 = vld [vmem:[%s11 + $0x78] sm:$0xff]
    %v2011 = vld [vmem:[%s12] sm:$0x1]
    %v2013 = vlaneseq
    %v2014 = vshrl.u32 %v2013, 7
    %v2015 = vsub.s32 0, %v2014
    %v2016 = vrot.slane %v2011, %v2015
    %2018 = vmatprep.subr.mxu0 0.0
    %v2019 = vand.u32 %v1995, 4294901760
    %2020 = vmatpush1.msra.mxu0 %v2019
    %2021 = vmatprep.subr.mxu0 0.0
    %v2022 = vand.u32 %v1996, 4294901760
    %2023 = vmatpush1.msra.mxu0 %v2022
    %2024 = vmatprep.subr.mxu0 0.0
    %v2025 = vand.u32 %v1997, 4294901760
    %2026 = vmatpush1.msra.mxu0 %v2025
    %2027 = vmatprep.subr.mxu0 0.0
    %v2028 = vand.u32 %v1998, 4294901760
    %2029 = vmatpush1.msra.mxu0 %v2028
    %2030 = vmatprep.subr.mxu0 0.0
    %v2031 = vand.u32 %v1999, 4294901760
    %2032 = vmatpush1.msra.mxu0 %v2031
    %2033 = vmatprep.subr.mxu0 0.0
    %v2034 = vand.u32 %v2000, 4294901760
    %2035 = vmatpush1.msra.mxu0 %v2034
    %2036 = vmatprep.subr.mxu0 0.0
    %v2037 = vand.u32 %v2001, 4294901760
    %2038 = vmatpush1.msra.mxu0 %v2037
    %2039 = vmatprep.subr.mxu0 0.0
    %v2040 = vand.u32 %v2002, 4294901760
    %2041 = vmatpush1.msra.mxu0 %v2040
    %2042 = vmatprep.subr.mxu0 0.0
    %v2043 = vand.u32 %v2003, 4294901760
    %2044 = vmatpush1.msra.mxu0 %v2043
    %2045 = vmatprep.subr.mxu0 0.0
    %v2046 = vand.u32 %v2004, 4294901760
    %2047 = vmatpush1.msra.mxu0 %v2046
    %2048 = vmatprep.subr.mxu0 0.0
    %v2049 = vand.u32 %v2005, 4294901760
    %2050 = vmatpush1.msra.mxu0 %v2049
    %2051 = vmatprep.subr.mxu0 0.0
    %v2052 = vand.u32 %v2006, 4294901760
    %2053 = vmatpush1.msra.mxu0 %v2052
    %2054 = vmatprep.subr.mxu0 0.0
    %v2055 = vand.u32 %v2007, 4294901760
    %2056 = vmatpush1.msra.mxu0 %v2055
    %2057 = vmatprep.subr.mxu0 0.0
    %v2058 = vand.u32 %v2008, 4294901760
    %2059 = vmatpush1.msra.mxu0 %v2058
    %2060 = vmatprep.subr.mxu0 0.0
    %v2061 = vand.u32 %v2009, 4294901760
    %2062 = vmatpush1.msra.mxu0 %v2061
    %2063 = vmatprep.subr.mxu0 0.0
    %v2064 = vand.u32 %v2010, 4294901760
    %2065 = vmatpush1.msra.mxu0 %v2064
    %2066 = vmatprep.subr.mxu0 0.0
    %2067 = vmatpush1.msra.mxu0 0.0
    %2068 = vmatprep.subr.mxu0 0.0
    %2069 = vmatpush1.msra.mxu0 0.0
    %2070 = vmatprep.subr.mxu0 0.0
    %2071 = vmatpush1.msra.mxu0 0.0
    %2072 = vmatprep.subr.mxu0 0.0
    %2073 = vmatpush1.msra.mxu0 0.0
    %2074 = vmatprep.subr.mxu0 0.0
    %2075 = vmatpush1.msra.mxu0 0.0
    %2076 = vmatprep.subr.mxu0 0.0
    %2077 = vmatpush1.msra.mxu0 0.0
    %2078 = vmatprep.subr.mxu0 0.0
    %2079 = vmatpush1.msra.mxu0 0.0
    %2080 = vmatprep.subr.mxu0 0.0
    %2081 = vmatpush1.msra.mxu0 0.0
    %2082 = vmatprep.subr.mxu0 0.0
    %2083 = vmatpush1.msra.mxu0 0.0
    %2084 = vmatprep.subr.mxu0 0.0
    %2085 = vmatpush1.msra.mxu0 0.0
    %2086 = vmatprep.subr.mxu0 0.0
    %2087 = vmatpush1.msra.mxu0 0.0
    %2088 = vmatprep.subr.mxu0 0.0
    %2089 = vmatpush1.msra.mxu0 0.0
    %2090 = vmatprep.subr.mxu0 0.0
    %2091 = vmatpush1.msra.mxu0 0.0
    %2092 = vmatprep.subr.mxu0 0.0
    %2093 = vmatpush1.msra.mxu0 0.0
    %2094 = vmatprep.subr.mxu0 0.0
    %2095 = vmatpush1.msra.mxu0 0.0
    %2096 = vmatprep.subr.mxu0 0.0
    %2097 = vmatpush1.msra.mxu0 0.0
    %2098 = vmatprep.mubr.f32.mxu0 0.0
    %v2099 = vand.u32 %v1992, 4294901760
    %v2100 = vsub.f32 %v1992, %v2099
    %v2101 = vand.u32 %v2100, 4294901760
    %v2102 = vsub.f32 %v2100, %v2101
    %v2103 = vand.u32 %v2102, 4294901760
    %2104 = vmatmul.mubr.f32.gmra.mrb[0].mxu0 %v2103
    %v2105 = vpop.f32.mrb[0].mxu0
    %v2106 = vadd.f32 %v2016, %v2105
    %v2107 = vpop.f32.mrb[0].mxu0
    %2108 = vmatprep.mubr.f32.mxu0 0.0
    %v2109 = vand.u32 %v1993, 4294901760
    %v2110 = vsub.f32 %v1993, %v2109
    %v2111 = vand.u32 %v2110, 4294901760
    %v2112 = vsub.f32 %v2110, %v2111
    %v2113 = vand.u32 %v2112, 4294901760
    %2114 = vmatmul.mubr.f32.gmra.mrb[0].mxu0 %v2113
    %v2115 = vpop.f32.mrb[0].mxu0
    %v2116 = vadd.f32 %v2016, %v2115
    %v2117 = vpop.f32.mrb[0].mxu0
    %2118 = vmatprep.mubr.f32.mxu0 0.0
    %v2119 = vand.u32 %v1994, 4294901760
    %v2120 = vsub.f32 %v1994, %v2119
    %v2121 = vand.u32 %v2120, 4294901760
    %v2122 = vsub.f32 %v2120, %v2121
    %v2123 = vand.u32 %v2122, 4294901760
    %2124 = vmatmul.mubr.f32.gmra.mrb[0].mxu0 %v2123
    %v2125 = vpop.f32.mrb[0].mxu0
    %v2126 = vadd.f32 %v2016, %v2125
    %v2127 = vpop.f32.mrb[0].mxu0
    %2128 = vdwg.mxu0
    %2129 = vmatprep.subr.mxu0 0.0
    %v2130 = vand.u32 %v1995, 4294901760
    %v2131 = vsub.f32 %v1995, %v2130
    %v2132 = vand.u32 %v2131, 4294901760
    %v2133 = vsub.f32 %v2131, %v2132
    %v2134 = vand.u32 %v2133, 4294901760
    %2135 = vmatpush1.msra.mxu0 %v2134
    %2136 = vmatprep.subr.mxu0 0.0
    %v2137 = vand.u32 %v1996, 4294901760
    %v2138 = vsub.f32 %v1996, %v2137
    %v2139 = vand.u32 %v2138, 4294901760
    %v2140 = vsub.f32 %v2138, %v2139
    %v2141 = vand.u32 %v2140, 4294901760
    %2142 = vmatpush1.msra.mxu0 %v2141
    %2143 = vmatprep.subr.mxu0 0.0
    %v2144 = vand.u32 %v1997, 4294901760
    %v2145 = vsub.f32 %v1997, %v2144
    %v2146 = vand.u32 %v2145, 4294901760
    %v2147 = vsub.f32 %v2145, %v2146
    %v2148 = vand.u32 %v2147, 4294901760
    %2149 = vmatpush1.msra.mxu0 %v2148
    %2150 = vmatprep.subr.mxu0 0.0
    %v2151 = vand.u32 %v1998, 4294901760
    %v2152 = vsub.f32 %v1998, %v2151
    %v2153 = vand.u32 %v2152, 4294901760
    %v2154 = vsub.f32 %v2152, %v2153
    %v2155 = vand.u32 %v2154, 4294901760
    %2156 = vmatpush1.msra.mxu0 %v2155
    %2157 = vmatprep.subr.mxu0 0.0
    %v2158 = vand.u32 %v1999, 4294901760
    %v2159 = vsub.f32 %v1999, %v2158
    %v2160 = vand.u32 %v2159, 4294901760
    %v2161 = vsub.f32 %v2159, %v2160
    %v2162 = vand.u32 %v2161, 4294901760
    %2163 = vmatpush1.msra.mxu0 %v2162
    %2164 = vmatprep.subr.mxu0 0.0
    %v2165 = vand.u32 %v2000, 4294901760
    %v2166 = vsub.f32 %v2000, %v2165
    %v2167 = vand.u32 %v2166, 4294901760
    %v2168 = vsub.f32 %v2166, %v2167
    %v2169 = vand.u32 %v2168, 4294901760
    %2170 = vmatpush1.msra.mxu0 %v2169
    %2171 = vmatprep.subr.mxu0 0.0
    %v2172 = vand.u32 %v2001, 4294901760
    %v2173 = vsub.f32 %v2001, %v2172
    %v2174 = vand.u32 %v2173, 4294901760
    %v2175 = vsub.f32 %v2173, %v2174
    %v2176 = vand.u32 %v2175, 4294901760
    %2177 = vmatpush1.msra.mxu0 %v2176
    %2178 = vmatprep.subr.mxu0 0.0
    %v2179 = vand.u32 %v2002, 4294901760
    %v2180 = vsub.f32 %v2002, %v2179
    %v2181 = vand.u32 %v2180, 4294901760
    %v2182 = vsub.f32 %v2180, %v2181
    %v2183 = vand.u32 %v2182, 4294901760
    %2184 = vmatpush1.msra.mxu0 %v2183
    %2185 = vmatprep.subr.mxu0 0.0
    %v2186 = vand.u32 %v2003, 4294901760
    %v2187 = vsub.f32 %v2003, %v2186
    %v2188 = vand.u32 %v2187, 4294901760
    %v2189 = vsub.f32 %v2187, %v2188
    %v2190 = vand.u32 %v2189, 4294901760
    %2191 = vmatpush1.msra.mxu0 %v2190
    %2192 = vmatprep.subr.mxu0 0.0
    %v2193 = vand.u32 %v2004, 4294901760
    %v2194 = vsub.f32 %v2004, %v2193
    %v2195 = vand.u32 %v2194, 4294901760
    %v2196 = vsub.f32 %v2194, %v2195
    %v2197 = vand.u32 %v2196, 4294901760
    %2198 = vmatpush1.msra.mxu0 %v2197
    %2199 = vmatprep.subr.mxu0 0.0
    %v2200 = vand.u32 %v2005, 4294901760
    %v2201 = vsub.f32 %v2005, %v2200
    %v2202 = vand.u32 %v2201, 4294901760
    %v2203 = vsub.f32 %v2201, %v2202
    %v2204 = vand.u32 %v2203, 4294901760
    %2205 = vmatpush1.msra.mxu0 %v2204
    %2206 = vmatprep.subr.mxu0 0.0
    %v2207 = vand.u32 %v2006, 4294901760
    %v2208 = vsub.f32 %v2006, %v2207
    %v2209 = vand.u32 %v2208, 4294901760
    %v2210 = vsub.f32 %v2208, %v2209
    %v2211 = vand.u32 %v2210, 4294901760
    %2212 = vmatpush1.msra.mxu0 %v2211
    %2213 = vmatprep.subr.mxu0 0.0
    %v2214 = vand.u32 %v2007, 4294901760
    %v2215 = vsub.f32 %v2007, %v2214
    %v2216 = vand.u32 %v2215, 4294901760
    %v2217 = vsub.f32 %v2215, %v2216
    %v2218 = vand.u32 %v2217, 4294901760
    %2219 = vmatpush1.msra.mxu0 %v2218
    %2220 = vmatprep.subr.mxu0 0.0
    %v2221 = vand.u32 %v2008, 4294901760
    %v2222 = vsub.f32 %v2008, %v2221
    %v2223 = vand.u32 %v2222, 4294901760
    %v2224 = vsub.f32 %v2222, %v2223
    %v2225 = vand.u32 %v2224, 4294901760
    %2226 = vmatpush1.msra.mxu0 %v2225
    %2227 = vmatprep.subr.mxu0 0.0
    %v2228 = vand.u32 %v2009, 4294901760
    %v2229 = vsub.f32 %v2009, %v2228
    %v2230 = vand.u32 %v2229, 4294901760
    %v2231 = vsub.f32 %v2229, %v2230
    %v2232 = vand.u32 %v2231, 4294901760
    %2233 = vmatpush1.msra.mxu0 %v2232
    %2234 = vmatprep.subr.mxu0 0.0
    %v2235 = vand.u32 %v2010, 4294901760
    %v2236 = vsub.f32 %v2010, %v2235
    %v2237 = vand.u32 %v2236, 4294901760
    %v2238 = vsub.f32 %v2236, %v2237
    %v2239 = vand.u32 %v2238, 4294901760
    %2240 = vmatpush1.msra.mxu0 %v2239
    %2241 = vmatprep.subr.mxu0 0.0
    %2242 = vmatpush1.msra.mxu0 0.0
    %2243 = vmatprep.subr.mxu0 0.0
    %2244 = vmatpush1.msra.mxu0 0.0
    %2245 = vmatprep.subr.mxu0 0.0
    %2246 = vmatpush1.msra.mxu0 0.0
    %2247 = vmatprep.subr.mxu0 0.0
    %2248 = vmatpush1.msra.mxu0 0.0
    %2249 = vmatprep.subr.mxu0 0.0
    %2250 = vmatpush1.msra.mxu0 0.0
    %2251 = vmatprep.subr.mxu0 0.0
    %2252 = vmatpush1.msra.mxu0 0.0
    %2253 = vmatprep.subr.mxu0 0.0
    %2254 = vmatpush1.msra.mxu0 0.0
    %2255 = vmatprep.subr.mxu0 0.0
    %2256 = vmatpush1.msra.mxu0 0.0
    %2257 = vmatprep.subr.mxu0 0.0
    %2258 = vmatpush1.msra.mxu0 0.0
    %2259 = vmatprep.subr.mxu0 0.0
    %2260 = vmatpush1.msra.mxu0 0.0
    %2261 = vmatprep.subr.mxu0 0.0
    %2262 = vmatpush1.msra.mxu0 0.0
    %2263 = vmatprep.subr.mxu0 0.0
    %2264 = vmatpush1.msra.mxu0 0.0
    %2265 = vmatprep.subr.mxu0 0.0
    %2266 = vmatpush1.msra.mxu0 0.0
    %2267 = vmatprep.subr.mxu0 0.0
    %2268 = vmatpush1.msra.mxu0 0.0
    %2269 = vmatprep.subr.mxu0 0.0
    %2270 = vmatpush1.msra.mxu0 0.0
    %2271 = vmatprep.subr.mxu0 0.0
    %2272 = vmatpush1.msra.mxu0 0.0
    %2273 = vmatprep.mubr.f32.mxu0 0.0
    %v2274 = vand.u32 %v1992, 4294901760
    %2275 = vmatmul.mubr.f32.gmra.mrb[0].mxu0 %v2274
    %v2276 = vpop.f32.mrb[0].mxu0
    %v2277 = vadd.f32 %v2106, %v2276
    %v2278 = vpop.f32.mrb[0].mxu0
    %2279 = vmatprep.mubr.f32.mxu0 0.0
    %v2280 = vand.u32 %v1993, 4294901760
    %2281 = vmatmul.mubr.f32.gmra.mrb[0].mxu0 %v2280
    %v2282 = vpop.f32.mrb[0].mxu0
    %v2283 = vadd.f32 %v2116, %v2282
    %v2284 = vpop.f32.mrb[0].mxu0
    %2285 = vmatprep.mubr.f32.mxu0 0.0
    %v2286 = vand.u32 %v1994, 4294901760
    %2287 = vmatmul.mubr.f32.gmra.mrb[0].mxu0 %v2286
    %v2288 = vpop.f32.mrb[0].mxu0
    %v2289 = vadd.f32 %v2126, %v2288
    %v2290 = vpop.f32.mrb[0].mxu0
    %2291 = vdwg.mxu0
    %2292 = vmatprep.subr.mxu0 0.0
    %v2293 = vand.u32 %v1995, 4294901760
    %v2294 = vsub.f32 %v1995, %v2293
    %2295 = vmatpush1.msra.mxu0 %v2294
    %2296 = vmatprep.subr.mxu0 0.0
    %v2297 = vand.u32 %v1996, 4294901760
    %v2298 = vsub.f32 %v1996, %v2297
    %2299 = vmatpush1.msra.mxu0 %v2298
    %2300 = vmatprep.subr.mxu0 0.0
    %v2301 = vand.u32 %v1997, 4294901760
    %v2302 = vsub.f32 %v1997, %v2301
    %2303 = vmatpush1.msra.mxu0 %v2302
    %2304 = vmatprep.subr.mxu0 0.0
    %v2305 = vand.u32 %v1998, 4294901760
    %v2306 = vsub.f32 %v1998, %v2305
    %2307 = vmatpush1.msra.mxu0 %v2306
    %2308 = vmatprep.subr.mxu0 0.0
    %v2309 = vand.u32 %v1999, 4294901760
    %v2310 = vsub.f32 %v1999, %v2309
    %2311 = vmatpush1.msra.mxu0 %v2310
    %2312 = vmatprep.subr.mxu0 0.0
    %v2313 = vand.u32 %v2000, 4294901760
    %v2314 = vsub.f32 %v2000, %v2313
    %2315 = vmatpush1.msra.mxu0 %v2314
    %2316 = vmatprep.subr.mxu0 0.0
    %v2317 = vand.u32 %v2001, 4294901760
    %v2318 = vsub.f32 %v2001, %v2317
    %2319 = vmatpush1.msra.mxu0 %v2318
    %2320 = vmatprep.subr.mxu0 0.0
    %v2321 = vand.u32 %v2002, 4294901760
    %v2322 = vsub.f32 %v2002, %v2321
    %2323 = vmatpush1.msra.mxu0 %v2322
    %2324 = vmatprep.subr.mxu0 0.0
    %v2325 = vand.u32 %v2003, 4294901760
    %v2326 = vsub.f32 %v2003, %v2325
    %2327 = vmatpush1.msra.mxu0 %v2326
    %2328 = vmatprep.subr.mxu0 0.0
    %v2329 = vand.u32 %v2004, 4294901760
    %v2330 = vsub.f32 %v2004, %v2329
    %2331 = vmatpush1.msra.mxu0 %v2330
    %2332 = vmatprep.subr.mxu0 0.0
    %v2333 = vand.u32 %v2005, 4294901760
    %v2334 = vsub.f32 %v2005, %v2333
    %2335 = vmatpush1.msra.mxu0 %v2334
    %2336 = vmatprep.subr.mxu0 0.0
    %v2337 = vand.u32 %v2006, 4294901760
    %v2338 = vsub.f32 %v2006, %v2337
    %2339 = vmatpush1.msra.mxu0 %v2338
    %2340 = vmatprep.subr.mxu0 0.0
    %v2341 = vand.u32 %v2007, 4294901760
    %v2342 = vsub.f32 %v2007, %v2341
    %2343 = vmatpush1.msra.mxu0 %v2342
    %2344 = vmatprep.subr.mxu0 0.0
    %v2345 = vand.u32 %v2008, 4294901760
    %v2346 = vsub.f32 %v2008, %v2345
    %2347 = vmatpush1.msra.mxu0 %v2346
    %2348 = vmatprep.subr.mxu0 0.0
    %v2349 = vand.u32 %v2009, 4294901760
    %v2350 = vsub.f32 %v2009, %v2349
    %2351 = vmatpush1.msra.mxu0 %v2350
    %2352 = vmatprep.subr.mxu0 0.0
    %v2353 = vand.u32 %v2010, 4294901760
    %v2354 = vsub.f32 %v2010, %v2353
    %2355 = vmatpush1.msra.mxu0 %v2354
    %2356 = vmatprep.subr.mxu0 0.0
    %2357 = vmatpush1.msra.mxu0 0.0
    %2358 = vmatprep.subr.mxu0 0.0
    %2359 = vmatpush1.msra.mxu0 0.0
    %2360 = vmatprep.subr.mxu0 0.0
    %2361 = vmatpush1.msra.mxu0 0.0
    %2362 = vmatprep.subr.mxu0 0.0
    %2363 = vmatpush1.msra.mxu0 0.0
    %2364 = vmatprep.subr.mxu0 0.0
    %2365 = vmatpush1.msra.mxu0 0.0
    %2366 = vmatprep.subr.mxu0 0.0
    %2367 = vmatpush1.msra.mxu0 0.0
    %2368 = vmatprep.subr.mxu0 0.0
    %2369 = vmatpush1.msra.mxu0 0.0
    %2370 = vmatprep.subr.mxu0 0.0
    %2371 = vmatpush1.msra.mxu0 0.0
    %2372 = vmatprep.subr.mxu0 0.0
    %2373 = vmatpush1.msra.mxu0 0.0
    %2374 = vmatprep.subr.mxu0 0.0
    %2375 = vmatpush1.msra.mxu0 0.0
    %2376 = vmatprep.subr.mxu0 0.0
    %2377 = vmatpush1.msra.mxu0 0.0
    %2378 = vmatprep.subr.mxu0 0.0
    %2379 = vmatpush1.msra.mxu0 0.0
    %2380 = vmatprep.subr.mxu0 0.0
    %2381 = vmatpush1.msra.mxu0 0.0
    %2382 = vmatprep.subr.mxu0 0.0
    %2383 = vmatpush1.msra.mxu0 0.0
    %2384 = vmatprep.subr.mxu0 0.0
    %2385 = vmatpush1.msra.mxu0 0.0
    %2386 = vmatprep.subr.mxu0 0.0
    %2387 = vmatpush1.msra.mxu0 0.0
    %2388 = vmatprep.mubr.f32.mxu0 0.0
    %v2389 = vand.u32 %v1992, 4294901760
    %v2390 = vsub.f32 %v1992, %v2389
    %2391 = vmatmul.mubr.f32.gmra.mrb[0].mxu0 %v2390
    %v2392 = vpop.f32.mrb[0].mxu0
    %v2393 = vadd.f32 %v2277, %v2392
    %v2394 = vpop.f32.mrb[0].mxu0
    %2395 = vmatprep.mubr.f32.mxu0 0.0
    %v2396 = vand.u32 %v1993, 4294901760
    %v2397 = vsub.f32 %v1993, %v2396
    %2398 = vmatmul.mubr.f32.gmra.mrb[0].mxu0 %v2397
    %v2399 = vpop.f32.mrb[0].mxu0
    %v2400 = vadd.f32 %v2283, %v2399
    %v2401 = vpop.f32.mrb[0].mxu0
    %2402 = vmatprep.mubr.f32.mxu0 0.0
    %v2403 = vand.u32 %v1994, 4294901760
    %v2404 = vsub.f32 %v1994, %v2403
    %2405 = vmatmul.mubr.f32.gmra.mrb[0].mxu0 %v2404
    %v2406 = vpop.f32.mrb[0].mxu0
    %v2407 = vadd.f32 %v2289, %v2406
    %v2408 = vpop.f32.mrb[0].mxu0
    %2409 = vdwg.mxu0
    %2410 = vmatprep.subr.mxu0 0.0
    %v2411 = vand.u32 %v1995, 4294901760
    %2412 = vmatpush1.msra.mxu0 %v2411
    %2413 = vmatprep.subr.mxu0 0.0
    %v2414 = vand.u32 %v1996, 4294901760
    %2415 = vmatpush1.msra.mxu0 %v2414
    %2416 = vmatprep.subr.mxu0 0.0
    %v2417 = vand.u32 %v1997, 4294901760
    %2418 = vmatpush1.msra.mxu0 %v2417
    %2419 = vmatprep.subr.mxu0 0.0
    %v2420 = vand.u32 %v1998, 4294901760
    %2421 = vmatpush1.msra.mxu0 %v2420
    %2422 = vmatprep.subr.mxu0 0.0
    %v2423 = vand.u32 %v1999, 4294901760
    %2424 = vmatpush1.msra.mxu0 %v2423
    %2425 = vmatprep.subr.mxu0 0.0
    %v2426 = vand.u32 %v2000, 4294901760
    %2427 = vmatpush1.msra.mxu0 %v2426
    %2428 = vmatprep.subr.mxu0 0.0
    %v2429 = vand.u32 %v2001, 4294901760
    %2430 = vmatpush1.msra.mxu0 %v2429
    %2431 = vmatprep.subr.mxu0 0.0
    %v2432 = vand.u32 %v2002, 4294901760
    %2433 = vmatpush1.msra.mxu0 %v2432
    %2434 = vmatprep.subr.mxu0 0.0
    %v2435 = vand.u32 %v2003, 4294901760
    %2436 = vmatpush1.msra.mxu0 %v2435
    %2437 = vmatprep.subr.mxu0 0.0
    %v2438 = vand.u32 %v2004, 4294901760
    %2439 = vmatpush1.msra.mxu0 %v2438
    %2440 = vmatprep.subr.mxu0 0.0
    %v2441 = vand.u32 %v2005, 4294901760
    %2442 = vmatpush1.msra.mxu0 %v2441
    %2443 = vmatprep.subr.mxu0 0.0
    %v2444 = vand.u32 %v2006, 4294901760
    %2445 = vmatpush1.msra.mxu0 %v2444
    %2446 = vmatprep.subr.mxu0 0.0
    %v2447 = vand.u32 %v2007, 4294901760
    %2448 = vmatpush1.msra.mxu0 %v2447
    %2449 = vmatprep.subr.mxu0 0.0
    %v2450 = vand.u32 %v2008, 4294901760
    %2451 = vmatpush1.msra.mxu0 %v2450
    %2452 = vmatprep.subr.mxu0 0.0
    %v2453 = vand.u32 %v2009, 4294901760
    %2454 = vmatpush1.msra.mxu0 %v2453
    %2455 = vmatprep.subr.mxu0 0.0
    %v2456 = vand.u32 %v2010, 4294901760
    %2457 = vmatpush1.msra.mxu0 %v2456
    %2458 = vmatprep.subr.mxu0 0.0
    %2459 = vmatpush1.msra.mxu0 0.0
    %2460 = vmatprep.subr.mxu0 0.0
    %2461 = vmatpush1.msra.mxu0 0.0
    %2462 = vmatprep.subr.mxu0 0.0
    %2463 = vmatpush1.msra.mxu0 0.0
    %2464 = vmatprep.subr.mxu0 0.0
    %2465 = vmatpush1.msra.mxu0 0.0
    %2466 = vmatprep.subr.mxu0 0.0
    %2467 = vmatpush1.msra.mxu0 0.0
    %2468 = vmatprep.subr.mxu0 0.0
    %2469 = vmatpush1.msra.mxu0 0.0
    %2470 = vmatprep.subr.mxu0 0.0
    %2471 = vmatpush1.msra.mxu0 0.0
    %2472 = vmatprep.subr.mxu0 0.0
    %2473 = vmatpush1.msra.mxu0 0.0
    %2474 = vmatprep.subr.mxu0 0.0
    %2475 = vmatpush1.msra.mxu0 0.0
    %2476 = vmatprep.subr.mxu0 0.0
    %2477 = vmatpush1.msra.mxu0 0.0
    %2478 = vmatprep.subr.mxu0 0.0
    %2479 = vmatpush1.msra.mxu0 0.0
    %2480 = vmatprep.subr.mxu0 0.0
    %2481 = vmatpush1.msra.mxu0 0.0
    %2482 = vmatprep.subr.mxu0 0.0
    %2483 = vmatpush1.msra.mxu0 0.0
    %2484 = vmatprep.subr.mxu0 0.0
    %2485 = vmatpush1.msra.mxu0 0.0
    %2486 = vmatprep.subr.mxu0 0.0
    %2487 = vmatpush1.msra.mxu0 0.0
    %2488 = vmatprep.subr.mxu0 0.0
    %2489 = vmatpush1.msra.mxu0 0.0
    %2490 = vmatprep.mubr.f32.mxu0 0.0
    %v2491 = vand.u32 %v1992, 4294901760
    %v2492 = vsub.f32 %v1992, %v2491
    %v2493 = vand.u32 %v2492, 4294901760
    %2494 = vmatmul.mubr.f32.gmra.mrb[0].mxu0 %v2493
    %v2495 = vpop.f32.mrb[0].mxu0
    %v2496 = vadd.f32 %v2393, %v2495
    %v2497 = vpop.f32.mrb[0].mxu0
    %2498 = vmatprep.mubr.f32.mxu0 0.0
    %v2499 = vand.u32 %v1993, 4294901760
    %v2500 = vsub.f32 %v1993, %v2499
    %v2501 = vand.u32 %v2500, 4294901760
    %2502 = vmatmul.mubr.f32.gmra.mrb[0].mxu0 %v2501
    %v2503 = vpop.f32.mrb[0].mxu0
    %v2504 = vadd.f32 %v2400, %v2503
    %v2505 = vpop.f32.mrb[0].mxu0
    %2506 = vmatprep.mubr.f32.mxu0 0.0
    %v2507 = vand.u32 %v1994, 4294901760
    %v2508 = vsub.f32 %v1994, %v2507
    %v2509 = vand.u32 %v2508, 4294901760
    %2510 = vmatmul.mubr.f32.gmra.mrb[0].mxu0 %v2509
    %v2511 = vpop.f32.mrb[0].mxu0
    %v2512 = vadd.f32 %v2407, %v2511
    %v2513 = vpop.f32.mrb[0].mxu0
    %2514 = vdwg.mxu0
    %2515 = vmatprep.subr.mxu0 0.0
    %v2516 = vand.u32 %v1995, 4294901760
    %v2517 = vsub.f32 %v1995, %v2516
    %v2518 = vand.u32 %v2517, 4294901760
    %2519 = vmatpush1.msra.mxu0 %v2518
    %2520 = vmatprep.subr.mxu0 0.0
    %v2521 = vand.u32 %v1996, 4294901760
    %v2522 = vsub.f32 %v1996, %v2521
    %v2523 = vand.u32 %v2522, 4294901760
    %2524 = vmatpush1.msra.mxu0 %v2523
    %2525 = vmatprep.subr.mxu0 0.0
    %v2526 = vand.u32 %v1997, 4294901760
    %v2527 = vsub.f32 %v1997, %v2526
    %v2528 = vand.u32 %v2527, 4294901760
    %2529 = vmatpush1.msra.mxu0 %v2528
    %2530 = vmatprep.subr.mxu0 0.0
    %v2531 = vand.u32 %v1998, 4294901760
    %v2532 = vsub.f32 %v1998, %v2531
    %v2533 = vand.u32 %v2532, 4294901760
    %2534 = vmatpush1.msra.mxu0 %v2533
    %2535 = vmatprep.subr.mxu0 0.0
    %v2536 = vand.u32 %v1999, 4294901760
    %v2537 = vsub.f32 %v1999, %v2536
    %v2538 = vand.u32 %v2537, 4294901760
    %2539 = vmatpush1.msra.mxu0 %v2538
    %2540 = vmatprep.subr.mxu0 0.0
    %v2541 = vand.u32 %v2000, 4294901760
    %v2542 = vsub.f32 %v2000, %v2541
    %v2543 = vand.u32 %v2542, 4294901760
    %2544 = vmatpush1.msra.mxu0 %v2543
    %2545 = vmatprep.subr.mxu0 0.0
    %v2546 = vand.u32 %v2001, 4294901760
    %v2547 = vsub.f32 %v2001, %v2546
    %v2548 = vand.u32 %v2547, 4294901760
    %2549 = vmatpush1.msra.mxu0 %v2548
    %2550 = vmatprep.subr.mxu0 0.0
    %v2551 = vand.u32 %v2002, 4294901760
    %v2552 = vsub.f32 %v2002, %v2551
    %v2553 = vand.u32 %v2552, 4294901760
    %2554 = vmatpush1.msra.mxu0 %v2553
    %2555 = vmatprep.subr.mxu0 0.0
    %v2556 = vand.u32 %v2003, 4294901760
    %v2557 = vsub.f32 %v2003, %v2556
    %v2558 = vand.u32 %v2557, 4294901760
    %2559 = vmatpush1.msra.mxu0 %v2558
    %2560 = vmatprep.subr.mxu0 0.0
    %v2561 = vand.u32 %v2004, 4294901760
    %v2562 = vsub.f32 %v2004, %v2561
    %v2563 = vand.u32 %v2562, 4294901760
    %2564 = vmatpush1.msra.mxu0 %v2563
    %2565 = vmatprep.subr.mxu0 0.0
    %v2566 = vand.u32 %v2005, 4294901760
    %v2567 = vsub.f32 %v2005, %v2566
    %v2568 = vand.u32 %v2567, 4294901760
    %2569 = vmatpush1.msra.mxu0 %v2568
    %2570 = vmatprep.subr.mxu0 0.0
    %v2571 = vand.u32 %v2006, 4294901760
    %v2572 = vsub.f32 %v2006, %v2571
    %v2573 = vand.u32 %v2572, 4294901760
    %2574 = vmatpush1.msra.mxu0 %v2573
    %2575 = vmatprep.subr.mxu0 0.0
    %v2576 = vand.u32 %v2007, 4294901760
    %v2577 = vsub.f32 %v2007, %v2576
    %v2578 = vand.u32 %v2577, 4294901760
    %2579 = vmatpush1.msra.mxu0 %v2578
    %2580 = vmatprep.subr.mxu0 0.0
    %v2581 = vand.u32 %v2008, 4294901760
    %v2582 = vsub.f32 %v2008, %v2581
    %v2583 = vand.u32 %v2582, 4294901760
    %2584 = vmatpush1.msra.mxu0 %v2583
    %2585 = vmatprep.subr.mxu0 0.0
    %v2586 = vand.u32 %v2009, 4294901760
    %v2587 = vsub.f32 %v2009, %v2586
    %v2588 = vand.u32 %v2587, 4294901760
    %2589 = vmatpush1.msra.mxu0 %v2588
    %2590 = vmatprep.subr.mxu0 0.0
    %v2591 = vand.u32 %v2010, 4294901760
    %v2592 = vsub.f32 %v2010, %v2591
    %v2593 = vand.u32 %v2592, 4294901760
    %2594 = vmatpush1.msra.mxu0 %v2593
    %2595 = vmatprep.subr.mxu0 0.0
    %2596 = vmatpush1.msra.mxu0 0.0
    %2597 = vmatprep.subr.mxu0 0.0
    %2598 = vmatpush1.msra.mxu0 0.0
    %2599 = vmatprep.subr.mxu0 0.0
    %2600 = vmatpush1.msra.mxu0 0.0
    %2601 = vmatprep.subr.mxu0 0.0
    %2602 = vmatpush1.msra.mxu0 0.0
    %2603 = vmatprep.subr.mxu0 0.0
    %2604 = vmatpush1.msra.mxu0 0.0
    %2605 = vmatprep.subr.mxu0 0.0
    %2606 = vmatpush1.msra.mxu0 0.0
    %2607 = vmatprep.subr.mxu0 0.0
    %2608 = vmatpush1.msra.mxu0 0.0
    %2609 = vmatprep.subr.mxu0 0.0
    %2610 = vmatpush1.msra.mxu0 0.0
    %2611 = vmatprep.subr.mxu0 0.0
    %2612 = vmatpush1.msra.mxu0 0.0
    %2613 = vmatprep.subr.mxu0 0.0
    %2614 = vmatpush1.msra.mxu0 0.0
    %2615 = vmatprep.subr.mxu0 0.0
    %2616 = vmatpush1.msra.mxu0 0.0
    %2617 = vmatprep.subr.mxu0 0.0
    %2618 = vmatpush1.msra.mxu0 0.0
    %2619 = vmatprep.subr.mxu0 0.0
    %2620 = vmatpush1.msra.mxu0 0.0
    %2621 = vmatprep.subr.mxu0 0.0
    %2622 = vmatpush1.msra.mxu0 0.0
    %2623 = vmatprep.subr.mxu0 0.0
    %2624 = vmatpush1.msra.mxu0 0.0
    %2625 = vmatprep.subr.mxu0 0.0
    %2626 = vmatpush1.msra.mxu0 0.0
    %2627 = vmatprep.mubr.f32.mxu0 0.0
    %v2628 = vand.u32 %v1992, 4294901760
    %2629 = vmatmul.mubr.f32.gmra.mrb[0].mxu0 %v2628
    %v2630 = vpop.f32.mrb[0].mxu0
    %v2631 = vadd.f32 %v2496, %v2630
    %v2632 = vpop.f32.mrb[0].mxu0
    %2633 = vmatprep.mubr.f32.mxu0 0.0
    %v2634 = vand.u32 %v1993, 4294901760
    %2635 = vmatmul.mubr.f32.gmra.mrb[0].mxu0 %v2634
    %v2636 = vpop.f32.mrb[0].mxu0
    %v2637 = vadd.f32 %v2504, %v2636
    %v2638 = vpop.f32.mrb[0].mxu0
    %2639 = vmatprep.mubr.f32.mxu0 0.0
    %v2640 = vand.u32 %v1994, 4294901760
    %2641 = vmatmul.mubr.f32.gmra.mrb[0].mxu0 %v2640
    %v2642 = vpop.f32.mrb[0].mxu0
    %v2643 = vadd.f32 %v2512, %v2642
    %v2644 = vpop.f32.mrb[0].mxu0
    %2645 = vdwg.mxu0
    %2646 = vmatprep.subr.mxu0 0.0
    %v2647 = vand.u32 %v1995, 4294901760
    %2648 = vmatpush1.msra.mxu0 %v2647
    %2649 = vmatprep.subr.mxu0 0.0
    %v2650 = vand.u32 %v1996, 4294901760
    %2651 = vmatpush1.msra.mxu0 %v2650
    %2652 = vmatprep.subr.mxu0 0.0
    %v2653 = vand.u32 %v1997, 4294901760
    %2654 = vmatpush1.msra.mxu0 %v2653
    %2655 = vmatprep.subr.mxu0 0.0
    %v2656 = vand.u32 %v1998, 4294901760
    %2657 = vmatpush1.msra.mxu0 %v2656
    %2658 = vmatprep.subr.mxu0 0.0
    %v2659 = vand.u32 %v1999, 4294901760
    %2660 = vmatpush1.msra.mxu0 %v2659
    %2661 = vmatprep.subr.mxu0 0.0
    %v2662 = vand.u32 %v2000, 4294901760
    %2663 = vmatpush1.msra.mxu0 %v2662
    %2664 = vmatprep.subr.mxu0 0.0
    %v2665 = vand.u32 %v2001, 4294901760
    %2666 = vmatpush1.msra.mxu0 %v2665
    %2667 = vmatprep.subr.mxu0 0.0
    %v2668 = vand.u32 %v2002, 4294901760
    %2669 = vmatpush1.msra.mxu0 %v2668
    %2670 = vmatprep.subr.mxu0 0.0
    %v2671 = vand.u32 %v2003, 4294901760
    %2672 = vmatpush1.msra.mxu0 %v2671
    %2673 = vmatprep.subr.mxu0 0.0
    %v2674 = vand.u32 %v2004, 4294901760
    %2675 = vmatpush1.msra.mxu0 %v2674
    %2676 = vmatprep.subr.mxu0 0.0
    %v2677 = vand.u32 %v2005, 4294901760
    %2678 = vmatpush1.msra.mxu0 %v2677
    %2679 = vmatprep.subr.mxu0 0.0
    %v2680 = vand.u32 %v2006, 4294901760
    %2681 = vmatpush1.msra.mxu0 %v2680
    %2682 = vmatprep.subr.mxu0 0.0
    %v2683 = vand.u32 %v2007, 4294901760
    %2684 = vmatpush1.msra.mxu0 %v2683
    %2685 = vmatprep.subr.mxu0 0.0
    %v2686 = vand.u32 %v2008, 4294901760
    %2687 = vmatpush1.msra.mxu0 %v2686
    %2688 = vmatprep.subr.mxu0 0.0
    %v2689 = vand.u32 %v2009, 4294901760
    %2690 = vmatpush1.msra.mxu0 %v2689
    %2691 = vmatprep.subr.mxu0 0.0
    %v2692 = vand.u32 %v2010, 4294901760
    %2693 = vmatpush1.msra.mxu0 %v2692
    %2694 = vmatprep.subr.mxu0 0.0
    %2695 = vmatpush1.msra.mxu0 0.0
    %2696 = vmatprep.subr.mxu0 0.0
    %2697 = vmatpush1.msra.mxu0 0.0
    %2698 = vmatprep.subr.mxu0 0.0
    %2699 = vmatpush1.msra.mxu0 0.0
    %2700 = vmatprep.subr.mxu0 0.0
    %2701 = vmatpush1.msra.mxu0 0.0
    %2702 = vmatprep.subr.mxu0 0.0
    %2703 = vmatpush1.msra.mxu0 0.0
    %2704 = vmatprep.subr.mxu0 0.0
    %2705 = vmatpush1.msra.mxu0 0.0
    %2706 = vmatprep.subr.mxu0 0.0
    %2707 = vmatpush1.msra.mxu0 0.0
    %2708 = vmatprep.subr.mxu0 0.0
    %2709 = vmatpush1.msra.mxu0 0.0
    %2710 = vmatprep.subr.mxu0 0.0
    %2711 = vmatpush1.msra.mxu0 0.0
    %2712 = vmatprep.subr.mxu0 0.0
    %2713 = vmatpush1.msra.mxu0 0.0
    %2714 = vmatprep.subr.mxu0 0.0
    %2715 = vmatpush1.msra.mxu0 0.0
    %2716 = vmatprep.subr.mxu0 0.0
    %2717 = vmatpush1.msra.mxu0 0.0
    %2718 = vmatprep.subr.mxu0 0.0
    %2719 = vmatpush1.msra.mxu0 0.0
    %2720 = vmatprep.subr.mxu0 0.0
    %2721 = vmatpush1.msra.mxu0 0.0
    %2722 = vmatprep.subr.mxu0 0.0
    %2723 = vmatpush1.msra.mxu0 0.0
    %2724 = vmatprep.subr.mxu0 0.0
    %2725 = vmatpush1.msra.mxu0 0.0
    %2726 = vmatprep.mubr.f32.mxu0 0.0
    %v2727 = vand.u32 %v1992, 4294901760
    %2728 = vmatmul.mubr.f32.gmra.mrb[0].mxu0 %v2727
    %v2729 = vpop.f32.mrb[0].mxu0
    %v2730 = vadd.f32 %v2631, %v2729
    %v2731 = vpop.f32.mrb[0].mxu0
    %2732 = vmatprep.mubr.f32.mxu0 0.0
    %v2733 = vand.u32 %v1993, 4294901760
    %2734 = vmatmul.mubr.f32.gmra.mrb[0].mxu0 %v2733
    %v2735 = vpop.f32.mrb[0].mxu0
    %v2736 = vadd.f32 %v2637, %v2735
    %v2737 = vpop.f32.mrb[0].mxu0
    %2738 = vmatprep.mubr.f32.mxu0 0.0
    %v2739 = vand.u32 %v1994, 4294901760
    %2740 = vmatmul.mubr.f32.gmra.mrb[0].mxu0 %v2739
    %v2741 = vpop.f32.mrb[0].mxu0
    %v2742 = vadd.f32 %v2643, %v2741
    %v2743 = vpop.f32.mrb[0].mxu0
    %2744 = vdwg.mxu0
    %v2745 = vmax.f32 %v2730, 0.0
    %v2746 = vmax.f32 %v2736, 0.0
    %v2747 = vmax.f32 %v2742, 0.0
    %v2748 = vld [vmem:[#allocation5] sm:$0xff]
    %v2749 = vld [vmem:[#allocation5 + $0x8] sm:$0xff]
    %v2750 = vld [vmem:[#allocation5 + $0x10] sm:$0xff]
    %v2751 = vadd.f32 %v2748, %v1986
    %v2752 = vadd.f32 %v2749, %v1987
    %v2753 = vadd.f32 %v2750, %v1988
    %v2754 = vld [vmem:[%s13] sm:$0xff]
    %v2755 = vld [vmem:[%s13 + $0x8] sm:$0xff]
    %v2756 = vld [vmem:[%s13 + $0x10] sm:$0xff]
    %v2757 = vld [vmem:[%s13 + $0x18] sm:$0xff]
    %v2758 = vld [vmem:[%s13 + $0x20] sm:$0xff]
    %v2759 = vld [vmem:[%s13 + $0x28] sm:$0xff]
    %v2760 = vld [vmem:[%s13 + $0x30] sm:$0xff]
    %v2761 = vld [vmem:[%s13 + $0x38] sm:$0xff]
    %v2762 = vld [vmem:[%s13 + $0x40] sm:$0xff]
    %v2763 = vld [vmem:[%s13 + $0x48] sm:$0xff]
    %v2764 = vld [vmem:[%s13 + $0x50] sm:$0xff]
    %v2765 = vld [vmem:[%s13 + $0x58] sm:$0xff]
    %v2766 = vld [vmem:[%s13 + $0x60] sm:$0xff]
    %v2767 = vld [vmem:[%s13 + $0x68] sm:$0xff]
    %v2768 = vld [vmem:[%s13 + $0x70] sm:$0xff]
    %v2769 = vld [vmem:[%s13 + $0x78] sm:$0xff]
    %v2770 = vld [vmem:[%s14] sm:$0x1]
    %v2772 = vlaneseq
    %v2773 = vshrl.u32 %v2772, 7
    %v2774 = vsub.s32 0, %v2773
    %v2775 = vrot.slane %v2770, %v2774
    %2777 = vmatprep.subr.mxu0 0.0
    %v2778 = vand.u32 %v2754, 4294901760
    %2779 = vmatpush1.msra.mxu0 %v2778
    %2780 = vmatprep.subr.mxu0 0.0
    %v2781 = vand.u32 %v2755, 4294901760
    %2782 = vmatpush1.msra.mxu0 %v2781
    %2783 = vmatprep.subr.mxu0 0.0
    %v2784 = vand.u32 %v2756, 4294901760
    %2785 = vmatpush1.msra.mxu0 %v2784
    %2786 = vmatprep.subr.mxu0 0.0
    %v2787 = vand.u32 %v2757, 4294901760
    %2788 = vmatpush1.msra.mxu0 %v2787
    %2789 = vmatprep.subr.mxu0 0.0
    %v2790 = vand.u32 %v2758, 4294901760
    %2791 = vmatpush1.msra.mxu0 %v2790
    %2792 = vmatprep.subr.mxu0 0.0
    %v2793 = vand.u32 %v2759, 4294901760
    %2794 = vmatpush1.msra.mxu0 %v2793
    %2795 = vmatprep.subr.mxu0 0.0
    %v2796 = vand.u32 %v2760, 4294901760
    %2797 = vmatpush1.msra.mxu0 %v2796
    %2798 = vmatprep.subr.mxu0 0.0
    %v2799 = vand.u32 %v2761, 4294901760
    %2800 = vmatpush1.msra.mxu0 %v2799
    %2801 = vmatprep.subr.mxu0 0.0
    %v2802 = vand.u32 %v2762, 4294901760
    %2803 = vmatpush1.msra.mxu0 %v2802
    %2804 = vmatprep.subr.mxu0 0.0
    %v2805 = vand.u32 %v2763, 4294901760
    %2806 = vmatpush1.msra.mxu0 %v2805
    %2807 = vmatprep.subr.mxu0 0.0
    %v2808 = vand.u32 %v2764, 4294901760
    %2809 = vmatpush1.msra.mxu0 %v2808
    %2810 = vmatprep.subr.mxu0 0.0
    %v2811 = vand.u32 %v2765, 4294901760
    %2812 = vmatpush1.msra.mxu0 %v2811
    %2813 = vmatprep.subr.mxu0 0.0
    %v2814 = vand.u32 %v2766, 4294901760
    %2815 = vmatpush1.msra.mxu0 %v2814
    %2816 = vmatprep.subr.mxu0 0.0
    %v2817 = vand.u32 %v2767, 4294901760
    %2818 = vmatpush1.msra.mxu0 %v2817
    %2819 = vmatprep.subr.mxu0 0.0
    %v2820 = vand.u32 %v2768, 4294901760
    %2821 = vmatpush1.msra.mxu0 %v2820
    %2822 = vmatprep.subr.mxu0 0.0
    %v2823 = vand.u32 %v2769, 4294901760
    %2824 = vmatpush1.msra.mxu0 %v2823
    %2825 = vmatprep.subr.mxu0 0.0
    %2826 = vmatpush1.msra.mxu0 0.0
    %2827 = vmatprep.subr.mxu0 0.0
    %2828 = vmatpush1.msra.mxu0 0.0
    %2829 = vmatprep.subr.mxu0 0.0
    %2830 = vmatpush1.msra.mxu0 0.0
    %2831 = vmatprep.subr.mxu0 0.0
    %2832 = vmatpush1.msra.mxu0 0.0
    %2833 = vmatprep.subr.mxu0 0.0
    %2834 = vmatpush1.msra.mxu0 0.0
    %2835 = vmatprep.subr.mxu0 0.0
    %2836 = vmatpush1.msra.mxu0 0.0
    %2837 = vmatprep.subr.mxu0 0.0
    %2838 = vmatpush1.msra.mxu0 0.0
    %2839 = vmatprep.subr.mxu0 0.0
    %2840 = vmatpush1.msra.mxu0 0.0
    %2841 = vmatprep.subr.mxu0 0.0
    %2842 = vmatpush1.msra.mxu0 0.0
    %2843 = vmatprep.subr.mxu0 0.0
    %2844 = vmatpush1.msra.mxu0 0.0
    %2845 = vmatprep.subr.mxu0 0.0
    %2846 = vmatpush1.msra.mxu0 0.0
    %2847 = vmatprep.subr.mxu0 0.0
    %2848 = vmatpush1.msra.mxu0 0.0
    %2849 = vmatprep.subr.mxu0 0.0
    %2850 = vmatpush1.msra.mxu0 0.0
    %2851 = vmatprep.subr.mxu0 0.0
    %2852 = vmatpush1.msra.mxu0 0.0
    %2853 = vmatprep.subr.mxu0 0.0
    %2854 = vmatpush1.msra.mxu0 0.0
    %2855 = vmatprep.subr.mxu0 0.0
    %2856 = vmatpush1.msra.mxu0 0.0
    %2857 = vmatprep.mubr.f32.mxu0 0.0
    %v2858 = vand.u32 %v2751, 4294901760
    %v2859 = vsub.f32 %v2751, %v2858
    %v2860 = vand.u32 %v2859, 4294901760
    %v2861 = vsub.f32 %v2859, %v2860
    %v2862 = vand.u32 %v2861, 4294901760
    %2863 = vmatmul.mubr.f32.gmra.mrb[0].mxu0 %v2862
    %v2864 = vpop.f32.mrb[0].mxu0
    %v2865 = vadd.f32 %v2775, %v2864
    %v2866 = vpop.f32.mrb[0].mxu0
    %2867 = vmatprep.mubr.f32.mxu0 0.0
    %v2868 = vand.u32 %v2752, 4294901760
    %v2869 = vsub.f32 %v2752, %v2868
    %v2870 = vand.u32 %v2869, 4294901760
    %v2871 = vsub.f32 %v2869, %v2870
    %v2872 = vand.u32 %v2871, 4294901760
    %2873 = vmatmul.mubr.f32.gmra.mrb[0].mxu0 %v2872
    %v2874 = vpop.f32.mrb[0].mxu0
    %v2875 = vadd.f32 %v2775, %v2874
    %v2876 = vpop.f32.mrb[0].mxu0
    %2877 = vmatprep.mubr.f32.mxu0 0.0
    %v2878 = vand.u32 %v2753, 4294901760
    %v2879 = vsub.f32 %v2753, %v2878
    %v2880 = vand.u32 %v2879, 4294901760
    %v2881 = vsub.f32 %v2879, %v2880
    %v2882 = vand.u32 %v2881, 4294901760
    %2883 = vmatmul.mubr.f32.gmra.mrb[0].mxu0 %v2882
    %v2884 = vpop.f32.mrb[0].mxu0
    %v2885 = vadd.f32 %v2775, %v2884
    %v2886 = vpop.f32.mrb[0].mxu0
    %2887 = vdwg.mxu0
    %2888 = vmatprep.subr.mxu0 0.0
    %v2889 = vand.u32 %v2754, 4294901760
    %v2890 = vsub.f32 %v2754, %v2889
    %v2891 = vand.u32 %v2890, 4294901760
    %v2892 = vsub.f32 %v2890, %v2891
    %v2893 = vand.u32 %v2892, 4294901760
    %2894 = vmatpush1.msra.mxu0 %v2893
    %2895 = vmatprep.subr.mxu0 0.0
    %v2896 = vand.u32 %v2755, 4294901760
    %v2897 = vsub.f32 %v2755, %v2896
    %v2898 = vand.u32 %v2897, 4294901760
    %v2899 = vsub.f32 %v2897, %v2898
    %v2900 = vand.u32 %v2899, 4294901760
    %2901 = vmatpush1.msra.mxu0 %v2900
    %2902 = vmatprep.subr.mxu0 0.0
    %v2903 = vand.u32 %v2756, 4294901760
    %v2904 = vsub.f32 %v2756, %v2903
    %v2905 = vand.u32 %v2904, 4294901760
    %v2906 = vsub.f32 %v2904, %v2905
    %v2907 = vand.u32 %v2906, 4294901760
    %2908 = vmatpush1.msra.mxu0 %v2907
    %2909 = vmatprep.subr.mxu0 0.0
    %v2910 = vand.u32 %v2757, 4294901760
    %v2911 = vsub.f32 %v2757, %v2910
    %v2912 = vand.u32 %v2911, 4294901760
    %v2913 = vsub.f32 %v2911, %v2912
    %v2914 = vand.u32 %v2913, 4294901760
    %2915 = vmatpush1.msra.mxu0 %v2914
    %2916 = vmatprep.subr.mxu0 0.0
    %v2917 = vand.u32 %v2758, 4294901760
    %v2918 = vsub.f32 %v2758, %v2917
    %v2919 = vand.u32 %v2918, 4294901760
    %v2920 = vsub.f32 %v2918, %v2919
    %v2921 = vand.u32 %v2920, 4294901760
    %2922 = vmatpush1.msra.mxu0 %v2921
    %2923 = vmatprep.subr.mxu0 0.0
    %v2924 = vand.u32 %v2759, 4294901760
    %v2925 = vsub.f32 %v2759, %v2924
    %v2926 = vand.u32 %v2925, 4294901760
    %v2927 = vsub.f32 %v2925, %v2926
    %v2928 = vand.u32 %v2927, 4294901760
    %2929 = vmatpush1.msra.mxu0 %v2928
    %2930 = vmatprep.subr.mxu0 0.0
    %v2931 = vand.u32 %v2760, 4294901760
    %v2932 = vsub.f32 %v2760, %v2931
    %v2933 = vand.u32 %v2932, 4294901760
    %v2934 = vsub.f32 %v2932, %v2933
    %v2935 = vand.u32 %v2934, 4294901760
    %2936 = vmatpush1.msra.mxu0 %v2935
    %2937 = vmatprep.subr.mxu0 0.0
    %v2938 = vand.u32 %v2761, 4294901760
    %v2939 = vsub.f32 %v2761, %v2938
    %v2940 = vand.u32 %v2939, 4294901760
    %v2941 = vsub.f32 %v2939, %v2940
    %v2942 = vand.u32 %v2941, 4294901760
    %2943 = vmatpush1.msra.mxu0 %v2942
    %2944 = vmatprep.subr.mxu0 0.0
    %v2945 = vand.u32 %v2762, 4294901760
    %v2946 = vsub.f32 %v2762, %v2945
    %v2947 = vand.u32 %v2946, 4294901760
    %v2948 = vsub.f32 %v2946, %v2947
    %v2949 = vand.u32 %v2948, 4294901760
    %2950 = vmatpush1.msra.mxu0 %v2949
    %2951 = vmatprep.subr.mxu0 0.0
    %v2952 = vand.u32 %v2763, 4294901760
    %v2953 = vsub.f32 %v2763, %v2952
    %v2954 = vand.u32 %v2953, 4294901760
    %v2955 = vsub.f32 %v2953, %v2954
    %v2956 = vand.u32 %v2955, 4294901760
    %2957 = vmatpush1.msra.mxu0 %v2956
    %2958 = vmatprep.subr.mxu0 0.0
    %v2959 = vand.u32 %v2764, 4294901760
    %v2960 = vsub.f32 %v2764, %v2959
    %v2961 = vand.u32 %v2960, 4294901760
    %v2962 = vsub.f32 %v2960, %v2961
    %v2963 = vand.u32 %v2962, 4294901760
    %2964 = vmatpush1.msra.mxu0 %v2963
    %2965 = vmatprep.subr.mxu0 0.0
    %v2966 = vand.u32 %v2765, 4294901760
    %v2967 = vsub.f32 %v2765, %v2966
    %v2968 = vand.u32 %v2967, 4294901760
    %v2969 = vsub.f32 %v2967, %v2968
    %v2970 = vand.u32 %v2969, 4294901760
    %2971 = vmatpush1.msra.mxu0 %v2970
    %2972 = vmatprep.subr.mxu0 0.0
    %v2973 = vand.u32 %v2766, 4294901760
    %v2974 = vsub.f32 %v2766, %v2973
    %v2975 = vand.u32 %v2974, 4294901760
    %v2976 = vsub.f32 %v2974, %v2975
    %v2977 = vand.u32 %v2976, 4294901760
    %2978 = vmatpush1.msra.mxu0 %v2977
    %2979 = vmatprep.subr.mxu0 0.0
    %v2980 = vand.u32 %v2767, 4294901760
    %v2981 = vsub.f32 %v2767, %v2980
    %v2982 = vand.u32 %v2981, 4294901760
    %v2983 = vsub.f32 %v2981, %v2982
    %v2984 = vand.u32 %v2983, 4294901760
    %2985 = vmatpush1.msra.mxu0 %v2984
    %2986 = vmatprep.subr.mxu0 0.0
    %v2987 = vand.u32 %v2768, 4294901760
    %v2988 = vsub.f32 %v2768, %v2987
    %v2989 = vand.u32 %v2988, 4294901760
    %v2990 = vsub.f32 %v2988, %v2989
    %v2991 = vand.u32 %v2990, 4294901760
    %2992 = vmatpush1.msra.mxu0 %v2991
    %2993 = vmatprep.subr.mxu0 0.0
    %v2994 = vand.u32 %v2769, 4294901760
    %v2995 = vsub.f32 %v2769, %v2994
    %v2996 = vand.u32 %v2995, 4294901760
    %v2997 = vsub.f32 %v2995, %v2996
    %v2998 = vand.u32 %v2997, 4294901760
    %2999 = vmatpush1.msra.mxu0 %v2998
    %3000 = vmatprep.subr.mxu0 0.0
    %3001 = vmatpush1.msra.mxu0 0.0
    %3002 = vmatprep.subr.mxu0 0.0
    %3003 = vmatpush1.msra.mxu0 0.0
    %3004 = vmatprep.subr.mxu0 0.0
    %3005 = vmatpush1.msra.mxu0 0.0
    %3006 = vmatprep.subr.mxu0 0.0
    %3007 = vmatpush1.msra.mxu0 0.0
    %3008 = vmatprep.subr.mxu0 0.0
    %3009 = vmatpush1.msra.mxu0 0.0
    %3010 = vmatprep.subr.mxu0 0.0
    %3011 = vmatpush1.msra.mxu0 0.0
    %3012 = vmatprep.subr.mxu0 0.0
    %3013 = vmatpush1.msra.mxu0 0.0
    %3014 = vmatprep.subr.mxu0 0.0
    %3015 = vmatpush1.msra.mxu0 0.0
    %3016 = vmatprep.subr.mxu0 0.0
    %3017 = vmatpush1.msra.mxu0 0.0
    %3018 = vmatprep.subr.mxu0 0.0
    %3019 = vmatpush1.msra.mxu0 0.0
    %3020 = vmatprep.subr.mxu0 0.0
    %3021 = vmatpush1.msra.mxu0 0.0
    %3022 = vmatprep.subr.mxu0 0.0
    %3023 = vmatpush1.msra.mxu0 0.0
    %3024 = vmatprep.subr.mxu0 0.0
    %3025 = vmatpush1.msra.mxu0 0.0
    %3026 = vmatprep.subr.mxu0 0.0
    %3027 = vmatpush1.msra.mxu0 0.0
    %3028 = vmatprep.subr.mxu0 0.0
    %3029 = vmatpush1.msra.mxu0 0.0
    %3030 = vmatprep.subr.mxu0 0.0
    %3031 = vmatpush1.msra.mxu0 0.0
    %3032 = vmatprep.mubr.f32.mxu0 0.0
    %v3033 = vand.u32 %v2751, 4294901760
    %3034 = vmatmul.mubr.f32.gmra.mrb[0].mxu0 %v3033
    %v3035 = vpop.f32.mrb[0].mxu0
    %v3036 = vadd.f32 %v2865, %v3035
    %v3037 = vpop.f32.mrb[0].mxu0
    %3038 = vmatprep.mubr.f32.mxu0 0.0
    %v3039 = vand.u32 %v2752, 4294901760
    %3040 = vmatmul.mubr.f32.gmra.mrb[0].mxu0 %v3039
    %v3041 = vpop.f32.mrb[0].mxu0
    %v3042 = vadd.f32 %v2875, %v3041
    %v3043 = vpop.f32.mrb[0].mxu0
    %3044 = vmatprep.mubr.f32.mxu0 0.0
    %v3045 = vand.u32 %v2753, 4294901760
    %3046 = vmatmul.mubr.f32.gmra.mrb[0].mxu0 %v3045
    %v3047 = vpop.f32.mrb[0].mxu0
    %v3048 = vadd.f32 %v2885, %v3047
    %v3049 = vpop.f32.mrb[0].mxu0
    %3050 = vdwg.mxu0
    %3051 = vmatprep.subr.mxu0 0.0
    %v3052 = vand.u32 %v2754, 4294901760
    %v3053 = vsub.f32 %v2754, %v3052
    %3054 = vmatpush1.msra.mxu0 %v3053
    %3055 = vmatprep.subr.mxu0 0.0
    %v3056 = vand.u32 %v2755, 4294901760
    %v3057 = vsub.f32 %v2755, %v3056
    %3058 = vmatpush1.msra.mxu0 %v3057
    %3059 = vmatprep.subr.mxu0 0.0
    %v3060 = vand.u32 %v2756, 4294901760
    %v3061 = vsub.f32 %v2756, %v3060
    %3062 = vmatpush1.msra.mxu0 %v3061
    %3063 = vmatprep.subr.mxu0 0.0
    %v3064 = vand.u32 %v2757, 4294901760
    %v3065 = vsub.f32 %v2757, %v3064
    %3066 = vmatpush1.msra.mxu0 %v3065
    %3067 = vmatprep.subr.mxu0 0.0
    %v3068 = vand.u32 %v2758, 4294901760
    %v3069 = vsub.f32 %v2758, %v3068
    %3070 = vmatpush1.msra.mxu0 %v3069
    %3071 = vmatprep.subr.mxu0 0.0
    %v3072 = vand.u32 %v2759, 4294901760
    %v3073 = vsub.f32 %v2759, %v3072
    %3074 = vmatpush1.msra.mxu0 %v3073
    %3075 = vmatprep.subr.mxu0 0.0
    %v3076 = vand.u32 %v2760, 4294901760
    %v3077 = vsub.f32 %v2760, %v3076
    %3078 = vmatpush1.msra.mxu0 %v3077
    %3079 = vmatprep.subr.mxu0 0.0
    %v3080 = vand.u32 %v2761, 4294901760
    %v3081 = vsub.f32 %v2761, %v3080
    %3082 = vmatpush1.msra.mxu0 %v3081
    %3083 = vmatprep.subr.mxu0 0.0
    %v3084 = vand.u32 %v2762, 4294901760
    %v3085 = vsub.f32 %v2762, %v3084
    %3086 = vmatpush1.msra.mxu0 %v3085
    %3087 = vmatprep.subr.mxu0 0.0
    %v3088 = vand.u32 %v2763, 4294901760
    %v3089 = vsub.f32 %v2763, %v3088
    %3090 = vmatpush1.msra.mxu0 %v3089
    %3091 = vmatprep.subr.mxu0 0.0
    %v3092 = vand.u32 %v2764, 4294901760
    %v3093 = vsub.f32 %v2764, %v3092
    %3094 = vmatpush1.msra.mxu0 %v3093
    %3095 = vmatprep.subr.mxu0 0.0
    %v3096 = vand.u32 %v2765, 4294901760
    %v3097 = vsub.f32 %v2765, %v3096
    %3098 = vmatpush1.msra.mxu0 %v3097
    %3099 = vmatprep.subr.mxu0 0.0
    %v3100 = vand.u32 %v2766, 4294901760
    %v3101 = vsub.f32 %v2766, %v3100
    %3102 = vmatpush1.msra.mxu0 %v3101
    %3103 = vmatprep.subr.mxu0 0.0
    %v3104 = vand.u32 %v2767, 4294901760
    %v3105 = vsub.f32 %v2767, %v3104
    %3106 = vmatpush1.msra.mxu0 %v3105
    %3107 = vmatprep.subr.mxu0 0.0
    %v3108 = vand.u32 %v2768, 4294901760
    %v3109 = vsub.f32 %v2768, %v3108
    %3110 = vmatpush1.msra.mxu0 %v3109
    %3111 = vmatprep.subr.mxu0 0.0
    %v3112 = vand.u32 %v2769, 4294901760
    %v3113 = vsub.f32 %v2769, %v3112
    %3114 = vmatpush1.msra.mxu0 %v3113
    %3115 = vmatprep.subr.mxu0 0.0
    %3116 = vmatpush1.msra.mxu0 0.0
    %3117 = vmatprep.subr.mxu0 0.0
    %3118 = vmatpush1.msra.mxu0 0.0
    %3119 = vmatprep.subr.mxu0 0.0
    %3120 = vmatpush1.msra.mxu0 0.0
    %3121 = vmatprep.subr.mxu0 0.0
    %3122 = vmatpush1.msra.mxu0 0.0
    %3123 = vmatprep.subr.mxu0 0.0
    %3124 = vmatpush1.msra.mxu0 0.0
    %3125 = vmatprep.subr.mxu0 0.0
    %3126 = vmatpush1.msra.mxu0 0.0
    %3127 = vmatprep.subr.mxu0 0.0
    %3128 = vmatpush1.msra.mxu0 0.0
    %3129 = vmatprep.subr.mxu0 0.0
    %3130 = vmatpush1.msra.mxu0 0.0
    %3131 = vmatprep.subr.mxu0 0.0
    %3132 = vmatpush1.msra.mxu0 0.0
    %3133 = vmatprep.subr.mxu0 0.0
    %3134 = vmatpush1.msra.mxu0 0.0
    %3135 = vmatprep.subr.mxu0 0.0
    %3136 = vmatpush1.msra.mxu0 0.0
    %3137 = vmatprep.subr.mxu0 0.0
    %3138 = vmatpush1.msra.mxu0 0.0
    %3139 = vmatprep.subr.mxu0 0.0
    %3140 = vmatpush1.msra.mxu0 0.0
    %3141 = vmatprep.subr.mxu0 0.0
    %3142 = vmatpush1.msra.mxu0 0.0
    %3143 = vmatprep.subr.mxu0 0.0
    %3144 = vmatpush1.msra.mxu0 0.0
    %3145 = vmatprep.subr.mxu0 0.0
    %3146 = vmatpush1.msra.mxu0 0.0
    %3147 = vmatprep.mubr.f32.mxu0 0.0
    %v3148 = vand.u32 %v2751, 4294901760
    %v3149 = vsub.f32 %v2751, %v3148
    %3150 = vmatmul.mubr.f32.gmra.mrb[0].mxu0 %v3149
    %v3151 = vpop.f32.mrb[0].mxu0
    %v3152 = vadd.f32 %v3036, %v3151
    %v3153 = vpop.f32.mrb[0].mxu0
    %3154 = vmatprep.mubr.f32.mxu0 0.0
    %v3155 = vand.u32 %v2752, 4294901760
    %v3156 = vsub.f32 %v2752, %v3155
    %3157 = vmatmul.mubr.f32.gmra.mrb[0].mxu0 %v3156
    %v3158 = vpop.f32.mrb[0].mxu0
    %v3159 = vadd.f32 %v3042, %v3158
    %v3160 = vpop.f32.mrb[0].mxu0
    %3161 = vmatprep.mubr.f32.mxu0 0.0
    %v3162 = vand.u32 %v2753, 4294901760
    %v3163 = vsub.f32 %v2753, %v3162
    %3164 = vmatmul.mubr.f32.gmra.mrb[0].mxu0 %v3163
    %v3165 = vpop.f32.mrb[0].mxu0
    %v3166 = vadd.f32 %v3048, %v3165
    %v3167 = vpop.f32.mrb[0].mxu0
    %3168 = vdwg.mxu0
    %3169 = vmatprep.subr.mxu0 0.0
    %v3170 = vand.u32 %v2754, 4294901760
    %3171 = vmatpush1.msra.mxu0 %v3170
    %3172 = vmatprep.subr.mxu0 0.0
    %v3173 = vand.u32 %v2755, 4294901760
    %3174 = vmatpush1.msra.mxu0 %v3173
    %3175 = vmatprep.subr.mxu0 0.0
    %v3176 = vand.u32 %v2756, 4294901760
    %3177 = vmatpush1.msra.mxu0 %v3176
    %3178 = vmatprep.subr.mxu0 0.0
    %v3179 = vand.u32 %v2757, 4294901760
    %3180 = vmatpush1.msra.mxu0 %v3179
    %3181 = vmatprep.subr.mxu0 0.0
    %v3182 = vand.u32 %v2758, 4294901760
    %3183 = vmatpush1.msra.mxu0 %v3182
    %3184 = vmatprep.subr.mxu0 0.0
    %v3185 = vand.u32 %v2759, 4294901760
    %3186 = vmatpush1.msra.mxu0 %v3185
    %3187 = vmatprep.subr.mxu0 0.0
    %v3188 = vand.u32 %v2760, 4294901760
    %3189 = vmatpush1.msra.mxu0 %v3188
    %3190 = vmatprep.subr.mxu0 0.0
    %v3191 = vand.u32 %v2761, 4294901760
    %3192 = vmatpush1.msra.mxu0 %v3191
    %3193 = vmatprep.subr.mxu0 0.0
    %v3194 = vand.u32 %v2762, 4294901760
    %3195 = vmatpush1.msra.mxu0 %v3194
    %3196 = vmatprep.subr.mxu0 0.0
    %v3197 = vand.u32 %v2763, 4294901760
    %3198 = vmatpush1.msra.mxu0 %v3197
    %3199 = vmatprep.subr.mxu0 0.0
    %v3200 = vand.u32 %v2764, 4294901760
    %3201 = vmatpush1.msra.mxu0 %v3200
    %3202 = vmatprep.subr.mxu0 0.0
    %v3203 = vand.u32 %v2765, 4294901760
    %3204 = vmatpush1.msra.mxu0 %v3203
    %3205 = vmatprep.subr.mxu0 0.0
    %v3206 = vand.u32 %v2766, 4294901760
    %3207 = vmatpush1.msra.mxu0 %v3206
    %3208 = vmatprep.subr.mxu0 0.0
    %v3209 = vand.u32 %v2767, 4294901760
    %3210 = vmatpush1.msra.mxu0 %v3209
    %3211 = vmatprep.subr.mxu0 0.0
    %v3212 = vand.u32 %v2768, 4294901760
    %3213 = vmatpush1.msra.mxu0 %v3212
    %3214 = vmatprep.subr.mxu0 0.0
    %v3215 = vand.u32 %v2769, 4294901760
    %3216 = vmatpush1.msra.mxu0 %v3215
    %3217 = vmatprep.subr.mxu0 0.0
    %3218 = vmatpush1.msra.mxu0 0.0
    %3219 = vmatprep.subr.mxu0 0.0
    %3220 = vmatpush1.msra.mxu0 0.0
    %3221 = vmatprep.subr.mxu0 0.0
    %3222 = vmatpush1.msra.mxu0 0.0
    %3223 = vmatprep.subr.mxu0 0.0
    %3224 = vmatpush1.msra.mxu0 0.0
    %3225 = vmatprep.subr.mxu0 0.0
    %3226 = vmatpush1.msra.mxu0 0.0
    %3227 = vmatprep.subr.mxu0 0.0
    %3228 = vmatpush1.msra.mxu0 0.0
    %3229 = vmatprep.subr.mxu0 0.0
    %3230 = vmatpush1.msra.mxu0 0.0
    %3231 = vmatprep.subr.mxu0 0.0
    %3232 = vmatpush1.msra.mxu0 0.0
    %3233 = vmatprep.subr.mxu0 0.0
    %3234 = vmatpush1.msra.mxu0 0.0
    %3235 = vmatprep.subr.mxu0 0.0
    %3236 = vmatpush1.msra.mxu0 0.0
    %3237 = vmatprep.subr.mxu0 0.0
    %3238 = vmatpush1.msra.mxu0 0.0
    %3239 = vmatprep.subr.mxu0 0.0
    %3240 = vmatpush1.msra.mxu0 0.0
    %3241 = vmatprep.subr.mxu0 0.0
    %3242 = vmatpush1.msra.mxu0 0.0
    %3243 = vmatprep.subr.mxu0 0.0
    %3244 = vmatpush1.msra.mxu0 0.0
    %3245 = vmatprep.subr.mxu0 0.0
    %3246 = vmatpush1.msra.mxu0 0.0
    %3247 = vmatprep.subr.mxu0 0.0
    %3248 = vmatpush1.msra.mxu0 0.0
    %3249 = vmatprep.mubr.f32.mxu0 0.0
    %v3250 = vand.u32 %v2751, 4294901760
    %v3251 = vsub.f32 %v2751, %v3250
    %v3252 = vand.u32 %v3251, 4294901760
    %3253 = vmatmul.mubr.f32.gmra.mrb[0].mxu0 %v3252
    %v3254 = vpop.f32.mrb[0].mxu0
    %v3255 = vadd.f32 %v3152, %v3254
    %v3256 = vpop.f32.mrb[0].mxu0
    %3257 = vmatprep.mubr.f32.mxu0 0.0
    %v3258 = vand.u32 %v2752, 4294901760
    %v3259 = vsub.f32 %v2752, %v3258
    %v3260 = vand.u32 %v3259, 4294901760
    %3261 = vmatmul.mubr.f32.gmra.mrb[0].mxu0 %v3260
    %v3262 = vpop.f32.mrb[0].mxu0
    %v3263 = vadd.f32 %v3159, %v3262
    %v3264 = vpop.f32.mrb[0].mxu0
    %3265 = vmatprep.mubr.f32.mxu0 0.0
    %v3266 = vand.u32 %v2753, 4294901760
    %v3267 = vsub.f32 %v2753, %v3266
    %v3268 = vand.u32 %v3267, 4294901760
    %3269 = vmatmul.mubr.f32.gmra.mrb[0].mxu0 %v3268
    %v3270 = vpop.f32.mrb[0].mxu0
    %v3271 = vadd.f32 %v3166, %v3270
    %v3272 = vpop.f32.mrb[0].mxu0
    %3273 = vdwg.mxu0
    %3274 = vmatprep.subr.mxu0 0.0
    %v3275 = vand.u32 %v2754, 4294901760
    %v3276 = vsub.f32 %v2754, %v3275
    %v3277 = vand.u32 %v3276, 4294901760
    %3278 = vmatpush1.msra.mxu0 %v3277
    %3279 = vmatprep.subr.mxu0 0.0
    %v3280 = vand.u32 %v2755, 4294901760
    %v3281 = vsub.f32 %v2755, %v3280
    %v3282 = vand.u32 %v3281, 4294901760
    %3283 = vmatpush1.msra.mxu0 %v3282
    %3284 = vmatprep.subr.mxu0 0.0
    %v3285 = vand.u32 %v2756, 4294901760
    %v3286 = vsub.f32 %v2756, %v3285
    %v3287 = vand.u32 %v3286, 4294901760
    %3288 = vmatpush1.msra.mxu0 %v3287
    %3289 = vmatprep.subr.mxu0 0.0
    %v3290 = vand.u32 %v2757, 4294901760
    %v3291 = vsub.f32 %v2757, %v3290
    %v3292 = vand.u32 %v3291, 4294901760
    %3293 = vmatpush1.msra.mxu0 %v3292
    %3294 = vmatprep.subr.mxu0 0.0
    %v3295 = vand.u32 %v2758, 4294901760
    %v3296 = vsub.f32 %v2758, %v3295
    %v3297 = vand.u32 %v3296, 4294901760
    %3298 = vmatpush1.msra.mxu0 %v3297
    %3299 = vmatprep.subr.mxu0 0.0
    %v3300 = vand.u32 %v2759, 4294901760
    %v3301 = vsub.f32 %v2759, %v3300
    %v3302 = vand.u32 %v3301, 4294901760
    %3303 = vmatpush1.msra.mxu0 %v3302
    %3304 = vmatprep.subr.mxu0 0.0
    %v3305 = vand.u32 %v2760, 4294901760
    %v3306 = vsub.f32 %v2760, %v3305
    %v3307 = vand.u32 %v3306, 4294901760
    %3308 = vmatpush1.msra.mxu0 %v3307
    %3309 = vmatprep.subr.mxu0 0.0
    %v3310 = vand.u32 %v2761, 4294901760
    %v3311 = vsub.f32 %v2761, %v3310
    %v3312 = vand.u32 %v3311, 4294901760
    %3313 = vmatpush1.msra.mxu0 %v3312
    %3314 = vmatprep.subr.mxu0 0.0
    %v3315 = vand.u32 %v2762, 4294901760
    %v3316 = vsub.f32 %v2762, %v3315
    %v3317 = vand.u32 %v3316, 4294901760
    %3318 = vmatpush1.msra.mxu0 %v3317
    %3319 = vmatprep.subr.mxu0 0.0
    %v3320 = vand.u32 %v2763, 4294901760
    %v3321 = vsub.f32 %v2763, %v3320
    %v3322 = vand.u32 %v3321, 4294901760
    %3323 = vmatpush1.msra.mxu0 %v3322
    %3324 = vmatprep.subr.mxu0 0.0
    %v3325 = vand.u32 %v2764, 4294901760
    %v3326 = vsub.f32 %v2764, %v3325
    %v3327 = vand.u32 %v3326, 4294901760
    %3328 = vmatpush1.msra.mxu0 %v3327
    %3329 = vmatprep.subr.mxu0 0.0
    %v3330 = vand.u32 %v2765, 4294901760
    %v3331 = vsub.f32 %v2765, %v3330
    %v3332 = vand.u32 %v3331, 4294901760
    %3333 = vmatpush1.msra.mxu0 %v3332
    %3334 = vmatprep.subr.mxu0 0.0
    %v3335 = vand.u32 %v2766, 4294901760
    %v3336 = vsub.f32 %v2766, %v3335
    %v3337 = vand.u32 %v3336, 4294901760
    %3338 = vmatpush1.msra.mxu0 %v3337
    %3339 = vmatprep.subr.mxu0 0.0
    %v3340 = vand.u32 %v2767, 4294901760
    %v3341 = vsub.f32 %v2767, %v3340
    %v3342 = vand.u32 %v3341, 4294901760
    %3343 = vmatpush1.msra.mxu0 %v3342
    %3344 = vmatprep.subr.mxu0 0.0
    %v3345 = vand.u32 %v2768, 4294901760
    %v3346 = vsub.f32 %v2768, %v3345
    %v3347 = vand.u32 %v3346, 4294901760
    %3348 = vmatpush1.msra.mxu0 %v3347
    %3349 = vmatprep.subr.mxu0 0.0
    %v3350 = vand.u32 %v2769, 4294901760
    %v3351 = vsub.f32 %v2769, %v3350
    %v3352 = vand.u32 %v3351, 4294901760
    %3353 = vmatpush1.msra.mxu0 %v3352
    %3354 = vmatprep.subr.mxu0 0.0
    %3355 = vmatpush1.msra.mxu0 0.0
    %3356 = vmatprep.subr.mxu0 0.0
    %3357 = vmatpush1.msra.mxu0 0.0
    %3358 = vmatprep.subr.mxu0 0.0
    %3359 = vmatpush1.msra.mxu0 0.0
    %3360 = vmatprep.subr.mxu0 0.0
    %3361 = vmatpush1.msra.mxu0 0.0
    %3362 = vmatprep.subr.mxu0 0.0
    %3363 = vmatpush1.msra.mxu0 0.0
    %3364 = vmatprep.subr.mxu0 0.0
    %3365 = vmatpush1.msra.mxu0 0.0
    %3366 = vmatprep.subr.mxu0 0.0
    %3367 = vmatpush1.msra.mxu0 0.0
    %3368 = vmatprep.subr.mxu0 0.0
    %3369 = vmatpush1.msra.mxu0 0.0
    %3370 = vmatprep.subr.mxu0 0.0
    %3371 = vmatpush1.msra.mxu0 0.0
    %3372 = vmatprep.subr.mxu0 0.0
    %3373 = vmatpush1.msra.mxu0 0.0
    %3374 = vmatprep.subr.mxu0 0.0
    %3375 = vmatpush1.msra.mxu0 0.0
    %3376 = vmatprep.subr.mxu0 0.0
    %3377 = vmatpush1.msra.mxu0 0.0
    %3378 = vmatprep.subr.mxu0 0.0
    %3379 = vmatpush1.msra.mxu0 0.0
    %3380 = vmatprep.subr.mxu0 0.0
    %3381 = vmatpush1.msra.mxu0 0.0
    %3382 = vmatprep.subr.mxu0 0.0
    %3383 = vmatpush1.msra.mxu0 0.0
    %3384 = vmatprep.subr.mxu0 0.0
    %3385 = vmatpush1.msra.mxu0 0.0
    %3386 = vmatprep.mubr.f32.mxu0 0.0
    %v3387 = vand.u32 %v2751, 4294901760
    %3388 = vmatmul.mubr.f32.gmra.mrb[0].mxu0 %v3387
    %v3389 = vpop.f32.mrb[0].mxu0
    %v3390 = vadd.f32 %v3255, %v3389
    %v3391 = vpop.f32.mrb[0].mxu0
    %3392 = vmatprep.mubr.f32.mxu0 0.0
    %v3393 = vand.u32 %v2752, 4294901760
    %3394 = vmatmul.mubr.f32.gmra.mrb[0].mxu0 %v3393
    %v3395 = vpop.f32.mrb[0].mxu0
    %v3396 = vadd.f32 %v3263, %v3395
    %v3397 = vpop.f32.mrb[0].mxu0
    %3398 = vmatprep.mubr.f32.mxu0 0.0
    %v3399 = vand.u32 %v2753, 4294901760
    %3400 = vmatmul.mubr.f32.gmra.mrb[0].mxu0 %v3399
    %v3401 = vpop.f32.mrb[0].mxu0
    %v3402 = vadd.f32 %v3271, %v3401
    %v3403 = vpop.f32.mrb[0].mxu0
    %3404 = vdwg.mxu0
    %3405 = vmatprep.subr.mxu0 0.0
    %v3406 = vand.u32 %v2754, 4294901760
    %3407 = vmatpush1.msra.mxu0 %v3406
    %3408 = vmatprep.subr.mxu0 0.0
    %v3409 = vand.u32 %v2755, 4294901760
    %3410 = vmatpush1.msra.mxu0 %v3409
    %3411 = vmatprep.subr.mxu0 0.0
    %v3412 = vand.u32 %v2756, 4294901760
    %3413 = vmatpush1.msra.mxu0 %v3412
    %3414 = vmatprep.subr.mxu0 0.0
    %v3415 = vand.u32 %v2757, 4294901760
    %3416 = vmatpush1.msra.mxu0 %v3415
    %3417 = vmatprep.subr.mxu0 0.0
    %v3418 = vand.u32 %v2758, 4294901760
    %3419 = vmatpush1.msra.mxu0 %v3418
    %3420 = vmatprep.subr.mxu0 0.0
    %v3421 = vand.u32 %v2759, 4294901760
    %3422 = vmatpush1.msra.mxu0 %v3421
    %3423 = vmatprep.subr.mxu0 0.0
    %v3424 = vand.u32 %v2760, 4294901760
    %3425 = vmatpush1.msra.mxu0 %v3424
    %3426 = vmatprep.subr.mxu0 0.0
    %v3427 = vand.u32 %v2761, 4294901760
    %3428 = vmatpush1.msra.mxu0 %v3427
    %3429 = vmatprep.subr.mxu0 0.0
    %v3430 = vand.u32 %v2762, 4294901760
    %3431 = vmatpush1.msra.mxu0 %v3430
    %3432 = vmatprep.subr.mxu0 0.0
    %v3433 = vand.u32 %v2763, 4294901760
    %3434 = vmatpush1.msra.mxu0 %v3433
    %3435 = vmatprep.subr.mxu0 0.0
    %v3436 = vand.u32 %v2764, 4294901760
    %3437 = vmatpush1.msra.mxu0 %v3436
    %3438 = vmatprep.subr.mxu0 0.0
    %v3439 = vand.u32 %v2765, 4294901760
    %3440 = vmatpush1.msra.mxu0 %v3439
    %3441 = vmatprep.subr.mxu0 0.0
    %v3442 = vand.u32 %v2766, 4294901760
    %3443 = vmatpush1.msra.mxu0 %v3442
    %3444 = vmatprep.subr.mxu0 0.0
    %v3445 = vand.u32 %v2767, 4294901760
    %3446 = vmatpush1.msra.mxu0 %v3445
    %3447 = vmatprep.subr.mxu0 0.0
    %v3448 = vand.u32 %v2768, 4294901760
    %3449 = vmatpush1.msra.mxu0 %v3448
    %3450 = vmatprep.subr.mxu0 0.0
    %v3451 = vand.u32 %v2769, 4294901760
    %3452 = vmatpush1.msra.mxu0 %v3451
    %3453 = vmatprep.subr.mxu0 0.0
    %3454 = vmatpush1.msra.mxu0 0.0
    %3455 = vmatprep.subr.mxu0 0.0
    %3456 = vmatpush1.msra.mxu0 0.0
    %3457 = vmatprep.subr.mxu0 0.0
    %3458 = vmatpush1.msra.mxu0 0.0
    %3459 = vmatprep.subr.mxu0 0.0
    %3460 = vmatpush1.msra.mxu0 0.0
    %3461 = vmatprep.subr.mxu0 0.0
    %3462 = vmatpush1.msra.mxu0 0.0
    %3463 = vmatprep.subr.mxu0 0.0
    %3464 = vmatpush1.msra.mxu0 0.0
    %3465 = vmatprep.subr.mxu0 0.0
    %3466 = vmatpush1.msra.mxu0 0.0
    %3467 = vmatprep.subr.mxu0 0.0
    %3468 = vmatpush1.msra.mxu0 0.0
    %3469 = vmatprep.subr.mxu0 0.0
    %3470 = vmatpush1.msra.mxu0 0.0
    %3471 = vmatprep.subr.mxu0 0.0
    %3472 = vmatpush1.msra.mxu0 0.0
    %3473 = vmatprep.subr.mxu0 0.0
    %3474 = vmatpush1.msra.mxu0 0.0
    %3475 = vmatprep.subr.mxu0 0.0
    %3476 = vmatpush1.msra.mxu0 0.0
    %3477 = vmatprep.subr.mxu0 0.0
    %3478 = vmatpush1.msra.mxu0 0.0
    %3479 = vmatprep.subr.mxu0 0.0
    %3480 = vmatpush1.msra.mxu0 0.0
    %3481 = vmatprep.subr.mxu0 0.0
    %3482 = vmatpush1.msra.mxu0 0.0
    %3483 = vmatprep.subr.mxu0 0.0
    %3484 = vmatpush1.msra.mxu0 0.0
    %3485 = vmatprep.mubr.f32.mxu0 0.0
    %v3486 = vand.u32 %v2751, 4294901760
    %3487 = vmatmul.mubr.f32.gmra.mrb[0].mxu0 %v3486
    %v3488 = vpop.f32.mrb[0].mxu0
    %v3489 = vadd.f32 %v3390, %v3488
    %v3490 = vpop.f32.mrb[0].mxu0
    %3491 = vmatprep.mubr.f32.mxu0 0.0
    %v3492 = vand.u32 %v2752, 4294901760
    %3493 = vmatmul.mubr.f32.gmra.mrb[0].mxu0 %v3492
    %v3494 = vpop.f32.mrb[0].mxu0
    %v3495 = vadd.f32 %v3396, %v3494
    %v3496 = vpop.f32.mrb[0].mxu0
    %3497 = vmatprep.mubr.f32.mxu0 0.0
    %v3498 = vand.u32 %v2753, 4294901760
    %3499 = vmatmul.mubr.f32.gmra.mrb[0].mxu0 %v3498
    %v3500 = vpop.f32.mrb[0].mxu0
    %v3501 = vadd.f32 %v3402, %v3500
    %v3502 = vpop.f32.mrb[0].mxu0
    %3503 = vdwg.mxu0
    %v3504 = vmax.f32 %v3489, 0.0
    %v3505 = vmax.f32 %v3495, 0.0
    %v3506 = vmax.f32 %v3501, 0.0
    %v3507 = vld [vmem:[%s15] sm:$0xff]
    %v3508 = vld [vmem:[%s15 + $0x8] sm:$0xff]
    %v3509 = vld [vmem:[%s15 + $0x10] sm:$0xff]
    %v3510 = vld [vmem:[%s15 + $0x18] sm:$0xff]
    %v3511 = vld [vmem:[%s15 + $0x20] sm:$0xff]
    %v3512 = vld [vmem:[%s15 + $0x28] sm:$0xff]
    %v3513 = vld [vmem:[%s15 + $0x30] sm:$0xff]
    %v3514 = vld [vmem:[%s15 + $0x38] sm:$0xff]
    %v3515 = vld [vmem:[%s15 + $0x40] sm:$0xff]
    %v3516 = vld [vmem:[%s15 + $0x48] sm:$0xff]
    %v3517 = vld [vmem:[%s15 + $0x50] sm:$0xff]
    %v3518 = vld [vmem:[%s15 + $0x58] sm:$0xff]
    %v3519 = vld [vmem:[%s15 + $0x60] sm:$0xff]
    %v3520 = vld [vmem:[%s15 + $0x68] sm:$0xff]
    %v3521 = vld [vmem:[%s15 + $0x70] sm:$0xff]
    %v3522 = vld [vmem:[%s15 + $0x78] sm:$0xff]
    %v3523 = vld [vmem:[%s16] sm:$0xff]
    %v3524 = vld [vmem:[%s16 + $0x8] sm:$0xff]
    %v3525 = vld [vmem:[%s16 + $0x10] sm:$0xff]
    %v3526 = vld [vmem:[%s16 + $0x18] sm:$0xff]
    %v3527 = vld [vmem:[%s16 + $0x20] sm:$0xff]
    %v3528 = vld [vmem:[%s16 + $0x28] sm:$0xff]
    %v3529 = vld [vmem:[%s16 + $0x30] sm:$0xff]
    %v3530 = vld [vmem:[%s16 + $0x38] sm:$0xff]
    %v3531 = vld [vmem:[%s16 + $0x40] sm:$0xff]
    %v3532 = vld [vmem:[%s16 + $0x48] sm:$0xff]
    %v3533 = vld [vmem:[%s16 + $0x50] sm:$0xff]
    %v3534 = vld [vmem:[%s16 + $0x58] sm:$0xff]
    %v3535 = vld [vmem:[%s16 + $0x60] sm:$0xff]
    %v3536 = vld [vmem:[%s16 + $0x68] sm:$0xff]
    %v3537 = vld [vmem:[%s16 + $0x70] sm:$0xff]
    %v3538 = vld [vmem:[%s16 + $0x78] sm:$0xff]
    %3539 = vmatprep.subr.mxu0 0.0
    %v3540 = vand.u32 %v3523, 4294901760
    %3541 = vmatpush1.msra.mxu0 %v3540
    %3542 = vmatprep.subr.mxu0 0.0
    %v3543 = vand.u32 %v3524, 4294901760
    %3544 = vmatpush1.msra.mxu0 %v3543
    %3545 = vmatprep.subr.mxu0 0.0
    %v3546 = vand.u32 %v3525, 4294901760
    %3547 = vmatpush1.msra.mxu0 %v3546
    %3548 = vmatprep.subr.mxu0 0.0
    %v3549 = vand.u32 %v3526, 4294901760
    %3550 = vmatpush1.msra.mxu0 %v3549
    %3551 = vmatprep.subr.mxu0 0.0
    %v3552 = vand.u32 %v3527, 4294901760
    %3553 = vmatpush1.msra.mxu0 %v3552
    %3554 = vmatprep.subr.mxu0 0.0
    %v3555 = vand.u32 %v3528, 4294901760
    %3556 = vmatpush1.msra.mxu0 %v3555
    %3557 = vmatprep.subr.mxu0 0.0
    %v3558 = vand.u32 %v3529, 4294901760
    %3559 = vmatpush1.msra.mxu0 %v3558
    %3560 = vmatprep.subr.mxu0 0.0
    %v3561 = vand.u32 %v3530, 4294901760
    %3562 = vmatpush1.msra.mxu0 %v3561
    %3563 = vmatprep.subr.mxu0 0.0
    %v3564 = vand.u32 %v3531, 4294901760
    %3565 = vmatpush1.msra.mxu0 %v3564
    %3566 = vmatprep.subr.mxu0 0.0
    %v3567 = vand.u32 %v3532, 4294901760
    %3568 = vmatpush1.msra.mxu0 %v3567
    %3569 = vmatprep.subr.mxu0 0.0
    %v3570 = vand.u32 %v3533, 4294901760
    %3571 = vmatpush1.msra.mxu0 %v3570
    %3572 = vmatprep.subr.mxu0 0.0
    %v3573 = vand.u32 %v3534, 4294901760
    %3574 = vmatpush1.msra.mxu0 %v3573
    %3575 = vmatprep.subr.mxu0 0.0
    %v3576 = vand.u32 %v3535, 4294901760
    %3577 = vmatpush1.msra.mxu0 %v3576
    %3578 = vmatprep.subr.mxu0 0.0
    %v3579 = vand.u32 %v3536, 4294901760
    %3580 = vmatpush1.msra.mxu0 %v3579
    %3581 = vmatprep.subr.mxu0 0.0
    %v3582 = vand.u32 %v3537, 4294901760
    %3583 = vmatpush1.msra.mxu0 %v3582
    %3584 = vmatprep.subr.mxu0 0.0
    %v3585 = vand.u32 %v3538, 4294901760
    %3586 = vmatpush1.msra.mxu0 %v3585
    %3587 = vmatprep.subr.mxu0 0.0
    %3588 = vmatpush1.msra.mxu0 0.0
    %3589 = vmatprep.subr.mxu0 0.0
    %3590 = vmatpush1.msra.mxu0 0.0
    %3591 = vmatprep.subr.mxu0 0.0
    %3592 = vmatpush1.msra.mxu0 0.0
    %3593 = vmatprep.subr.mxu0 0.0
    %3594 = vmatpush1.msra.mxu0 0.0
    %3595 = vmatprep.subr.mxu0 0.0
    %3596 = vmatpush1.msra.mxu0 0.0
    %3597 = vmatprep.subr.mxu0 0.0
    %3598 = vmatpush1.msra.mxu0 0.0
    %3599 = vmatprep.subr.mxu0 0.0
    %3600 = vmatpush1.msra.mxu0 0.0
    %3601 = vmatprep.subr.mxu0 0.0
    %3602 = vmatpush1.msra.mxu0 0.0
    %3603 = vmatprep.subr.mxu0 0.0
    %3604 = vmatpush1.msra.mxu0 0.0
    %3605 = vmatprep.subr.mxu0 0.0
    %3606 = vmatpush1.msra.mxu0 0.0
    %3607 = vmatprep.subr.mxu0 0.0
    %3608 = vmatpush1.msra.mxu0 0.0
    %3609 = vmatprep.subr.mxu0 0.0
    %3610 = vmatpush1.msra.mxu0 0.0
    %3611 = vmatprep.subr.mxu0 0.0
    %3612 = vmatpush1.msra.mxu0 0.0
    %3613 = vmatprep.subr.mxu0 0.0
    %3614 = vmatpush1.msra.mxu0 0.0
    %3615 = vmatprep.subr.mxu0 0.0
    %3616 = vmatpush1.msra.mxu0 0.0
    %3617 = vmatprep.subr.mxu0 0.0
    %3618 = vmatpush1.msra.mxu0 0.0
    %3619 = vmatprep.mubr.f32.mxu0 0.0
    %v3620 = vand.u32 %v3504, 4294901760
    %v3621 = vsub.f32 %v3504, %v3620
    %v3622 = vand.u32 %v3621, 4294901760
    %v3623 = vsub.f32 %v3621, %v3622
    %v3624 = vand.u32 %v3623, 4294901760
    %3625 = vmatmul.mubr.f32.gmra.mrb[0].mxu0 %v3624
    %v3626 = vpop.f32.mrb[0].mxu0
    %v3627 = vadd.f32 0.0, %v3626
    %v3628 = vpop.f32.mrb[0].mxu0
    %3629 = vmatprep.mubr.f32.mxu0 0.0
    %v3630 = vand.u32 %v3505, 4294901760
    %v3631 = vsub.f32 %v3505, %v3630
    %v3632 = vand.u32 %v3631, 4294901760
    %v3633 = vsub.f32 %v3631, %v3632
    %v3634 = vand.u32 %v3633, 4294901760
    %3635 = vmatmul.mubr.f32.gmra.mrb[0].mxu0 %v3634
    %v3636 = vpop.f32.mrb[0].mxu0
    %v3637 = vadd.f32 0.0, %v3636
    %v3638 = vpop.f32.mrb[0].mxu0
    %3639 = vmatprep.mubr.f32.mxu0 0.0
    %v3640 = vand.u32 %v3506, 4294901760
    %v3641 = vsub.f32 %v3506, %v3640
    %v3642 = vand.u32 %v3641, 4294901760
    %v3643 = vsub.f32 %v3641, %v3642
    %v3644 = vand.u32 %v3643, 4294901760
    %3645 = vmatmul.mubr.f32.gmra.mrb[0].mxu0 %v3644
    %v3646 = vpop.f32.mrb[0].mxu0
    %v3647 = vadd.f32 0.0, %v3646
    %v3648 = vpop.f32.mrb[0].mxu0
    %3649 = vdwg.mxu0
    %3650 = vmatprep.subr.mxu0 0.0
    %v3651 = vand.u32 %v3523, 4294901760
    %v3652 = vsub.f32 %v3523, %v3651
    %v3653 = vand.u32 %v3652, 4294901760
    %v3654 = vsub.f32 %v3652, %v3653
    %v3655 = vand.u32 %v3654, 4294901760
    %3656 = vmatpush1.msra.mxu0 %v3655
    %3657 = vmatprep.subr.mxu0 0.0
    %v3658 = vand.u32 %v3524, 4294901760
    %v3659 = vsub.f32 %v3524, %v3658
    %v3660 = vand.u32 %v3659, 4294901760
    %v3661 = vsub.f32 %v3659, %v3660
    %v3662 = vand.u32 %v3661, 4294901760
    %3663 = vmatpush1.msra.mxu0 %v3662
    %3664 = vmatprep.subr.mxu0 0.0
    %v3665 = vand.u32 %v3525, 4294901760
    %v3666 = vsub.f32 %v3525, %v3665
    %v3667 = vand.u32 %v3666, 4294901760
    %v3668 = vsub.f32 %v3666, %v3667
    %v3669 = vand.u32 %v3668, 4294901760
    %3670 = vmatpush1.msra.mxu0 %v3669
    %3671 = vmatprep.subr.mxu0 0.0
    %v3672 = vand.u32 %v3526, 4294901760
    %v3673 = vsub.f32 %v3526, %v3672
    %v3674 = vand.u32 %v3673, 4294901760
    %v3675 = vsub.f32 %v3673, %v3674
    %v3676 = vand.u32 %v3675, 4294901760
    %3677 = vmatpush1.msra.mxu0 %v3676
    %3678 = vmatprep.subr.mxu0 0.0
    %v3679 = vand.u32 %v3527, 4294901760
    %v3680 = vsub.f32 %v3527, %v3679
    %v3681 = vand.u32 %v3680, 4294901760
    %v3682 = vsub.f32 %v3680, %v3681
    %v3683 = vand.u32 %v3682, 4294901760
    %3684 = vmatpush1.msra.mxu0 %v3683
    %3685 = vmatprep.subr.mxu0 0.0
    %v3686 = vand.u32 %v3528, 4294901760
    %v3687 = vsub.f32 %v3528, %v3686
    %v3688 = vand.u32 %v3687, 4294901760
    %v3689 = vsub.f32 %v3687, %v3688
    %v3690 = vand.u32 %v3689, 4294901760
    %3691 = vmatpush1.msra.mxu0 %v3690
    %3692 = vmatprep.subr.mxu0 0.0
    %v3693 = vand.u32 %v3529, 4294901760
    %v3694 = vsub.f32 %v3529, %v3693
    %v3695 = vand.u32 %v3694, 4294901760
    %v3696 = vsub.f32 %v3694, %v3695
    %v3697 = vand.u32 %v3696, 4294901760
    %3698 = vmatpush1.msra.mxu0 %v3697
    %3699 = vmatprep.subr.mxu0 0.0
    %v3700 = vand.u32 %v3530, 4294901760
    %v3701 = vsub.f32 %v3530, %v3700
    %v3702 = vand.u32 %v3701, 4294901760
    %v3703 = vsub.f32 %v3701, %v3702
    %v3704 = vand.u32 %v3703, 4294901760
    %3705 = vmatpush1.msra.mxu0 %v3704
    %3706 = vmatprep.subr.mxu0 0.0
    %v3707 = vand.u32 %v3531, 4294901760
    %v3708 = vsub.f32 %v3531, %v3707
    %v3709 = vand.u32 %v3708, 4294901760
    %v3710 = vsub.f32 %v3708, %v3709
    %v3711 = vand.u32 %v3710, 4294901760
    %3712 = vmatpush1.msra.mxu0 %v3711
    %3713 = vmatprep.subr.mxu0 0.0
    %v3714 = vand.u32 %v3532, 4294901760
    %v3715 = vsub.f32 %v3532, %v3714
    %v3716 = vand.u32 %v3715, 4294901760
    %v3717 = vsub.f32 %v3715, %v3716
    %v3718 = vand.u32 %v3717, 4294901760
    %3719 = vmatpush1.msra.mxu0 %v3718
    %3720 = vmatprep.subr.mxu0 0.0
    %v3721 = vand.u32 %v3533, 4294901760
    %v3722 = vsub.f32 %v3533, %v3721
    %v3723 = vand.u32 %v3722, 4294901760
    %v3724 = vsub.f32 %v3722, %v3723
    %v3725 = vand.u32 %v3724, 4294901760
    %3726 = vmatpush1.msra.mxu0 %v3725
    %3727 = vmatprep.subr.mxu0 0.0
    %v3728 = vand.u32 %v3534, 4294901760
    %v3729 = vsub.f32 %v3534, %v3728
    %v3730 = vand.u32 %v3729, 4294901760
    %v3731 = vsub.f32 %v3729, %v3730
    %v3732 = vand.u32 %v3731, 4294901760
    %3733 = vmatpush1.msra.mxu0 %v3732
    %3734 = vmatprep.subr.mxu0 0.0
    %v3735 = vand.u32 %v3535, 4294901760
    %v3736 = vsub.f32 %v3535, %v3735
    %v3737 = vand.u32 %v3736, 4294901760
    %v3738 = vsub.f32 %v3736, %v3737
    %v3739 = vand.u32 %v3738, 4294901760
    %3740 = vmatpush1.msra.mxu0 %v3739
    %3741 = vmatprep.subr.mxu0 0.0
    %v3742 = vand.u32 %v3536, 4294901760
    %v3743 = vsub.f32 %v3536, %v3742
    %v3744 = vand.u32 %v3743, 4294901760
    %v3745 = vsub.f32 %v3743, %v3744
    %v3746 = vand.u32 %v3745, 4294901760
    %3747 = vmatpush1.msra.mxu0 %v3746
    %3748 = vmatprep.subr.mxu0 0.0
    %v3749 = vand.u32 %v3537, 4294901760
    %v3750 = vsub.f32 %v3537, %v3749
    %v3751 = vand.u32 %v3750, 4294901760
    %v3752 = vsub.f32 %v3750, %v3751
    %v3753 = vand.u32 %v3752, 4294901760
    %3754 = vmatpush1.msra.mxu0 %v3753
    %3755 = vmatprep.subr.mxu0 0.0
    %v3756 = vand.u32 %v3538, 4294901760
    %v3757 = vsub.f32 %v3538, %v3756
    %v3758 = vand.u32 %v3757, 4294901760
    %v3759 = vsub.f32 %v3757, %v3758
    %v3760 = vand.u32 %v3759, 4294901760
    %3761 = vmatpush1.msra.mxu0 %v3760
    %3762 = vmatprep.subr.mxu0 0.0
    %3763 = vmatpush1.msra.mxu0 0.0
    %3764 = vmatprep.subr.mxu0 0.0
    %3765 = vmatpush1.msra.mxu0 0.0
    %3766 = vmatprep.subr.mxu0 0.0
    %3767 = vmatpush1.msra.mxu0 0.0
    %3768 = vmatprep.subr.mxu0 0.0
    %3769 = vmatpush1.msra.mxu0 0.0
    %3770 = vmatprep.subr.mxu0 0.0
    %3771 = vmatpush1.msra.mxu0 0.0
    %3772 = vmatprep.subr.mxu0 0.0
    %3773 = vmatpush1.msra.mxu0 0.0
    %3774 = vmatprep.subr.mxu0 0.0
    %3775 = vmatpush1.msra.mxu0 0.0
    %3776 = vmatprep.subr.mxu0 0.0
    %3777 = vmatpush1.msra.mxu0 0.0
    %3778 = vmatprep.subr.mxu0 0.0
    %3779 = vmatpush1.msra.mxu0 0.0
    %3780 = vmatprep.subr.mxu0 0.0
    %3781 = vmatpush1.msra.mxu0 0.0
    %3782 = vmatprep.subr.mxu0 0.0
    %3783 = vmatpush1.msra.mxu0 0.0
    %3784 = vmatprep.subr.mxu0 0.0
    %3785 = vmatpush1.msra.mxu0 0.0
    %3786 = vmatprep.subr.mxu0 0.0
    %3787 = vmatpush1.msra.mxu0 0.0
    %3788 = vmatprep.subr.mxu0 0.0
    %3789 = vmatpush1.msra.mxu0 0.0
    %3790 = vmatprep.subr.mxu0 0.0
    %3791 = vmatpush1.msra.mxu0 0.0
    %3792 = vmatprep.subr.mxu0 0.0
    %3793 = vmatpush1.msra.mxu0 0.0
    %3794 = vmatprep.mubr.f32.mxu0 0.0
    %v3795 = vand.u32 %v3504, 4294901760
    %3796 = vmatmul.mubr.f32.gmra.mrb[0].mxu0 %v3795
    %v3797 = vpop.f32.mrb[0].mxu0
    %v3798 = vadd.f32 %v3627, %v3797
    %v3799 = vpop.f32.mrb[0].mxu0
    %3800 = vmatprep.mubr.f32.mxu0 0.0
    %v3801 = vand.u32 %v3505, 4294901760
    %3802 = vmatmul.mubr.f32.gmra.mrb[0].mxu0 %v3801
    %v3803 = vpop.f32.mrb[0].mxu0
    %v3804 = vadd.f32 %v3637, %v3803
    %v3805 = vpop.f32.mrb[0].mxu0
    %3806 = vmatprep.mubr.f32.mxu0 0.0
    %v3807 = vand.u32 %v3506, 4294901760
    %3808 = vmatmul.mubr.f32.gmra.mrb[0].mxu0 %v3807
    %v3809 = vpop.f32.mrb[0].mxu0
    %v3810 = vadd.f32 %v3647, %v3809
    %v3811 = vpop.f32.mrb[0].mxu0
    %3812 = vdwg.mxu0
    %3813 = vmatprep.subr.mxu0 0.0
    %v3814 = vand.u32 %v3523, 4294901760
    %v3815 = vsub.f32 %v3523, %v3814
    %3816 = vmatpush1.msra.mxu0 %v3815
    %3817 = vmatprep.subr.mxu0 0.0
    %v3818 = vand.u32 %v3524, 4294901760
    %v3819 = vsub.f32 %v3524, %v3818
    %3820 = vmatpush1.msra.mxu0 %v3819
    %3821 = vmatprep.subr.mxu0 0.0
    %v3822 = vand.u32 %v3525, 4294901760
    %v3823 = vsub.f32 %v3525, %v3822
    %3824 = vmatpush1.msra.mxu0 %v3823
    %3825 = vmatprep.subr.mxu0 0.0
    %v3826 = vand.u32 %v3526, 4294901760
    %v3827 = vsub.f32 %v3526, %v3826
    %3828 = vmatpush1.msra.mxu0 %v3827
    %3829 = vmatprep.subr.mxu0 0.0
    %v3830 = vand.u32 %v3527, 4294901760
    %v3831 = vsub.f32 %v3527, %v3830
    %3832 = vmatpush1.msra.mxu0 %v3831
    %3833 = vmatprep.subr.mxu0 0.0
    %v3834 = vand.u32 %v3528, 4294901760
    %v3835 = vsub.f32 %v3528, %v3834
    %3836 = vmatpush1.msra.mxu0 %v3835
    %3837 = vmatprep.subr.mxu0 0.0
    %v3838 = vand.u32 %v3529, 4294901760
    %v3839 = vsub.f32 %v3529, %v3838
    %3840 = vmatpush1.msra.mxu0 %v3839
    %3841 = vmatprep.subr.mxu0 0.0
    %v3842 = vand.u32 %v3530, 4294901760
    %v3843 = vsub.f32 %v3530, %v3842
    %3844 = vmatpush1.msra.mxu0 %v3843
    %3845 = vmatprep.subr.mxu0 0.0
    %v3846 = vand.u32 %v3531, 4294901760
    %v3847 = vsub.f32 %v3531, %v3846
    %3848 = vmatpush1.msra.mxu0 %v3847
    %3849 = vmatprep.subr.mxu0 0.0
    %v3850 = vand.u32 %v3532, 4294901760
    %v3851 = vsub.f32 %v3532, %v3850
    %3852 = vmatpush1.msra.mxu0 %v3851
    %3853 = vmatprep.subr.mxu0 0.0
    %v3854 = vand.u32 %v3533, 4294901760
    %v3855 = vsub.f32 %v3533, %v3854
    %3856 = vmatpush1.msra.mxu0 %v3855
    %3857 = vmatprep.subr.mxu0 0.0
    %v3858 = vand.u32 %v3534, 4294901760
    %v3859 = vsub.f32 %v3534, %v3858
    %3860 = vmatpush1.msra.mxu0 %v3859
    %3861 = vmatprep.subr.mxu0 0.0
    %v3862 = vand.u32 %v3535, 4294901760
    %v3863 = vsub.f32 %v3535, %v3862
    %3864 = vmatpush1.msra.mxu0 %v3863
    %3865 = vmatprep.subr.mxu0 0.0
    %v3866 = vand.u32 %v3536, 4294901760
    %v3867 = vsub.f32 %v3536, %v3866
    %3868 = vmatpush1.msra.mxu0 %v3867
    %3869 = vmatprep.subr.mxu0 0.0
    %v3870 = vand.u32 %v3537, 4294901760
    %v3871 = vsub.f32 %v3537, %v3870
    %3872 = vmatpush1.msra.mxu0 %v3871
    %3873 = vmatprep.subr.mxu0 0.0
    %v3874 = vand.u32 %v3538, 4294901760
    %v3875 = vsub.f32 %v3538, %v3874
    %3876 = vmatpush1.msra.mxu0 %v3875
    %3877 = vmatprep.subr.mxu0 0.0
    %3878 = vmatpush1.msra.mxu0 0.0
    %3879 = vmatprep.subr.mxu0 0.0
    %3880 = vmatpush1.msra.mxu0 0.0
    %3881 = vmatprep.subr.mxu0 0.0
    %3882 = vmatpush1.msra.mxu0 0.0
    %3883 = vmatprep.subr.mxu0 0.0
    %3884 = vmatpush1.msra.mxu0 0.0
    %3885 = vmatprep.subr.mxu0 0.0
    %3886 = vmatpush1.msra.mxu0 0.0
    %3887 = vmatprep.subr.mxu0 0.0
    %3888 = vmatpush1.msra.mxu0 0.0
    %3889 = vmatprep.subr.mxu0 0.0
    %3890 = vmatpush1.msra.mxu0 0.0
    %3891 = vmatprep.subr.mxu0 0.0
    %3892 = vmatpush1.msra.mxu0 0.0
    %3893 = vmatprep.subr.mxu0 0.0
    %3894 = vmatpush1.msra.mxu0 0.0
    %3895 = vmatprep.subr.mxu0 0.0
    %3896 = vmatpush1.msra.mxu0 0.0
    %3897 = vmatprep.subr.mxu0 0.0
    %3898 = vmatpush1.msra.mxu0 0.0
    %3899 = vmatprep.subr.mxu0 0.0
    %3900 = vmatpush1.msra.mxu0 0.0
    %3901 = vmatprep.subr.mxu0 0.0
    %3902 = vmatpush1.msra.mxu0 0.0
    %3903 = vmatprep.subr.mxu0 0.0
    %3904 = vmatpush1.msra.mxu0 0.0
    %3905 = vmatprep.subr.mxu0 0.0
    %3906 = vmatpush1.msra.mxu0 0.0
    %3907 = vmatprep.subr.mxu0 0.0
    %3908 = vmatpush1.msra.mxu0 0.0
    %3909 = vmatprep.mubr.f32.mxu0 0.0
    %v3910 = vand.u32 %v3504, 4294901760
    %v3911 = vsub.f32 %v3504, %v3910
    %3912 = vmatmul.mubr.f32.gmra.mrb[0].mxu0 %v3911
    %v3913 = vpop.f32.mrb[0].mxu0
    %v3914 = vadd.f32 %v3798, %v3913
    %v3915 = vpop.f32.mrb[0].mxu0
    %3916 = vmatprep.mubr.f32.mxu0 0.0
    %v3917 = vand.u32 %v3505, 4294901760
    %v3918 = vsub.f32 %v3505, %v3917
    %3919 = vmatmul.mubr.f32.gmra.mrb[0].mxu0 %v3918
    %v3920 = vpop.f32.mrb[0].mxu0
    %v3921 = vadd.f32 %v3804, %v3920
    %v3922 = vpop.f32.mrb[0].mxu0
    %3923 = vmatprep.mubr.f32.mxu0 0.0
    %v3924 = vand.u32 %v3506, 4294901760
    %v3925 = vsub.f32 %v3506, %v3924
    %3926 = vmatmul.mubr.f32.gmra.mrb[0].mxu0 %v3925
    %v3927 = vpop.f32.mrb[0].mxu0
    %v3928 = vadd.f32 %v3810, %v3927
    %v3929 = vpop.f32.mrb[0].mxu0
    %3930 = vdwg.mxu0
    %3931 = vmatprep.subr.mxu0 0.0
    %v3932 = vand.u32 %v3523, 4294901760
    %3933 = vmatpush1.msra.mxu0 %v3932
    %3934 = vmatprep.subr.mxu0 0.0
    %v3935 = vand.u32 %v3524, 4294901760
    %3936 = vmatpush1.msra.mxu0 %v3935
    %3937 = vmatprep.subr.mxu0 0.0
    %v3938 = vand.u32 %v3525, 4294901760
    %3939 = vmatpush1.msra.mxu0 %v3938
    %3940 = vmatprep.subr.mxu0 0.0
    %v3941 = vand.u32 %v3526, 4294901760
    %3942 = vmatpush1.msra.mxu0 %v3941
    %3943 = vmatprep.subr.mxu0 0.0
    %v3944 = vand.u32 %v3527, 4294901760
    %3945 = vmatpush1.msra.mxu0 %v3944
    %3946 = vmatprep.subr.mxu0 0.0
    %v3947 = vand.u32 %v3528, 4294901760
    %3948 = vmatpush1.msra.mxu0 %v3947
    %3949 = vmatprep.subr.mxu0 0.0
    %v3950 = vand.u32 %v3529, 4294901760
    %3951 = vmatpush1.msra.mxu0 %v3950
    %3952 = vmatprep.subr.mxu0 0.0
    %v3953 = vand.u32 %v3530, 4294901760
    %3954 = vmatpush1.msra.mxu0 %v3953
    %3955 = vmatprep.subr.mxu0 0.0
    %v3956 = vand.u32 %v3531, 4294901760
    %3957 = vmatpush1.msra.mxu0 %v3956
    %3958 = vmatprep.subr.mxu0 0.0
    %v3959 = vand.u32 %v3532, 4294901760
    %3960 = vmatpush1.msra.mxu0 %v3959
    %3961 = vmatprep.subr.mxu0 0.0
    %v3962 = vand.u32 %v3533, 4294901760
    %3963 = vmatpush1.msra.mxu0 %v3962
    %3964 = vmatprep.subr.mxu0 0.0
    %v3965 = vand.u32 %v3534, 4294901760
    %3966 = vmatpush1.msra.mxu0 %v3965
    %3967 = vmatprep.subr.mxu0 0.0
    %v3968 = vand.u32 %v3535, 4294901760
    %3969 = vmatpush1.msra.mxu0 %v3968
    %3970 = vmatprep.subr.mxu0 0.0
    %v3971 = vand.u32 %v3536, 4294901760
    %3972 = vmatpush1.msra.mxu0 %v3971
    %3973 = vmatprep.subr.mxu0 0.0
    %v3974 = vand.u32 %v3537, 4294901760
    %3975 = vmatpush1.msra.mxu0 %v3974
    %3976 = vmatprep.subr.mxu0 0.0
    %v3977 = vand.u32 %v3538, 4294901760
    %3978 = vmatpush1.msra.mxu0 %v3977
    %3979 = vmatprep.subr.mxu0 0.0
    %3980 = vmatpush1.msra.mxu0 0.0
    %3981 = vmatprep.subr.mxu0 0.0
    %3982 = vmatpush1.msra.mxu0 0.0
    %3983 = vmatprep.subr.mxu0 0.0
    %3984 = vmatpush1.msra.mxu0 0.0
    %3985 = vmatprep.subr.mxu0 0.0
    %3986 = vmatpush1.msra.mxu0 0.0
    %3987 = vmatprep.subr.mxu0 0.0
    %3988 = vmatpush1.msra.mxu0 0.0
    %3989 = vmatprep.subr.mxu0 0.0
    %3990 = vmatpush1.msra.mxu0 0.0
    %3991 = vmatprep.subr.mxu0 0.0
    %3992 = vmatpush1.msra.mxu0 0.0
    %3993 = vmatprep.subr.mxu0 0.0
    %3994 = vmatpush1.msra.mxu0 0.0
    %3995 = vmatprep.subr.mxu0 0.0
    %3996 = vmatpush1.msra.mxu0 0.0
    %3997 = vmatprep.subr.mxu0 0.0
    %3998 = vmatpush1.msra.mxu0 0.0
    %3999 = vmatprep.subr.mxu0 0.0
    %4000 = vmatpush1.msra.mxu0 0.0
    %4001 = vmatprep.subr.mxu0 0.0
    %4002 = vmatpush1.msra.mxu0 0.0
    %4003 = vmatprep.subr.mxu0 0.0
    %4004 = vmatpush1.msra.mxu0 0.0
    %4005 = vmatprep.subr.mxu0 0.0
    %4006 = vmatpush1.msra.mxu0 0.0
    %4007 = vmatprep.subr.mxu0 0.0
    %4008 = vmatpush1.msra.mxu0 0.0
    %4009 = vmatprep.subr.mxu0 0.0
    %4010 = vmatpush1.msra.mxu0 0.0
    %4011 = vmatprep.mubr.f32.mxu0 0.0
    %v4012 = vand.u32 %v3504, 4294901760
    %v4013 = vsub.f32 %v3504, %v4012
    %v4014 = vand.u32 %v4013, 4294901760
    %4015 = vmatmul.mubr.f32.gmra.mrb[0].mxu0 %v4014
    %v4016 = vpop.f32.mrb[0].mxu0
    %v4017 = vadd.f32 %v3914, %v4016
    %v4018 = vpop.f32.mrb[0].mxu0
    %4019 = vmatprep.mubr.f32.mxu0 0.0
    %v4020 = vand.u32 %v3505, 4294901760
    %v4021 = vsub.f32 %v3505, %v4020
    %v4022 = vand.u32 %v4021, 4294901760
    %4023 = vmatmul.mubr.f32.gmra.mrb[0].mxu0 %v4022
    %v4024 = vpop.f32.mrb[0].mxu0
    %v4025 = vadd.f32 %v3921, %v4024
    %v4026 = vpop.f32.mrb[0].mxu0
    %4027 = vmatprep.mubr.f32.mxu0 0.0
    %v4028 = vand.u32 %v3506, 4294901760
    %v4029 = vsub.f32 %v3506, %v4028
    %v4030 = vand.u32 %v4029, 4294901760
    %4031 = vmatmul.mubr.f32.gmra.mrb[0].mxu0 %v4030
    %v4032 = vpop.f32.mrb[0].mxu0
    %v4033 = vadd.f32 %v3928, %v4032
    %v4034 = vpop.f32.mrb[0].mxu0
    %4035 = vdwg.mxu0
    %4036 = vmatprep.subr.mxu0 0.0
    %v4037 = vand.u32 %v3523, 4294901760
    %v4038 = vsub.f32 %v3523, %v4037
    %v4039 = vand.u32 %v4038, 4294901760
    %4040 = vmatpush1.msra.mxu0 %v4039
    %4041 = vmatprep.subr.mxu0 0.0
    %v4042 = vand.u32 %v3524, 4294901760
    %v4043 = vsub.f32 %v3524, %v4042
    %v4044 = vand.u32 %v4043, 4294901760
    %4045 = vmatpush1.msra.mxu0 %v4044
    %4046 = vmatprep.subr.mxu0 0.0
    %v4047 = vand.u32 %v3525, 4294901760
    %v4048 = vsub.f32 %v3525, %v4047
    %v4049 = vand.u32 %v4048, 4294901760
    %4050 = vmatpush1.msra.mxu0 %v4049
    %4051 = vmatprep.subr.mxu0 0.0
    %v4052 = vand.u32 %v3526, 4294901760
    %v4053 = vsub.f32 %v3526, %v4052
    %v4054 = vand.u32 %v4053, 4294901760
    %4055 = vmatpush1.msra.mxu0 %v4054
    %4056 = vmatprep.subr.mxu0 0.0
    %v4057 = vand.u32 %v3527, 4294901760
    %v4058 = vsub.f32 %v3527, %v4057
    %v4059 = vand.u32 %v4058, 4294901760
    %4060 = vmatpush1.msra.mxu0 %v4059
    %4061 = vmatprep.subr.mxu0 0.0
    %v4062 = vand.u32 %v3528, 4294901760
    %v4063 = vsub.f32 %v3528, %v4062
    %v4064 = vand.u32 %v4063, 4294901760
    %4065 = vmatpush1.msra.mxu0 %v4064
    %4066 = vmatprep.subr.mxu0 0.0
    %v4067 = vand.u32 %v3529, 4294901760
    %v4068 = vsub.f32 %v3529, %v4067
    %v4069 = vand.u32 %v4068, 4294901760
    %4070 = vmatpush1.msra.mxu0 %v4069
    %4071 = vmatprep.subr.mxu0 0.0
    %v4072 = vand.u32 %v3530, 4294901760
    %v4073 = vsub.f32 %v3530, %v4072
    %v4074 = vand.u32 %v4073, 4294901760
    %4075 = vmatpush1.msra.mxu0 %v4074
    %4076 = vmatprep.subr.mxu0 0.0
    %v4077 = vand.u32 %v3531, 4294901760
    %v4078 = vsub.f32 %v3531, %v4077
    %v4079 = vand.u32 %v4078, 4294901760
    %4080 = vmatpush1.msra.mxu0 %v4079
    %4081 = vmatprep.subr.mxu0 0.0
    %v4082 = vand.u32 %v3532, 4294901760
    %v4083 = vsub.f32 %v3532, %v4082
    %v4084 = vand.u32 %v4083, 4294901760
    %4085 = vmatpush1.msra.mxu0 %v4084
    %4086 = vmatprep.subr.mxu0 0.0
    %v4087 = vand.u32 %v3533, 4294901760
    %v4088 = vsub.f32 %v3533, %v4087
    %v4089 = vand.u32 %v4088, 4294901760
    %4090 = vmatpush1.msra.mxu0 %v4089
    %4091 = vmatprep.subr.mxu0 0.0
    %v4092 = vand.u32 %v3534, 4294901760
    %v4093 = vsub.f32 %v3534, %v4092
    %v4094 = vand.u32 %v4093, 4294901760
    %4095 = vmatpush1.msra.mxu0 %v4094
    %4096 = vmatprep.subr.mxu0 0.0
    %v4097 = vand.u32 %v3535, 4294901760
    %v4098 = vsub.f32 %v3535, %v4097
    %v4099 = vand.u32 %v4098, 4294901760
    %4100 = vmatpush1.msra.mxu0 %v4099
    %4101 = vmatprep.subr.mxu0 0.0
    %v4102 = vand.u32 %v3536, 4294901760
    %v4103 = vsub.f32 %v3536, %v4102
    %v4104 = vand.u32 %v4103, 4294901760
    %4105 = vmatpush1.msra.mxu0 %v4104
    %4106 = vmatprep.subr.mxu0 0.0
    %v4107 = vand.u32 %v3537, 4294901760
    %v4108 = vsub.f32 %v3537, %v4107
    %v4109 = vand.u32 %v4108, 4294901760
    %4110 = vmatpush1.msra.mxu0 %v4109
    %4111 = vmatprep.subr.mxu0 0.0
    %v4112 = vand.u32 %v3538, 4294901760
    %v4113 = vsub.f32 %v3538, %v4112
    %v4114 = vand.u32 %v4113, 4294901760
    %4115 = vmatpush1.msra.mxu0 %v4114
    %4116 = vmatprep.subr.mxu0 0.0
    %4117 = vmatpush1.msra.mxu0 0.0
    %4118 = vmatprep.subr.mxu0 0.0
    %4119 = vmatpush1.msra.mxu0 0.0
    %4120 = vmatprep.subr.mxu0 0.0
    %4121 = vmatpush1.msra.mxu0 0.0
    %4122 = vmatprep.subr.mxu0 0.0
    %4123 = vmatpush1.msra.mxu0 0.0
    %4124 = vmatprep.subr.mxu0 0.0
    %4125 = vmatpush1.msra.mxu0 0.0
    %4126 = vmatprep.subr.mxu0 0.0
    %4127 = vmatpush1.msra.mxu0 0.0
    %4128 = vmatprep.subr.mxu0 0.0
    %4129 = vmatpush1.msra.mxu0 0.0
    %4130 = vmatprep.subr.mxu0 0.0
    %4131 = vmatpush1.msra.mxu0 0.0
    %4132 = vmatprep.subr.mxu0 0.0
    %4133 = vmatpush1.msra.mxu0 0.0
    %4134 = vmatprep.subr.mxu0 0.0
    %4135 = vmatpush1.msra.mxu0 0.0
    %4136 = vmatprep.subr.mxu0 0.0
    %4137 = vmatpush1.msra.mxu0 0.0
    %4138 = vmatprep.subr.mxu0 0.0
    %4139 = vmatpush1.msra.mxu0 0.0
    %4140 = vmatprep.subr.mxu0 0.0
    %4141 = vmatpush1.msra.mxu0 0.0
    %4142 = vmatprep.subr.mxu0 0.0
    %4143 = vmatpush1.msra.mxu0 0.0
    %4144 = vmatprep.subr.mxu0 0.0
    %4145 = vmatpush1.msra.mxu0 0.0
    %4146 = vmatprep.subr.mxu0 0.0
    %4147 = vmatpush1.msra.mxu0 0.0
    %4148 = vmatprep.mubr.f32.mxu0 0.0
    %v4149 = vand.u32 %v3504, 4294901760
    %4150 = vmatmul.mubr.f32.gmra.mrb[0].mxu0 %v4149
    %v4151 = vpop.f32.mrb[0].mxu0
    %v4152 = vadd.f32 %v4017, %v4151
    %v4153 = vpop.f32.mrb[0].mxu0
    %4154 = vmatprep.mubr.f32.mxu0 0.0
    %v4155 = vand.u32 %v3505, 4294901760
    %4156 = vmatmul.mubr.f32.gmra.mrb[0].mxu0 %v4155
    %v4157 = vpop.f32.mrb[0].mxu0
    %v4158 = vadd.f32 %v4025, %v4157
    %v4159 = vpop.f32.mrb[0].mxu0
    %4160 = vmatprep.mubr.f32.mxu0 0.0
    %v4161 = vand.u32 %v3506, 4294901760
    %4162 = vmatmul.mubr.f32.gmra.mrb[0].mxu0 %v4161
    %v4163 = vpop.f32.mrb[0].mxu0
    %v4164 = vadd.f32 %v4033, %v4163
    %v4165 = vpop.f32.mrb[0].mxu0
    %4166 = vdwg.mxu0
    %4167 = vmatprep.subr.mxu0 0.0
    %v4168 = vand.u32 %v3523, 4294901760
    %4169 = vmatpush1.msra.mxu0 %v4168
    %4170 = vmatprep.subr.mxu0 0.0
    %v4171 = vand.u32 %v3524, 4294901760
    %4172 = vmatpush1.msra.mxu0 %v4171
    %4173 = vmatprep.subr.mxu0 0.0
    %v4174 = vand.u32 %v3525, 4294901760
    %4175 = vmatpush1.msra.mxu0 %v4174
    %4176 = vmatprep.subr.mxu0 0.0
    %v4177 = vand.u32 %v3526, 4294901760
    %4178 = vmatpush1.msra.mxu0 %v4177
    %4179 = vmatprep.subr.mxu0 0.0
    %v4180 = vand.u32 %v3527, 4294901760
    %4181 = vmatpush1.msra.mxu0 %v4180
    %4182 = vmatprep.subr.mxu0 0.0
    %v4183 = vand.u32 %v3528, 4294901760
    %4184 = vmatpush1.msra.mxu0 %v4183
    %4185 = vmatprep.subr.mxu0 0.0
    %v4186 = vand.u32 %v3529, 4294901760
    %4187 = vmatpush1.msra.mxu0 %v4186
    %4188 = vmatprep.subr.mxu0 0.0
    %v4189 = vand.u32 %v3530, 4294901760
    %4190 = vmatpush1.msra.mxu0 %v4189
    %4191 = vmatprep.subr.mxu0 0.0
    %v4192 = vand.u32 %v3531, 4294901760
    %4193 = vmatpush1.msra.mxu0 %v4192
    %4194 = vmatprep.subr.mxu0 0.0
    %v4195 = vand.u32 %v3532, 4294901760
    %4196 = vmatpush1.msra.mxu0 %v4195
    %4197 = vmatprep.subr.mxu0 0.0
    %v4198 = vand.u32 %v3533, 4294901760
    %4199 = vmatpush1.msra.mxu0 %v4198
    %4200 = vmatprep.subr.mxu0 0.0
    %v4201 = vand.u32 %v3534, 4294901760
    %4202 = vmatpush1.msra.mxu0 %v4201
    %4203 = vmatprep.subr.mxu0 0.0
    %v4204 = vand.u32 %v3535, 4294901760
    %4205 = vmatpush1.msra.mxu0 %v4204
    %4206 = vmatprep.subr.mxu0 0.0
    %v4207 = vand.u32 %v3536, 4294901760
    %4208 = vmatpush1.msra.mxu0 %v4207
    %4209 = vmatprep.subr.mxu0 0.0
    %v4210 = vand.u32 %v3537, 4294901760
    %4211 = vmatpush1.msra.mxu0 %v4210
    %4212 = vmatprep.subr.mxu0 0.0
    %v4213 = vand.u32 %v3538, 4294901760
    %4214 = vmatpush1.msra.mxu0 %v4213
    %4215 = vmatprep.subr.mxu0 0.0
    %4216 = vmatpush1.msra.mxu0 0.0
    %4217 = vmatprep.subr.mxu0 0.0
    %4218 = vmatpush1.msra.mxu0 0.0
    %4219 = vmatprep.subr.mxu0 0.0
    %4220 = vmatpush1.msra.mxu0 0.0
    %4221 = vmatprep.subr.mxu0 0.0
    %4222 = vmatpush1.msra.mxu0 0.0
    %4223 = vmatprep.subr.mxu0 0.0
    %4224 = vmatpush1.msra.mxu0 0.0
    %4225 = vmatprep.subr.mxu0 0.0
    %4226 = vmatpush1.msra.mxu0 0.0
    %4227 = vmatprep.subr.mxu0 0.0
    %4228 = vmatpush1.msra.mxu0 0.0
    %4229 = vmatprep.subr.mxu0 0.0
    %4230 = vmatpush1.msra.mxu0 0.0
    %4231 = vmatprep.subr.mxu0 0.0
    %4232 = vmatpush1.msra.mxu0 0.0
    %4233 = vmatprep.subr.mxu0 0.0
    %4234 = vmatpush1.msra.mxu0 0.0
    %4235 = vmatprep.subr.mxu0 0.0
    %4236 = vmatpush1.msra.mxu0 0.0
    %4237 = vmatprep.subr.mxu0 0.0
    %4238 = vmatpush1.msra.mxu0 0.0
    %4239 = vmatprep.subr.mxu0 0.0
    %4240 = vmatpush1.msra.mxu0 0.0
    %4241 = vmatprep.subr.mxu0 0.0
    %4242 = vmatpush1.msra.mxu0 0.0
    %4243 = vmatprep.subr.mxu0 0.0
    %4244 = vmatpush1.msra.mxu0 0.0
    %4245 = vmatprep.subr.mxu0 0.0
    %4246 = vmatpush1.msra.mxu0 0.0
    %4247 = vmatprep.mubr.f32.mxu0 0.0
    %v4248 = vand.u32 %v3504, 4294901760
    %4249 = vmatmul.mubr.f32.gmra.mrb[0].mxu0 %v4248
    %v4250 = vpop.f32.mrb[0].mxu0
    %v4251 = vadd.f32 %v4152, %v4250
    %v4252 = vpop.f32.mrb[0].mxu0
    %4253 = vmatprep.mubr.f32.mxu0 0.0
    %v4254 = vand.u32 %v3505, 4294901760
    %4255 = vmatmul.mubr.f32.gmra.mrb[0].mxu0 %v4254
    %v4256 = vpop.f32.mrb[0].mxu0
    %v4257 = vadd.f32 %v4158, %v4256
    %v4258 = vpop.f32.mrb[0].mxu0
    %4259 = vmatprep.mubr.f32.mxu0 0.0
    %v4260 = vand.u32 %v3506, 4294901760
    %4261 = vmatmul.mubr.f32.gmra.mrb[0].mxu0 %v4260
    %v4262 = vpop.f32.mrb[0].mxu0
    %v4263 = vadd.f32 %v4164, %v4262
    %v4264 = vpop.f32.mrb[0].mxu0
    %4265 = vdwg.mxu0
    %4266 = vmatprep.subr.mxu0 0.0
    %v4267 = vand.u32 %v3507, 4294901760
    %4268 = vmatpush1.msra.mxu0 %v4267
    %4269 = vmatprep.subr.mxu0 0.0
    %v4270 = vand.u32 %v3508, 4294901760
    %4271 = vmatpush1.msra.mxu0 %v4270
    %4272 = vmatprep.subr.mxu0 0.0
    %v4273 = vand.u32 %v3509, 4294901760
    %4274 = vmatpush1.msra.mxu0 %v4273
    %4275 = vmatprep.subr.mxu0 0.0
    %v4276 = vand.u32 %v3510, 4294901760
    %4277 = vmatpush1.msra.mxu0 %v4276
    %4278 = vmatprep.subr.mxu0 0.0
    %v4279 = vand.u32 %v3511, 4294901760
    %4280 = vmatpush1.msra.mxu0 %v4279
    %4281 = vmatprep.subr.mxu0 0.0
    %v4282 = vand.u32 %v3512, 4294901760
    %4283 = vmatpush1.msra.mxu0 %v4282
    %4284 = vmatprep.subr.mxu0 0.0
    %v4285 = vand.u32 %v3513, 4294901760
    %4286 = vmatpush1.msra.mxu0 %v4285
    %4287 = vmatprep.subr.mxu0 0.0
    %v4288 = vand.u32 %v3514, 4294901760
    %4289 = vmatpush1.msra.mxu0 %v4288
    %4290 = vmatprep.subr.mxu0 0.0
    %v4291 = vand.u32 %v3515, 4294901760
    %4292 = vmatpush1.msra.mxu0 %v4291
    %4293 = vmatprep.subr.mxu0 0.0
    %v4294 = vand.u32 %v3516, 4294901760
    %4295 = vmatpush1.msra.mxu0 %v4294
    %4296 = vmatprep.subr.mxu0 0.0
    %v4297 = vand.u32 %v3517, 4294901760
    %4298 = vmatpush1.msra.mxu0 %v4297
    %4299 = vmatprep.subr.mxu0 0.0
    %v4300 = vand.u32 %v3518, 4294901760
    %4301 = vmatpush1.msra.mxu0 %v4300
    %4302 = vmatprep.subr.mxu0 0.0
    %v4303 = vand.u32 %v3519, 4294901760
    %4304 = vmatpush1.msra.mxu0 %v4303
    %4305 = vmatprep.subr.mxu0 0.0
    %v4306 = vand.u32 %v3520, 4294901760
    %4307 = vmatpush1.msra.mxu0 %v4306
    %4308 = vmatprep.subr.mxu0 0.0
    %v4309 = vand.u32 %v3521, 4294901760
    %4310 = vmatpush1.msra.mxu0 %v4309
    %4311 = vmatprep.subr.mxu0 0.0
    %v4312 = vand.u32 %v3522, 4294901760
    %4313 = vmatpush1.msra.mxu0 %v4312
    %4314 = vmatprep.subr.mxu0 0.0
    %4315 = vmatpush1.msra.mxu0 0.0
    %4316 = vmatprep.subr.mxu0 0.0
    %4317 = vmatpush1.msra.mxu0 0.0
    %4318 = vmatprep.subr.mxu0 0.0
    %4319 = vmatpush1.msra.mxu0 0.0
    %4320 = vmatprep.subr.mxu0 0.0
    %4321 = vmatpush1.msra.mxu0 0.0
    %4322 = vmatprep.subr.mxu0 0.0
    %4323 = vmatpush1.msra.mxu0 0.0
    %4324 = vmatprep.subr.mxu0 0.0
    %4325 = vmatpush1.msra.mxu0 0.0
    %4326 = vmatprep.subr.mxu0 0.0
    %4327 = vmatpush1.msra.mxu0 0.0
    %4328 = vmatprep.subr.mxu0 0.0
    %4329 = vmatpush1.msra.mxu0 0.0
    %4330 = vmatprep.subr.mxu0 0.0
    %4331 = vmatpush1.msra.mxu0 0.0
    %4332 = vmatprep.subr.mxu0 0.0
    %4333 = vmatpush1.msra.mxu0 0.0
    %4334 = vmatprep.subr.mxu0 0.0
    %4335 = vmatpush1.msra.mxu0 0.0
    %4336 = vmatprep.subr.mxu0 0.0
    %4337 = vmatpush1.msra.mxu0 0.0
    %4338 = vmatprep.subr.mxu0 0.0
    %4339 = vmatpush1.msra.mxu0 0.0
    %4340 = vmatprep.subr.mxu0 0.0
    %4341 = vmatpush1.msra.mxu0 0.0
    %4342 = vmatprep.subr.mxu0 0.0
    %4343 = vmatpush1.msra.mxu0 0.0
    %4344 = vmatprep.subr.mxu0 0.0
    %4345 = vmatpush1.msra.mxu0 0.0
    %4346 = vmatprep.mubr.f32.mxu0 0.0
    %v4347 = vand.u32 %v2745, 4294901760
    %v4348 = vsub.f32 %v2745, %v4347
    %v4349 = vand.u32 %v4348, 4294901760
    %v4350 = vsub.f32 %v4348, %v4349
    %v4351 = vand.u32 %v4350, 4294901760
    %4352 = vmatmul.mubr.f32.gmra.mrb[0].mxu0 %v4351
    %v4353 = vpop.f32.mrb[0].mxu0
    %v4354 = vadd.f32 %v4251, %v4353
    %v4355 = vpop.f32.mrb[0].mxu0
    %4356 = vmatprep.mubr.f32.mxu0 0.0
    %v4357 = vand.u32 %v2746, 4294901760
    %v4358 = vsub.f32 %v2746, %v4357
    %v4359 = vand.u32 %v4358, 4294901760
    %v4360 = vsub.f32 %v4358, %v4359
    %v4361 = vand.u32 %v4360, 4294901760
    %4362 = vmatmul.mubr.f32.gmra.mrb[0].mxu0 %v4361
    %v4363 = vpop.f32.mrb[0].mxu0
    %v4364 = vadd.f32 %v4257, %v4363
    %v4365 = vpop.f32.mrb[0].mxu0
    %4366 = vmatprep.mubr.f32.mxu0 0.0
    %v4367 = vand.u32 %v2747, 4294901760
    %v4368 = vsub.f32 %v2747, %v4367
    %v4369 = vand.u32 %v4368, 4294901760
    %v4370 = vsub.f32 %v4368, %v4369
    %v4371 = vand.u32 %v4370, 4294901760
    %4372 = vmatmul.mubr.f32.gmra.mrb[0].mxu0 %v4371
    %v4373 = vpop.f32.mrb[0].mxu0
    %v4374 = vadd.f32 %v4263, %v4373
    %v4375 = vpop.f32.mrb[0].mxu0
    %4376 = vdwg.mxu0
    %4377 = vmatprep.subr.mxu0 0.0
    %v4378 = vand.u32 %v3507, 4294901760
    %v4379 = vsub.f32 %v3507, %v4378
    %v4380 = vand.u32 %v4379, 4294901760
    %v4381 = vsub.f32 %v4379, %v4380
    %v4382 = vand.u32 %v4381, 4294901760
    %4383 = vmatpush1.msra.mxu0 %v4382
    %4384 = vmatprep.subr.mxu0 0.0
    %v4385 = vand.u32 %v3508, 4294901760
    %v4386 = vsub.f32 %v3508, %v4385
    %v4387 = vand.u32 %v4386, 4294901760
    %v4388 = vsub.f32 %v4386, %v4387
    %v4389 = vand.u32 %v4388, 4294901760
    %4390 = vmatpush1.msra.mxu0 %v4389
    %4391 = vmatprep.subr.mxu0 0.0
    %v4392 = vand.u32 %v3509, 4294901760
    %v4393 = vsub.f32 %v3509, %v4392
    %v4394 = vand.u32 %v4393, 4294901760
    %v4395 = vsub.f32 %v4393, %v4394
    %v4396 = vand.u32 %v4395, 4294901760
    %4397 = vmatpush1.msra.mxu0 %v4396
    %4398 = vmatprep.subr.mxu0 0.0
    %v4399 = vand.u32 %v3510, 4294901760
    %v4400 = vsub.f32 %v3510, %v4399
    %v4401 = vand.u32 %v4400, 4294901760
    %v4402 = vsub.f32 %v4400, %v4401
    %v4403 = vand.u32 %v4402, 4294901760
    %4404 = vmatpush1.msra.mxu0 %v4403
    %4405 = vmatprep.subr.mxu0 0.0
    %v4406 = vand.u32 %v3511, 4294901760
    %v4407 = vsub.f32 %v3511, %v4406
    %v4408 = vand.u32 %v4407, 4294901760
    %v4409 = vsub.f32 %v4407, %v4408
    %v4410 = vand.u32 %v4409, 4294901760
    %4411 = vmatpush1.msra.mxu0 %v4410
    %4412 = vmatprep.subr.mxu0 0.0
    %v4413 = vand.u32 %v3512, 4294901760
    %v4414 = vsub.f32 %v3512, %v4413
    %v4415 = vand.u32 %v4414, 4294901760
    %v4416 = vsub.f32 %v4414, %v4415
    %v4417 = vand.u32 %v4416, 4294901760
    %4418 = vmatpush1.msra.mxu0 %v4417
    %4419 = vmatprep.subr.mxu0 0.0
    %v4420 = vand.u32 %v3513, 4294901760
    %v4421 = vsub.f32 %v3513, %v4420
    %v4422 = vand.u32 %v4421, 4294901760
    %v4423 = vsub.f32 %v4421, %v4422
    %v4424 = vand.u32 %v4423, 4294901760
    %4425 = vmatpush1.msra.mxu0 %v4424
    %4426 = vmatprep.subr.mxu0 0.0
    %v4427 = vand.u32 %v3514, 4294901760
    %v4428 = vsub.f32 %v3514, %v4427
    %v4429 = vand.u32 %v4428, 4294901760
    %v4430 = vsub.f32 %v4428, %v4429
    %v4431 = vand.u32 %v4430, 4294901760
    %4432 = vmatpush1.msra.mxu0 %v4431
    %4433 = vmatprep.subr.mxu0 0.0
    %v4434 = vand.u32 %v3515, 4294901760
    %v4435 = vsub.f32 %v3515, %v4434
    %v4436 = vand.u32 %v4435, 4294901760
    %v4437 = vsub.f32 %v4435, %v4436
    %v4438 = vand.u32 %v4437, 4294901760
    %4439 = vmatpush1.msra.mxu0 %v4438
    %4440 = vmatprep.subr.mxu0 0.0
    %v4441 = vand.u32 %v3516, 4294901760
    %v4442 = vsub.f32 %v3516, %v4441
    %v4443 = vand.u32 %v4442, 4294901760
    %v4444 = vsub.f32 %v4442, %v4443
    %v4445 = vand.u32 %v4444, 4294901760
    %4446 = vmatpush1.msra.mxu0 %v4445
    %4447 = vmatprep.subr.mxu0 0.0
    %v4448 = vand.u32 %v3517, 4294901760
    %v4449 = vsub.f32 %v3517, %v4448
    %v4450 = vand.u32 %v4449, 4294901760
    %v4451 = vsub.f32 %v4449, %v4450
    %v4452 = vand.u32 %v4451, 4294901760
    %4453 = vmatpush1.msra.mxu0 %v4452
    %4454 = vmatprep.subr.mxu0 0.0
    %v4455 = vand.u32 %v3518, 4294901760
    %v4456 = vsub.f32 %v3518, %v4455
    %v4457 = vand.u32 %v4456, 4294901760
    %v4458 = vsub.f32 %v4456, %v4457
    %v4459 = vand.u32 %v4458, 4294901760
    %4460 = vmatpush1.msra.mxu0 %v4459
    %4461 = vmatprep.subr.mxu0 0.0
    %v4462 = vand.u32 %v3519, 4294901760
    %v4463 = vsub.f32 %v3519, %v4462
    %v4464 = vand.u32 %v4463, 4294901760
    %v4465 = vsub.f32 %v4463, %v4464
    %v4466 = vand.u32 %v4465, 4294901760
    %4467 = vmatpush1.msra.mxu0 %v4466
    %4468 = vmatprep.subr.mxu0 0.0
    %v4469 = vand.u32 %v3520, 4294901760
    %v4470 = vsub.f32 %v3520, %v4469
    %v4471 = vand.u32 %v4470, 4294901760
    %v4472 = vsub.f32 %v4470, %v4471
    %v4473 = vand.u32 %v4472, 4294901760
    %4474 = vmatpush1.msra.mxu0 %v4473
    %4475 = vmatprep.subr.mxu0 0.0
    %v4476 = vand.u32 %v3521, 4294901760
    %v4477 = vsub.f32 %v3521, %v4476
    %v4478 = vand.u32 %v4477, 4294901760
    %v4479 = vsub.f32 %v4477, %v4478
    %v4480 = vand.u32 %v4479, 4294901760
    %4481 = vmatpush1.msra.mxu0 %v4480
    %4482 = vmatprep.subr.mxu0 0.0
    %v4483 = vand.u32 %v3522, 4294901760
    %v4484 = vsub.f32 %v3522, %v4483
    %v4485 = vand.u32 %v4484, 4294901760
    %v4486 = vsub.f32 %v4484, %v4485
    %v4487 = vand.u32 %v4486, 4294901760
    %4488 = vmatpush1.msra.mxu0 %v4487
    %4489 = vmatprep.subr.mxu0 0.0
    %4490 = vmatpush1.msra.mxu0 0.0
    %4491 = vmatprep.subr.mxu0 0.0
    %4492 = vmatpush1.msra.mxu0 0.0
    %4493 = vmatprep.subr.mxu0 0.0
    %4494 = vmatpush1.msra.mxu0 0.0
    %4495 = vmatprep.subr.mxu0 0.0
    %4496 = vmatpush1.msra.mxu0 0.0
    %4497 = vmatprep.subr.mxu0 0.0
    %4498 = vmatpush1.msra.mxu0 0.0
    %4499 = vmatprep.subr.mxu0 0.0
    %4500 = vmatpush1.msra.mxu0 0.0
    %4501 = vmatprep.subr.mxu0 0.0
    %4502 = vmatpush1.msra.mxu0 0.0
    %4503 = vmatprep.subr.mxu0 0.0
    %4504 = vmatpush1.msra.mxu0 0.0
    %4505 = vmatprep.subr.mxu0 0.0
    %4506 = vmatpush1.msra.mxu0 0.0
    %4507 = vmatprep.subr.mxu0 0.0
    %4508 = vmatpush1.msra.mxu0 0.0
    %4509 = vmatprep.subr.mxu0 0.0
    %4510 = vmatpush1.msra.mxu0 0.0
    %4511 = vmatprep.subr.mxu0 0.0
    %4512 = vmatpush1.msra.mxu0 0.0
    %4513 = vmatprep.subr.mxu0 0.0
    %4514 = vmatpush1.msra.mxu0 0.0
    %4515 = vmatprep.subr.mxu0 0.0
    %4516 = vmatpush1.msra.mxu0 0.0
    %4517 = vmatprep.subr.mxu0 0.0
    %4518 = vmatpush1.msra.mxu0 0.0
    %4519 = vmatprep.subr.mxu0 0.0
    %4520 = vmatpush1.msra.mxu0 0.0
    %4521 = vmatprep.mubr.f32.mxu0 0.0
    %v4522 = vand.u32 %v2745, 4294901760
    %4523 = vmatmul.mubr.f32.gmra.mrb[0].mxu0 %v4522
    %v4524 = vpop.f32.mrb[0].mxu0
    %v4525 = vadd.f32 %v4354, %v4524
    %v4526 = vpop.f32.mrb[0].mxu0
    %4527 = vmatprep.mubr.f32.mxu0 0.0
    %v4528 = vand.u32 %v2746, 4294901760
    %4529 = vmatmul.mubr.f32.gmra.mrb[0].mxu0 %v4528
    %v4530 = vpop.f32.mrb[0].mxu0
    %v4531 = vadd.f32 %v4364, %v4530
    %v4532 = vpop.f32.mrb[0].mxu0
    %4533 = vmatprep.mubr.f32.mxu0 0.0
    %v4534 = vand.u32 %v2747, 4294901760
    %4535 = vmatmul.mubr.f32.gmra.mrb[0].mxu0 %v4534
    %v4536 = vpop.f32.mrb[0].mxu0
    %v4537 = vadd.f32 %v4374, %v4536
    %v4538 = vpop.f32.mrb[0].mxu0
    %4539 = vdwg.mxu0
    %4540 = vmatprep.subr.mxu0 0.0
    %v4541 = vand.u32 %v3507, 4294901760
    %v4542 = vsub.f32 %v3507, %v4541
    %4543 = vmatpush1.msra.mxu0 %v4542
    %4544 = vmatprep.subr.mxu0 0.0
    %v4545 = vand.u32 %v3508, 4294901760
    %v4546 = vsub.f32 %v3508, %v4545
    %4547 = vmatpush1.msra.mxu0 %v4546
    %4548 = vmatprep.subr.mxu0 0.0
    %v4549 = vand.u32 %v3509, 4294901760
    %v4550 = vsub.f32 %v3509, %v4549
    %4551 = vmatpush1.msra.mxu0 %v4550
    %4552 = vmatprep.subr.mxu0 0.0
    %v4553 = vand.u32 %v3510, 4294901760
    %v4554 = vsub.f32 %v3510, %v4553
    %4555 = vmatpush1.msra.mxu0 %v4554
    %4556 = vmatprep.subr.mxu0 0.0
    %v4557 = vand.u32 %v3511, 4294901760
    %v4558 = vsub.f32 %v3511, %v4557
    %4559 = vmatpush1.msra.mxu0 %v4558
    %4560 = vmatprep.subr.mxu0 0.0
    %v4561 = vand.u32 %v3512, 4294901760
    %v4562 = vsub.f32 %v3512, %v4561
    %4563 = vmatpush1.msra.mxu0 %v4562
    %4564 = vmatprep.subr.mxu0 0.0
    %v4565 = vand.u32 %v3513, 4294901760
    %v4566 = vsub.f32 %v3513, %v4565
    %4567 = vmatpush1.msra.mxu0 %v4566
    %4568 = vmatprep.subr.mxu0 0.0
    %v4569 = vand.u32 %v3514, 4294901760
    %v4570 = vsub.f32 %v3514, %v4569
    %4571 = vmatpush1.msra.mxu0 %v4570
    %4572 = vmatprep.subr.mxu0 0.0
    %v4573 = vand.u32 %v3515, 4294901760
    %v4574 = vsub.f32 %v3515, %v4573
    %4575 = vmatpush1.msra.mxu0 %v4574
    %4576 = vmatprep.subr.mxu0 0.0
    %v4577 = vand.u32 %v3516, 4294901760
    %v4578 = vsub.f32 %v3516, %v4577
    %4579 = vmatpush1.msra.mxu0 %v4578
    %4580 = vmatprep.subr.mxu0 0.0
    %v4581 = vand.u32 %v3517, 4294901760
    %v4582 = vsub.f32 %v3517, %v4581
    %4583 = vmatpush1.msra.mxu0 %v4582
    %4584 = vmatprep.subr.mxu0 0.0
    %v4585 = vand.u32 %v3518, 4294901760
    %v4586 = vsub.f32 %v3518, %v4585
    %4587 = vmatpush1.msra.mxu0 %v4586
    %4588 = vmatprep.subr.mxu0 0.0
    %v4589 = vand.u32 %v3519, 4294901760
    %v4590 = vsub.f32 %v3519, %v4589
    %4591 = vmatpush1.msra.mxu0 %v4590
    %4592 = vmatprep.subr.mxu0 0.0
    %v4593 = vand.u32 %v3520, 4294901760
    %v4594 = vsub.f32 %v3520, %v4593
    %4595 = vmatpush1.msra.mxu0 %v4594
    %4596 = vmatprep.subr.mxu0 0.0
    %v4597 = vand.u32 %v3521, 4294901760
    %v4598 = vsub.f32 %v3521, %v4597
    %4599 = vmatpush1.msra.mxu0 %v4598
    %4600 = vmatprep.subr.mxu0 0.0
    %v4601 = vand.u32 %v3522, 4294901760
    %v4602 = vsub.f32 %v3522, %v4601
    %4603 = vmatpush1.msra.mxu0 %v4602
    %4604 = vmatprep.subr.mxu0 0.0
    %4605 = vmatpush1.msra.mxu0 0.0
    %4606 = vmatprep.subr.mxu0 0.0
    %4607 = vmatpush1.msra.mxu0 0.0
    %4608 = vmatprep.subr.mxu0 0.0
    %4609 = vmatpush1.msra.mxu0 0.0
    %4610 = vmatprep.subr.mxu0 0.0
    %4611 = vmatpush1.msra.mxu0 0.0
    %4612 = vmatprep.subr.mxu0 0.0
    %4613 = vmatpush1.msra.mxu0 0.0
    %4614 = vmatprep.subr.mxu0 0.0
    %4615 = vmatpush1.msra.mxu0 0.0
    %4616 = vmatprep.subr.mxu0 0.0
    %4617 = vmatpush1.msra.mxu0 0.0
    %4618 = vmatprep.subr.mxu0 0.0
    %4619 = vmatpush1.msra.mxu0 0.0
    %4620 = vmatprep.subr.mxu0 0.0
    %4621 = vmatpush1.msra.mxu0 0.0
    %4622 = vmatprep.subr.mxu0 0.0
    %4623 = vmatpush1.msra.mxu0 0.0
    %4624 = vmatprep.subr.mxu0 0.0
    %4625 = vmatpush1.msra.mxu0 0.0
    %4626 = vmatprep.subr.mxu0 0.0
    %4627 = vmatpush1.msra.mxu0 0.0
    %4628 = vmatprep.subr.mxu0 0.0
    %4629 = vmatpush1.msra.mxu0 0.0
    %4630 = vmatprep.subr.mxu0 0.0
    %4631 = vmatpush1.msra.mxu0 0.0
    %4632 = vmatprep.subr.mxu0 0.0
    %4633 = vmatpush1.msra.mxu0 0.0
    %4634 = vmatprep.subr.mxu0 0.0
    %4635 = vmatpush1.msra.mxu0 0.0
    %4636 = vmatprep.mubr.f32.mxu0 0.0
    %v4637 = vand.u32 %v2745, 4294901760
    %v4638 = vsub.f32 %v2745, %v4637
    %4639 = vmatmul.mubr.f32.gmra.mrb[0].mxu0 %v4638
    %v4640 = vpop.f32.mrb[0].mxu0
    %v4641 = vadd.f32 %v4525, %v4640
    %v4642 = vpop.f32.mrb[0].mxu0
    %4643 = vmatprep.mubr.f32.mxu0 0.0
    %v4644 = vand.u32 %v2746, 4294901760
    %v4645 = vsub.f32 %v2746, %v4644
    %4646 = vmatmul.mubr.f32.gmra.mrb[0].mxu0 %v4645
    %v4647 = vpop.f32.mrb[0].mxu0
    %v4648 = vadd.f32 %v4531, %v4647
    %v4649 = vpop.f32.mrb[0].mxu0
    %4650 = vmatprep.mubr.f32.mxu0 0.0
    %v4651 = vand.u32 %v2747, 4294901760
    %v4652 = vsub.f32 %v2747, %v4651
    %4653 = vmatmul.mubr.f32.gmra.mrb[0].mxu0 %v4652
    %v4654 = vpop.f32.mrb[0].mxu0
    %v4655 = vadd.f32 %v4537, %v4654
    %v4656 = vpop.f32.mrb[0].mxu0
    %4657 = vdwg.mxu0
    %4658 = vmatprep.subr.mxu0 0.0
    %v4659 = vand.u32 %v3507, 4294901760
    %4660 = vmatpush1.msra.mxu0 %v4659
    %4661 = vmatprep.subr.mxu0 0.0
    %v4662 = vand.u32 %v3508, 4294901760
    %4663 = vmatpush1.msra.mxu0 %v4662
    %4664 = vmatprep.subr.mxu0 0.0
    %v4665 = vand.u32 %v3509, 4294901760
    %4666 = vmatpush1.msra.mxu0 %v4665
    %4667 = vmatprep.subr.mxu0 0.0
    %v4668 = vand.u32 %v3510, 4294901760
    %4669 = vmatpush1.msra.mxu0 %v4668
    %4670 = vmatprep.subr.mxu0 0.0
    %v4671 = vand.u32 %v3511, 4294901760
    %4672 = vmatpush1.msra.mxu0 %v4671
    %4673 = vmatprep.subr.mxu0 0.0
    %v4674 = vand.u32 %v3512, 4294901760
    %4675 = vmatpush1.msra.mxu0 %v4674
    %4676 = vmatprep.subr.mxu0 0.0
    %v4677 = vand.u32 %v3513, 4294901760
    %4678 = vmatpush1.msra.mxu0 %v4677
    %4679 = vmatprep.subr.mxu0 0.0
    %v4680 = vand.u32 %v3514, 4294901760
    %4681 = vmatpush1.msra.mxu0 %v4680
    %4682 = vmatprep.subr.mxu0 0.0
    %v4683 = vand.u32 %v3515, 4294901760
    %4684 = vmatpush1.msra.mxu0 %v4683
    %4685 = vmatprep.subr.mxu0 0.0
    %v4686 = vand.u32 %v3516, 4294901760
    %4687 = vmatpush1.msra.mxu0 %v4686
    %4688 = vmatprep.subr.mxu0 0.0
    %v4689 = vand.u32 %v3517, 4294901760
    %4690 = vmatpush1.msra.mxu0 %v4689
    %4691 = vmatprep.subr.mxu0 0.0
    %v4692 = vand.u32 %v3518, 4294901760
    %4693 = vmatpush1.msra.mxu0 %v4692
    %4694 = vmatprep.subr.mxu0 0.0
    %v4695 = vand.u32 %v3519, 4294901760
    %4696 = vmatpush1.msra.mxu0 %v4695
    %4697 = vmatprep.subr.mxu0 0.0
    %v4698 = vand.u32 %v3520, 4294901760
    %4699 = vmatpush1.msra.mxu0 %v4698
    %4700 = vmatprep.subr.mxu0 0.0
    %v4701 = vand.u32 %v3521, 4294901760
    %4702 = vmatpush1.msra.mxu0 %v4701
    %4703 = vmatprep.subr.mxu0 0.0
    %v4704 = vand.u32 %v3522, 4294901760
    %4705 = vmatpush1.msra.mxu0 %v4704
    %4706 = vmatprep.subr.mxu0 0.0
    %4707 = vmatpush1.msra.mxu0 0.0
    %4708 = vmatprep.subr.mxu0 0.0
    %4709 = vmatpush1.msra.mxu0 0.0
    %4710 = vmatprep.subr.mxu0 0.0
    %4711 = vmatpush1.msra.mxu0 0.0
    %4712 = vmatprep.subr.mxu0 0.0
    %4713 = vmatpush1.msra.mxu0 0.0
    %4714 = vmatprep.subr.mxu0 0.0
    %4715 = vmatpush1.msra.mxu0 0.0
    %4716 = vmatprep.subr.mxu0 0.0
    %4717 = vmatpush1.msra.mxu0 0.0
    %4718 = vmatprep.subr.mxu0 0.0
    %4719 = vmatpush1.msra.mxu0 0.0
    %4720 = vmatprep.subr.mxu0 0.0
    %4721 = vmatpush1.msra.mxu0 0.0
    %4722 = vmatprep.subr.mxu0 0.0
    %4723 = vmatpush1.msra.mxu0 0.0
    %4724 = vmatprep.subr.mxu0 0.0
    %4725 = vmatpush1.msra.mxu0 0.0
    %4726 = vmatprep.subr.mxu0 0.0
    %4727 = vmatpush1.msra.mxu0 0.0
    %4728 = vmatprep.subr.mxu0 0.0
    %4729 = vmatpush1.msra.mxu0 0.0
    %4730 = vmatprep.subr.mxu0 0.0
    %4731 = vmatpush1.msra.mxu0 0.0
    %4732 = vmatprep.subr.mxu0 0.0
    %4733 = vmatpush1.msra.mxu0 0.0
    %4734 = vmatprep.subr.mxu0 0.0
    %4735 = vmatpush1.msra.mxu0 0.0
    %4736 = vmatprep.subr.mxu0 0.0
    %4737 = vmatpush1.msra.mxu0 0.0
    %4738 = vmatprep.mubr.f32.mxu0 0.0
    %v4739 = vand.u32 %v2745, 4294901760
    %v4740 = vsub.f32 %v2745, %v4739
    %v4741 = vand.u32 %v4740, 4294901760
    %4742 = vmatmul.mubr.f32.gmra.mrb[0].mxu0 %v4741
    %v4743 = vpop.f32.mrb[0].mxu0
    %v4744 = vadd.f32 %v4641, %v4743
    %v4745 = vpop.f32.mrb[0].mxu0
    %4746 = vmatprep.mubr.f32.mxu0 0.0
    %v4747 = vand.u32 %v2746, 4294901760
    %v4748 = vsub.f32 %v2746, %v4747
    %v4749 = vand.u32 %v4748, 4294901760
    %4750 = vmatmul.mubr.f32.gmra.mrb[0].mxu0 %v4749
    %v4751 = vpop.f32.mrb[0].mxu0
    %v4752 = vadd.f32 %v4648, %v4751
    %v4753 = vpop.f32.mrb[0].mxu0
    %4754 = vmatprep.mubr.f32.mxu0 0.0
    %v4755 = vand.u32 %v2747, 4294901760
    %v4756 = vsub.f32 %v2747, %v4755
    %v4757 = vand.u32 %v4756, 4294901760
    %4758 = vmatmul.mubr.f32.gmra.mrb[0].mxu0 %v4757
    %v4759 = vpop.f32.mrb[0].mxu0
    %v4760 = vadd.f32 %v4655, %v4759
    %v4761 = vpop.f32.mrb[0].mxu0
    %4762 = vdwg.mxu0
    %4763 = vmatprep.subr.mxu0 0.0
    %v4764 = vand.u32 %v3507, 4294901760
    %v4765 = vsub.f32 %v3507, %v4764
    %v4766 = vand.u32 %v4765, 4294901760
    %4767 = vmatpush1.msra.mxu0 %v4766
    %4768 = vmatprep.subr.mxu0 0.0
    %v4769 = vand.u32 %v3508, 4294901760
    %v4770 = vsub.f32 %v3508, %v4769
    %v4771 = vand.u32 %v4770, 4294901760
    %4772 = vmatpush1.msra.mxu0 %v4771
    %4773 = vmatprep.subr.mxu0 0.0
    %v4774 = vand.u32 %v3509, 4294901760
    %v4775 = vsub.f32 %v3509, %v4774
    %v4776 = vand.u32 %v4775, 4294901760
    %4777 = vmatpush1.msra.mxu0 %v4776
    %4778 = vmatprep.subr.mxu0 0.0
    %v4779 = vand.u32 %v3510, 4294901760
    %v4780 = vsub.f32 %v3510, %v4779
    %v4781 = vand.u32 %v4780, 4294901760
    %4782 = vmatpush1.msra.mxu0 %v4781
    %4783 = vmatprep.subr.mxu0 0.0
    %v4784 = vand.u32 %v3511, 4294901760
    %v4785 = vsub.f32 %v3511, %v4784
    %v4786 = vand.u32 %v4785, 4294901760
    %4787 = vmatpush1.msra.mxu0 %v4786
    %4788 = vmatprep.subr.mxu0 0.0
    %v4789 = vand.u32 %v3512, 4294901760
    %v4790 = vsub.f32 %v3512, %v4789
    %v4791 = vand.u32 %v4790, 4294901760
    %4792 = vmatpush1.msra.mxu0 %v4791
    %4793 = vmatprep.subr.mxu0 0.0
    %v4794 = vand.u32 %v3513, 4294901760
    %v4795 = vsub.f32 %v3513, %v4794
    %v4796 = vand.u32 %v4795, 4294901760
    %4797 = vmatpush1.msra.mxu0 %v4796
    %4798 = vmatprep.subr.mxu0 0.0
    %v4799 = vand.u32 %v3514, 4294901760
    %v4800 = vsub.f32 %v3514, %v4799
    %v4801 = vand.u32 %v4800, 4294901760
    %4802 = vmatpush1.msra.mxu0 %v4801
    %4803 = vmatprep.subr.mxu0 0.0
    %v4804 = vand.u32 %v3515, 4294901760
    %v4805 = vsub.f32 %v3515, %v4804
    %v4806 = vand.u32 %v4805, 4294901760
    %4807 = vmatpush1.msra.mxu0 %v4806
    %4808 = vmatprep.subr.mxu0 0.0
    %v4809 = vand.u32 %v3516, 4294901760
    %v4810 = vsub.f32 %v3516, %v4809
    %v4811 = vand.u32 %v4810, 4294901760
    %4812 = vmatpush1.msra.mxu0 %v4811
    %4813 = vmatprep.subr.mxu0 0.0
    %v4814 = vand.u32 %v3517, 4294901760
    %v4815 = vsub.f32 %v3517, %v4814
    %v4816 = vand.u32 %v4815, 4294901760
    %4817 = vmatpush1.msra.mxu0 %v4816
    %4818 = vmatprep.subr.mxu0 0.0
    %v4819 = vand.u32 %v3518, 4294901760
    %v4820 = vsub.f32 %v3518, %v4819
    %v4821 = vand.u32 %v4820, 4294901760
    %4822 = vmatpush1.msra.mxu0 %v4821
    %4823 = vmatprep.subr.mxu0 0.0
    %v4824 = vand.u32 %v3519, 4294901760
    %v4825 = vsub.f32 %v3519, %v4824
    %v4826 = vand.u32 %v4825, 4294901760
    %4827 = vmatpush1.msra.mxu0 %v4826
    %4828 = vmatprep.subr.mxu0 0.0
    %v4829 = vand.u32 %v3520, 4294901760
    %v4830 = vsub.f32 %v3520, %v4829
    %v4831 = vand.u32 %v4830, 4294901760
    %4832 = vmatpush1.msra.mxu0 %v4831
    %4833 = vmatprep.subr.mxu0 0.0
    %v4834 = vand.u32 %v3521, 4294901760
    %v4835 = vsub.f32 %v3521, %v4834
    %v4836 = vand.u32 %v4835, 4294901760
    %4837 = vmatpush1.msra.mxu0 %v4836
    %4838 = vmatprep.subr.mxu0 0.0
    %v4839 = vand.u32 %v3522, 4294901760
    %v4840 = vsub.f32 %v3522, %v4839
    %v4841 = vand.u32 %v4840, 4294901760
    %4842 = vmatpush1.msra.mxu0 %v4841
    %4843 = vmatprep.subr.mxu0 0.0
    %4844 = vmatpush1.msra.mxu0 0.0
    %4845 = vmatprep.subr.mxu0 0.0
    %4846 = vmatpush1.msra.mxu0 0.0
    %4847 = vmatprep.subr.mxu0 0.0
    %4848 = vmatpush1.msra.mxu0 0.0
    %4849 = vmatprep.subr.mxu0 0.0
    %4850 = vmatpush1.msra.mxu0 0.0
    %4851 = vmatprep.subr.mxu0 0.0
    %4852 = vmatpush1.msra.mxu0 0.0
    %4853 = vmatprep.subr.mxu0 0.0
    %4854 = vmatpush1.msra.mxu0 0.0
    %4855 = vmatprep.subr.mxu0 0.0
    %4856 = vmatpush1.msra.mxu0 0.0
    %4857 = vmatprep.subr.mxu0 0.0
    %4858 = vmatpush1.msra.mxu0 0.0
    %4859 = vmatprep.subr.mxu0 0.0
    %4860 = vmatpush1.msra.mxu0 0.0
    %4861 = vmatprep.subr.mxu0 0.0
    %4862 = vmatpush1.msra.mxu0 0.0
    %4863 = vmatprep.subr.mxu0 0.0
    %4864 = vmatpush1.msra.mxu0 0.0
    %4865 = vmatprep.subr.mxu0 0.0
    %4866 = vmatpush1.msra.mxu0 0.0
    %4867 = vmatprep.subr.mxu0 0.0
    %4868 = vmatpush1.msra.mxu0 0.0
    %4869 = vmatprep.subr.mxu0 0.0
    %4870 = vmatpush1.msra.mxu0 0.0
    %4871 = vmatprep.subr.mxu0 0.0
    %4872 = vmatpush1.msra.mxu0 0.0
    %4873 = vmatprep.subr.mxu0 0.0
    %4874 = vmatpush1.msra.mxu0 0.0
    %4875 = vmatprep.mubr.f32.mxu0 0.0
    %v4876 = vand.u32 %v2745, 4294901760
    %4877 = vmatmul.mubr.f32.gmra.mrb[0].mxu0 %v4876
    %v4878 = vpop.f32.mrb[0].mxu0
    %v4879 = vadd.f32 %v4744, %v4878
    %v4880 = vpop.f32.mrb[0].mxu0
    %4881 = vmatprep.mubr.f32.mxu0 0.0
    %v4882 = vand.u32 %v2746, 4294901760
    %4883 = vmatmul.mubr.f32.gmra.mrb[0].mxu0 %v4882
    %v4884 = vpop.f32.mrb[0].mxu0
    %v4885 = vadd.f32 %v4752, %v4884
    %v4886 = vpop.f32.mrb[0].mxu0
    %4887 = vmatprep.mubr.f32.mxu0 0.0
    %v4888 = vand.u32 %v2747, 4294901760
    %4889 = vmatmul.mubr.f32.gmra.mrb[0].mxu0 %v4888
    %v4890 = vpop.f32.mrb[0].mxu0
    %v4891 = vadd.f32 %v4760, %v4890
    %v4892 = vpop.f32.mrb[0].mxu0
    %4893 = vdwg.mxu0
    %4894 = vmatprep.subr.mxu0 0.0
    %v4895 = vand.u32 %v3507, 4294901760
    %4896 = vmatpush1.msra.mxu0 %v4895
    %4897 = vmatprep.subr.mxu0 0.0
    %v4898 = vand.u32 %v3508, 4294901760
    %4899 = vmatpush1.msra.mxu0 %v4898
    %4900 = vmatprep.subr.mxu0 0.0
    %v4901 = vand.u32 %v3509, 4294901760
    %4902 = vmatpush1.msra.mxu0 %v4901
    %4903 = vmatprep.subr.mxu0 0.0
    %v4904 = vand.u32 %v3510, 4294901760
    %4905 = vmatpush1.msra.mxu0 %v4904
    %4906 = vmatprep.subr.mxu0 0.0
    %v4907 = vand.u32 %v3511, 4294901760
    %4908 = vmatpush1.msra.mxu0 %v4907
    %4909 = vmatprep.subr.mxu0 0.0
    %v4910 = vand.u32 %v3512, 4294901760
    %4911 = vmatpush1.msra.mxu0 %v4910
    %4912 = vmatprep.subr.mxu0 0.0
    %v4913 = vand.u32 %v3513, 4294901760
    %4914 = vmatpush1.msra.mxu0 %v4913
    %4915 = vmatprep.subr.mxu0 0.0
    %v4916 = vand.u32 %v3514, 4294901760
    %4917 = vmatpush1.msra.mxu0 %v4916
    %4918 = vmatprep.subr.mxu0 0.0
    %v4919 = vand.u32 %v3515, 4294901760
    %4920 = vmatpush1.msra.mxu0 %v4919
    %4921 = vmatprep.subr.mxu0 0.0
    %v4922 = vand.u32 %v3516, 4294901760
    %4923 = vmatpush1.msra.mxu0 %v4922
    %4924 = vmatprep.subr.mxu0 0.0
    %v4925 = vand.u32 %v3517, 4294901760
    %4926 = vmatpush1.msra.mxu0 %v4925
    %4927 = vmatprep.subr.mxu0 0.0
    %v4928 = vand.u32 %v3518, 4294901760
    %4929 = vmatpush1.msra.mxu0 %v4928
    %4930 = vmatprep.subr.mxu0 0.0
    %v4931 = vand.u32 %v3519, 4294901760
    %4932 = vmatpush1.msra.mxu0 %v4931
    %4933 = vmatprep.subr.mxu0 0.0
    %v4934 = vand.u32 %v3520, 4294901760
    %4935 = vmatpush1.msra.mxu0 %v4934
    %4936 = vmatprep.subr.mxu0 0.0
    %v4937 = vand.u32 %v3521, 4294901760
    %4938 = vmatpush1.msra.mxu0 %v4937
    %4939 = vmatprep.subr.mxu0 0.0
    %v4940 = vand.u32 %v3522, 4294901760
    %4941 = vmatpush1.msra.mxu0 %v4940
    %4942 = vmatprep.subr.mxu0 0.0
    %4943 = vmatpush1.msra.mxu0 0.0
    %4944 = vmatprep.subr.mxu0 0.0
    %4945 = vmatpush1.msra.mxu0 0.0
    %4946 = vmatprep.subr.mxu0 0.0
    %4947 = vmatpush1.msra.mxu0 0.0
    %4948 = vmatprep.subr.mxu0 0.0
    %4949 = vmatpush1.msra.mxu0 0.0
    %4950 = vmatprep.subr.mxu0 0.0
    %4951 = vmatpush1.msra.mxu0 0.0
    %4952 = vmatprep.subr.mxu0 0.0
    %4953 = vmatpush1.msra.mxu0 0.0
    %4954 = vmatprep.subr.mxu0 0.0
    %4955 = vmatpush1.msra.mxu0 0.0
    %4956 = vmatprep.subr.mxu0 0.0
    %4957 = vmatpush1.msra.mxu0 0.0
    %4958 = vmatprep.subr.mxu0 0.0
    %4959 = vmatpush1.msra.mxu0 0.0
    %4960 = vmatprep.subr.mxu0 0.0
    %4961 = vmatpush1.msra.mxu0 0.0
    %4962 = vmatprep.subr.mxu0 0.0
    %4963 = vmatpush1.msra.mxu0 0.0
    %4964 = vmatprep.subr.mxu0 0.0
    %4965 = vmatpush1.msra.mxu0 0.0
    %4966 = vmatprep.subr.mxu0 0.0
    %4967 = vmatpush1.msra.mxu0 0.0
    %4968 = vmatprep.subr.mxu0 0.0
    %4969 = vmatpush1.msra.mxu0 0.0
    %4970 = vmatprep.subr.mxu0 0.0
    %4971 = vmatpush1.msra.mxu0 0.0
    %4972 = vmatprep.subr.mxu0 0.0
    %4973 = vmatpush1.msra.mxu0 0.0
    %4974 = vmatprep.mubr.f32.mxu0 0.0
    %v4975 = vand.u32 %v2745, 4294901760
    %4976 = vmatmul.mubr.f32.gmra.mrb[0].mxu0 %v4975
    %v4977 = vpop.f32.mrb[0].mxu0
    %v4978 = vadd.f32 %v4879, %v4977
    %v4979 = vpop.f32.mrb[0].mxu0
    %4980 = vmatprep.mubr.f32.mxu0 0.0
    %v4981 = vand.u32 %v2746, 4294901760
    %4982 = vmatmul.mubr.f32.gmra.mrb[0].mxu0 %v4981
    %v4983 = vpop.f32.mrb[0].mxu0
    %v4984 = vadd.f32 %v4885, %v4983
    %v4985 = vpop.f32.mrb[0].mxu0
    %4986 = vmatprep.mubr.f32.mxu0 0.0
    %v4987 = vand.u32 %v2747, 4294901760
    %4988 = vmatmul.mubr.f32.gmra.mrb[0].mxu0 %v4987
    %v4989 = vpop.f32.mrb[0].mxu0
    %v4990 = vadd.f32 %v4891, %v4989
    %v4991 = vpop.f32.mrb[0].mxu0
    %4992 = vdwg.mxu0
    %v4993 = vld [vmem:[%s17] sm:$0x1]
    %v4995 = vlaneseq
    %v4996 = vshrl.u32 %v4995, 7
    %v4997 = vsub.s32 0, %v4996
    %v4998 = vrot.slane %v4993, %v4997
    %v5000 = vadd.f32 %v4978, %v4998
    %v5001 = vadd.f32 %v4984, %v4998
    %v5002 = vadd.f32 %v4990, %v4998
    %5003 = vst [vmem:[#allocation9] sm:$0xff] %v5000
    %5004 = vst [vmem:[#allocation9 + $0x8] sm:$0xff] %v5001
    %5005 = vst [vmem:[#allocation9 + $0x10] sm:$0xff] %v5002
    // Predicated region
    $region77: #{econv_forward.1} parent=1 // pred_check
      _
    $region78: #{econv_forward.1} parent=1 // pred_check_branch
      %5007 = sbr.rel (0) target = $region80
    $region79: #{econv_forward.1} parent=1 // pred_region
      %s5009 = ssub.s32 384, 384
      %5010 = vsyncadd [#allocation10], %s5009
      %s5011 = sshll.u32 [#allocation9], 4
      %s5012 = int_to_ptr.vmem [resolvable:$true] %s5011
      %5017 = dma.vmem_to_hbm [thread:$0]  %s5012, 384, %s18, [#allocation10], 128, 128, 8
    $region80: #{econv_forward.1} parent=1 // pred_fallthru
      _
    // Predicated region
    $region81: #{econv_forward.1} parent=1 // pred_check
      _
    $region82: #{econv_forward.1} parent=1 // pred_check_branch
      %5019 = sbr.rel (0) target = $region84
    $region83: #{econv_forward.1} parent=1 // pred_region
      %5020 = dma.done [#allocation10], 384
    $region84: #{econv_forward.1} parent=1 // pred_fallthru
      _
    %5021 = vsyncpa [#allocation10], 1

</llo_original>
